<compile_context>
chip_gen: v7x
topology: tpu7x:2x2x1
jax: 0.10.0
libtpu: 0.0.40
codegen_flags: <defaults>
</compile_context>

<pallas_src>
import functools

import jax
import jax.numpy as jnp
from jax import lax
from jax.experimental import pallas as pl
from jax.experimental.pallas import tpu as pltpu


def _self_attention_kernel(x_ref, wqkv_ref, bqkv_ref, wo3_ref, bo_ref, o_ref,
                           *, n_heads, head_dim, kv_block):
    # One grid step == one batch element.  x_ref block is (1, S, E).
    _, S, E = x_ref.shape
    H, hd = n_heads, head_dim
    cdt = x_ref.dtype                   # MXU operand dtype (f32 or bf16; wrapper decides)

    x = x_ref[0]                                                       # (S, E)

    # Fused QKV projection: (S,E) @ (E,3E), f32 accumulation on the MXU.
    # The 1/sqrt(head_dim) scale is pre-folded into the Q columns/bias.
    qkv = jnp.dot(x, wqkv_ref[...],
                  preferred_element_type=jnp.float32) + bqkv_ref[...]  # (S, 3E) f32

    # Split heads WITHOUT transposing: (S, H, hd).  Heads are used as a batch
    # dimension of dot_general directly (batch dims need not be leading), so
    # there is no XLU relayout / lane-crossing copy of Q/K/V.
    q = qkv[:, :E].reshape(S, H, hd).astype(cdt)          # scale already folded in
    k = qkv[:, E:2 * E].reshape(S, H, hd).astype(cdt)
    v = qkv[:, 2 * E:].reshape(S, H, hd).astype(cdt)

    # q (S,H,hd) x k_blk (Tk,H,hd) -> scores (H,S,Tk): contract hd, batch H.
    dn_qk = (((2,), (2,)), ((1,), (1,)))
    # p_blk (H,S,Tk) x v_blk (Tk,H,hd) -> (H,S,hd): contract Tk, batch H.
    dn_pv = (((2,), (0,)), ((0,), (1,)))

    # Online softmax over key blocks (flash-style).  num_blocks is static, so
    # the Python loop unrolls at trace time; per-block live score memory is
    # (H,S,Tk) f32.  All softmax elementwise math stays in f32.
    num_blocks = S // kv_block
    m = jnp.full((H, S, 1), -jnp.inf, dtype=jnp.float32)
    l = jnp.zeros((H, S, 1), dtype=jnp.float32)
    acc = jnp.zeros((H, S, hd), dtype=jnp.float32)
    for bi in range(num_blocks):
        lo = bi * kv_block
        k_blk = k[lo:lo + kv_block]                                    # (Tk, H, hd)
        v_blk = v[lo:lo + kv_block]
        s_blk = lax.dot_general(q, k_blk, dn_qk,
                                preferred_element_type=jnp.float32)    # (H, S, Tk)
        m_new = jnp.maximum(m, jnp.max(s_blk, axis=-1, keepdims=True))
        alpha = jnp.exp(m - m_new)
        p_blk = jnp.exp(s_blk - m_new)
        l = alpha * l + jnp.sum(p_blk, axis=-1, keepdims=True)
        acc = alpha * acc + lax.dot_general(p_blk.astype(cdt), v_blk, dn_pv,
                                            preferred_element_type=jnp.float32)
        m = m_new

    # Normalize with the EUP approximate reciprocal (frees the VPU divide).
    ctx = (acc * pl.reciprocal(l, approx=True)).astype(cdt)            # (H, S, hd)

    # Output projection with the head-merge fused in.  W_o^T was reshaped to
    # (H, hd, E) by the wrapper, so out = sum_h ctx[h] @ wo3[h] + b_o, i.e.
    # einsum('hsd,hde->se') with the head sum accumulated in f32.  No
    # (H,S,hd)->(S,E) transpose / lane-crossing reshape of the context tensor,
    # and the stored output stays lane-dense (last dim E).
    out = bo_ref[...].astype(jnp.float32)                              # (1, E), broadcasts
    for h in range(H):
        out = out + jnp.dot(ctx[h], wo3_ref[h],
                            preferred_element_type=jnp.float32)        # (S, E) f32

    o_ref[0] = out.astype(o_ref.dtype)


def _pick_vmem_limit(need_bytes):
    """Per-generation VMEM budget: fit the need, stay inside physical VMEM."""
    try:
        cap = int(pltpu.get_tpu_info().vmem_capacity_bytes)
    except Exception:
        cap = 64 * 1024 * 1024            # smallest real part (v7x: 64 MiB / TC)
    # Leave ~8 MiB headroom for compiler-internal scratch; never below 32 MiB.
    return int(max(32 * 1024 * 1024, min(need_bytes, cap - (8 << 20))))


def self_attention(x, params, *, n_heads, kv_block_size=None, matmul_dtype=None):
    """x: (B, S, E). params: PyTorch-convention weights/biases.

    wq/wk/wv/wo: (E, E) as stored by nn.Linear (out, in); bq/bk/bv/bo: (1, E).
    matmul_dtype: optional MXU operand dtype (e.g. jnp.bfloat16); accumulation
    and softmax math stay f32, output keeps x.dtype.
    """
    B, S, E = x.shape
    assert E % n_heads == 0, "embed_dim must be divisible by n_attention_heads"
    hd = E // n_heads
    scale = 1.0 / (float(hd) ** 0.5)
    out_dtype = x.dtype
    compute_dtype = jnp.dtype(matmul_dtype) if matmul_dtype is not None else x.dtype

    # ---- wrapper-side parameter prep (once, outside the kernel) ----
    #  * transpose to (in, out) so the kernel does plain x @ W (no XLU vxpose)
    #  * fuse Q/K/V into one (E, 3E) weight and one (1, 3E) bias
    #  * fold the attention scale into the Q slab (weight AND bias)
    #  * reshape W_o^T to (H, hd, E) so the head-merge fuses into the out-proj
    #  * optionally cast MXU operands to bf16 (peak MXU path, halves weight VMEM)
    w_qkv = jnp.concatenate(
        [params["wq"].T * scale, params["wk"].T, params["wv"].T],
        axis=1).astype(compute_dtype)                                   # (E, 3E)
    b_qkv = jnp.concatenate(
        [params["bq"] * scale, params["bk"], params["bv"]],
        axis=1).reshape(1, 3 * E).astype(jnp.float32)                   # (1, 3E) f32
    w_o3 = params["wo"].T.reshape(n_heads, hd, E).astype(compute_dtype)  # (H, hd, E)
    b_o = params["bo"].reshape(1, E).astype(jnp.float32)                # (1, E) f32
    x_in = x.astype(compute_dtype)

    # KV block size for the online softmax: keep the per-block f32 score tile
    # (H, S, Tk) under ~8 MiB; full-S single block for short sequences.
    if kv_block_size is None:
        kv_block = S
        while (n_heads * S * kv_block * 4 > (8 << 20)
               and kv_block % 2 == 0 and kv_block > 128):
            kv_block //= 2
    else:
        kv_block = kv_block_size if S % kv_block_size == 0 else S

    # VMEM budget estimate (resident weights + double-buffered per-step data).
    isz_c = jnp.dtype(compute_dtype).itemsize
    weight_bytes = (w_qkv.size + w_o3.size) * isz_c + (b_qkv.size + b_o.size) * 4
    step_bytes = (S * E * isz_c                          # x block
                  + S * E * jnp.dtype(out_dtype).itemsize  # out block
                  + S * 3 * E * 4                        # qkv f32
                  + 3 * S * E * isz_c                    # q/k/v
                  + 2 * n_heads * S * kv_block * 4       # score + prob block
                  + 2 * n_heads * S * hd * 4             # acc + ctx
                  + S * E * 4)                           # out accumulator
    vmem_limit = _pick_vmem_limit(weight_bytes + 2 * step_bytes + (8 << 20))

    # Advisory cost estimate so XLA schedules neighbors (e.g. next-layer weight
    # prefetch) around this custom call.
    cost = pl.CostEstimate(
        flops=(2 * B * S * E * 3 * E            # fused QKV projection
               + 4 * B * n_heads * S * S * hd   # QK^T + PV
               + 2 * B * S * E * E),            # output projection
        transcendentals=B * n_heads * S * S,    # softmax exp
        bytes_accessed=int(x_in.size * x_in.dtype.itemsize
                           + w_qkv.size * w_qkv.dtype.itemsize
                           + b_qkv.size * 4
                           + w_o3.size * w_o3.dtype.itemsize
                           + b_o.size * 4
                           + B * S * E * jnp.dtype(out_dtype).itemsize))

    kernel = functools.partial(_self_attention_kernel,
                               n_heads=n_heads, head_dim=hd, kv_block=kv_block)

    def build(single_buffer_weights):
        if single_buffer_weights:
            # Grid-invariant weights/biases: constant index_map + single buffer
            # (default double-buffering would waste a never-refilled copy).
            def const(shape):
                return pl.BlockSpec(shape, lambda b: (0,) * len(shape),
                                    pipeline_mode=pl.Buffered(1))
        else:
            def const(shape):
                return pl.BlockSpec(shape, lambda b: (0,) * len(shape))

        grid_spec = pltpu.PrefetchScalarGridSpec(
            num_scalar_prefetch=0,
            grid=(B,),  # one batch element per step; "parallel" -> megacore sharding
            in_specs=[
                pl.BlockSpec((1, S, E), lambda b: (b, 0, 0)),    # x
                const((E, 3 * E)),                               # fused QKV weight
                const((1, 3 * E)),                               # fused QKV bias
                const((n_heads, hd, E)),                         # per-head W_o^T
                const((1, E)),                                   # output bias
            ],
            out_specs=pl.BlockSpec((1, S, E), lambda b: (b, 0, 0)),
        )
        return pl.pallas_call(
            kernel,
            out_shape=jax.ShapeDtypeStruct((B, S, E), out_dtype),
            grid_spec=grid_spec,
            compiler_params=pltpu.CompilerParams(
                dimension_semantics=("parallel",),
                vmem_limit_bytes=vmem_limit),
            cost_estimate=cost,
        )

    operands = (x_in, w_qkv, b_qkv, w_o3, b_o)
    try:
        return build(single_buffer_weights=True)(*operands)
    except Exception:
        # Fallback if this jax build rejects pl.Buffered(1) single-buffering of
        # the resident weights; default double-buffering only costs VMEM.
        return build(single_buffer_weights=False)(*operands)


def _reference(x, params, *, n_heads):
    """Pure-JAX reference mirroring the PyTorch forward, for verification."""
    B, S, E = x.shape
    hd = E // n_heads

    def lin(v, w, b):
        return v @ w.T + b

    q = lin(x, params["wq"], params["bq"]).reshape(B, S, n_heads, hd).transpose(0, 2, 1, 3)
    k = lin(x, params["wk"], params["bk"]).reshape(B, S, n_heads, hd).transpose(0, 2, 1, 3)
    v = lin(x, params["wv"], params["bv"]).reshape(B, S, n_heads, hd).transpose(0, 2, 1, 3)
    attn = jnp.einsum("bhqd,bhkd->bhqk", q, k) / (float(hd) ** 0.5)
    attn = jax.nn.softmax(attn, axis=-1)
    ctx = jnp.einsum("bhqk,bhkd->bhqd", attn, v)
    ctx = ctx.transpose(0, 2, 1, 3).reshape(B, S, E)
    return lin(ctx, params["wo"], params["bo"])


if __name__ == "__main__":
    # Small shapes consistent with the module: batch=2, seq=8, embed=32, 4 heads.
    B, S, E, H = 2, 8, 32, 4

    key = jax.random.PRNGKey(0)
    kx, kq, kk, kv_, ko, kbq, kbk, kbv, kbo = jax.random.split(key, 9)

    x = jax.random.normal(kx, (B, S, E), dtype=jnp.float32)

    def init_w(k):
        return jax.random.normal(k, (E, E), dtype=jnp.float32) * 0.05

    def init_b(k):
        return jax.random.normal(k, (1, E), dtype=jnp.float32) * 0.05

    params = {
        "wq": init_w(kq), "bq": init_b(kbq),
        "wk": init_w(kk), "bk": init_b(kbk),
        "wv": init_w(kv_), "bv": init_b(kbv),
        "wo": init_w(ko), "bo": init_b(kbo),
    }

    ref = _reference(x, params, n_heads=H)

    # 1) f32 operands, single KV block (default path for short sequences).
    out = jax.block_until_ready(self_attention(x, params, n_heads=H))
    assert out.shape == (B, S, E)
    # Tolerance absorbs the EUP approximate reciprocal in the softmax.
    assert jnp.allclose(out, ref, atol=2e-3, rtol=2e-3), (
        float(jnp.max(jnp.abs(out - ref))))

    # 2) Exercise the online-softmax (flash-style) key-blocked path: 2 KV blocks.
    out_blk = jax.block_until_ready(
        self_attention(x, params, n_heads=H, kv_block_size=4))
    assert jnp.allclose(out_blk, ref, atol=2e-3, rtol=2e-3), (
        float(jnp.max(jnp.abs(out_blk - ref))))

    # 3) bf16 MXU operands (peak MXU path); softmax math stays f32, so the
    #    widened tolerance only reflects bf16 operand rounding.
    out_bf16 = jax.block_until_ready(
        self_attention(x, params, n_heads=H, matmul_dtype=jnp.bfloat16))
    assert jnp.allclose(out_bf16, ref, atol=5e-2, rtol=5e-2), (
        float(jnp.max(jnp.abs(out_bf16 - ref))))

    print("KERNEL_OK")
</pallas_src>

<mosaic_0001>
module attributes {stable_mosaic.version = 11 : i64} {
  func.func @_self_attention_kernel(%arg0: i32, %arg1: memref<1x8x32xf32, #tpu.memory_space<vmem>>, %arg2: memref<32x96xf32, #tpu.memory_space<vmem>>, %arg3: memref<1x96xf32, #tpu.memory_space<vmem>>, %arg4: memref<4x8x32xf32, #tpu.memory_space<vmem>>, %arg5: memref<1x32xf32, #tpu.memory_space<vmem>>, %arg6: memref<1x8x32xf32, #tpu.memory_space<vmem>>) attributes {dimension_semantics = [#tpu.dimension_semantics<parallel>], iteration_bounds = array<i64: 2>, scalar_prefetch = 0 : i64, scratch_operands = 0 : i64, tpu.core_type = #tpu.core_type<tc>, window_params = [{transform_indices = @transform_0, window_bounds = array<i64: 1, 8, 32>}, {pipeline_mode = #tpu.pipeline_mode<synchronous>, transform_indices = @transform_1, window_bounds = array<i64: 32, 96>}, {pipeline_mode = #tpu.pipeline_mode<synchronous>, transform_indices = @transform_2, window_bounds = array<i64: 1, 96>}, {pipeline_mode = #tpu.pipeline_mode<synchronous>, transform_indices = @transform_3, window_bounds = array<i64: 4, 8, 32>}, {pipeline_mode = #tpu.pipeline_mode<synchronous>, transform_indices = @transform_4, window_bounds = array<i64: 1, 32>}, {transform_indices = @transform_5, window_bounds = array<i64: 1, 8, 32>}]} {
    %c0 = arith.constant 0 : index
    %c0_0 = arith.constant 0 : index
    %c0_1 = arith.constant 0 : index
    %0 = vector.load %arg1[%c0, %c0_0, %c0_1] : memref<1x8x32xf32, #tpu.memory_space<vmem>>, vector<1x8x32xf32>
    %1 = vector.shape_cast %0 : vector<1x8x32xf32> to vector<8x32xf32>
    %c0_2 = arith.constant 0 : index
    %c0_3 = arith.constant 0 : index
    %2 = vector.load %arg2[%c0_2, %c0_3] : memref<32x96xf32, #tpu.memory_space<vmem>>, vector<32x96xf32>
    %cst = arith.constant dense<0.000000e+00> : vector<8x96xf32>
    %3 = tpu.matmul %1, %2, %cst {dimension_numbers = #tpu.dot_dimension_numbers<[1], [0], [0], [1], [0, 0, 1, 1], [], []>} : vector<8x32xf32>, vector<32x96xf32>, vector<8x96xf32> -> vector<8x96xf32>
    %c0_4 = arith.constant 0 : index
    %c0_5 = arith.constant 0 : index
    %4 = vector.load %arg3[%c0_4, %c0_5] : memref<1x96xf32, #tpu.memory_space<vmem>>, vector<1x96xf32>
    %5 = vector.broadcast %4 : vector<1x96xf32> to vector<8x96xf32>
    %6 = arith.addf %3, %5 : vector<8x96xf32>
    %7 = vector.extract_strided_slice %6 {offsets = [0, 0], sizes = [8, 32], strides = [1, 1]} : vector<8x96xf32> to vector<8x32xf32>
    %8 = vector.shape_cast %7 : vector<8x32xf32> to vector<8x4x8xf32>
    %9 = vector.extract_strided_slice %6 {offsets = [0, 32], sizes = [8, 32], strides = [1, 1]} : vector<8x96xf32> to vector<8x32xf32>
    %10 = vector.shape_cast %9 : vector<8x32xf32> to vector<8x4x8xf32>
    %11 = vector.extract_strided_slice %6 {offsets = [0, 64], sizes = [8, 32], strides = [1, 1]} : vector<8x96xf32> to vector<8x32xf32>
    %12 = vector.shape_cast %11 : vector<8x32xf32> to vector<8x4x8xf32>
    %cst_6 = arith.constant 0xFF800000 : f32
    %13 = vector.broadcast %cst_6 : f32 to vector<4x8x1xf32>
    %cst_7 = arith.constant 0.000000e+00 : f32
    %14 = vector.broadcast %cst_7 : f32 to vector<4x8x1xf32>
    %cst_8 = arith.constant 0.000000e+00 : f32
    %15 = vector.broadcast %cst_8 : f32 to vector<4x8x8xf32>
    %cst_9 = arith.constant dense<0.000000e+00> : vector<4x8x8xf32>
    %16 = tpu.matmul %8, %10, %cst_9 {dimension_numbers = #tpu.dot_dimension_numbers<[2], [2], [0], [0], [0, 1, 0, 0, 1, 0], [1], [1]>} : vector<8x4x8xf32>, vector<8x4x8xf32>, vector<4x8x8xf32> -> vector<4x8x8xf32>
    %cst_10 = arith.constant dense<0xFF800000> : vector<4x8xf32>
    %17 = vector.multi_reduction <maximumf>, %16, %cst_10 [2] : vector<4x8x8xf32> to vector<4x8xf32>
    %18 = vector.shape_cast %17 : vector<4x8xf32> to vector<4x8x1xf32>
    %19 = arith.maximumf %13, %18 : vector<4x8x1xf32>
    %20 = arith.subf %13, %19 : vector<4x8x1xf32>
    %21 = math.exp %20 : vector<4x8x1xf32>
    %22 = vector.broadcast %19 : vector<4x8x1xf32> to vector<4x8x8xf32>
    %23 = arith.subf %16, %22 : vector<4x8x8xf32>
    %24 = math.exp %23 : vector<4x8x8xf32>
    %25 = arith.mulf %21, %14 : vector<4x8x1xf32>
    %cst_11 = arith.constant dense<0.000000e+00> : vector<4x8xf32>
    %26 = vector.multi_reduction <add>, %24, %cst_11 [2] : vector<4x8x8xf32> to vector<4x8xf32>
    %27 = vector.shape_cast %26 : vector<4x8xf32> to vector<4x8x1xf32>
    %28 = arith.addf %25, %27 : vector<4x8x1xf32>
    %29 = vector.broadcast %21 : vector<4x8x1xf32> to vector<4x8x8xf32>
    %30 = arith.mulf %29, %15 : vector<4x8x8xf32>
    %cst_12 = arith.constant dense<0.000000e+00> : vector<4x8x8xf32>
    %31 = tpu.matmul %24, %12, %cst_12 {dimension_numbers = #tpu.dot_dimension_numbers<[2], [0], [1], [2], [0, 0, 0, 1, 1, 2], [0], [1]>} : vector<4x8x8xf32>, vector<8x4x8xf32>, vector<4x8x8xf32> -> vector<4x8x8xf32>
    %32 = arith.addf %30, %31 : vector<4x8x8xf32>
    %33 = tpu.reciprocal %28 {approx = true} : vector<4x8x1xf32> -> vector<4x8x1xf32>
    %34 = vector.broadcast %33 : vector<4x8x1xf32> to vector<4x8x8xf32>
    %35 = arith.mulf %32, %34 : vector<4x8x8xf32>
    %c0_13 = arith.constant 0 : index
    %c0_14 = arith.constant 0 : index
    %36 = vector.load %arg5[%c0_13, %c0_14] : memref<1x32xf32, #tpu.memory_space<vmem>>, vector<1x32xf32>
    %37 = vector.extract_strided_slice %35 {offsets = [0, 0, 0], sizes = [1, 8, 8], strides = [1, 1, 1]} : vector<4x8x8xf32> to vector<1x8x8xf32>
    %38 = vector.shape_cast %37 : vector<1x8x8xf32> to vector<8x8xf32>
    %c0_15 = arith.constant 0 : index
    %c0_16 = arith.constant 0 : index
    %c0_17 = arith.constant 0 : index
    %39 = vector.load %arg4[%c0_15, %c0_16, %c0_17] : memref<4x8x32xf32, #tpu.memory_space<vmem>>, vector<1x8x32xf32>
    %40 = vector.shape_cast %39 : vector<1x8x32xf32> to vector<8x32xf32>
    %cst_18 = arith.constant dense<0.000000e+00> : vector<8x32xf32>
    %41 = tpu.matmul %38, %40, %cst_18 {dimension_numbers = #tpu.dot_dimension_numbers<[1], [0], [0], [1], [0, 0, 1, 1], [], []>} : vector<8x8xf32>, vector<8x32xf32>, vector<8x32xf32> -> vector<8x32xf32>
    %42 = vector.broadcast %36 : vector<1x32xf32> to vector<8x32xf32>
    %43 = arith.addf %42, %41 : vector<8x32xf32>
    %44 = vector.extract_strided_slice %35 {offsets = [1, 0, 0], sizes = [1, 8, 8], strides = [1, 1, 1]} : vector<4x8x8xf32> to vector<1x8x8xf32>
    %45 = vector.shape_cast %44 : vector<1x8x8xf32> to vector<8x8xf32>
    %c1 = arith.constant 1 : index
    %c0_19 = arith.constant 0 : index
    %c0_20 = arith.constant 0 : index
    %46 = vector.load %arg4[%c1, %c0_19, %c0_20] : memref<4x8x32xf32, #tpu.memory_space<vmem>>, vector<1x8x32xf32>
    %47 = vector.shape_cast %46 : vector<1x8x32xf32> to vector<8x32xf32>
    %cst_21 = arith.constant dense<0.000000e+00> : vector<8x32xf32>
    %48 = tpu.matmul %45, %47, %cst_21 {dimension_numbers = #tpu.dot_dimension_numbers<[1], [0], [0], [1], [0, 0, 1, 1], [], []>} : vector<8x8xf32>, vector<8x32xf32>, vector<8x32xf32> -> vector<8x32xf32>
    %49 = arith.addf %43, %48 : vector<8x32xf32>
    %50 = vector.extract_strided_slice %35 {offsets = [2, 0, 0], sizes = [1, 8, 8], strides = [1, 1, 1]} : vector<4x8x8xf32> to vector<1x8x8xf32>
    %51 = vector.shape_cast %50 : vector<1x8x8xf32> to vector<8x8xf32>
    %c2 = arith.constant 2 : index
    %c0_22 = arith.constant 0 : index
    %c0_23 = arith.constant 0 : index
    %52 = vector.load %arg4[%c2, %c0_22, %c0_23] : memref<4x8x32xf32, #tpu.memory_space<vmem>>, vector<1x8x32xf32>
    %53 = vector.shape_cast %52 : vector<1x8x32xf32> to vector<8x32xf32>
    %cst_24 = arith.constant dense<0.000000e+00> : vector<8x32xf32>
    %54 = tpu.matmul %51, %53, %cst_24 {dimension_numbers = #tpu.dot_dimension_numbers<[1], [0], [0], [1], [0, 0, 1, 1], [], []>} : vector<8x8xf32>, vector<8x32xf32>, vector<8x32xf32> -> vector<8x32xf32>
    %55 = arith.addf %49, %54 : vector<8x32xf32>
    %56 = vector.extract_strided_slice %35 {offsets = [3, 0, 0], sizes = [1, 8, 8], strides = [1, 1, 1]} : vector<4x8x8xf32> to vector<1x8x8xf32>
    %57 = vector.shape_cast %56 : vector<1x8x8xf32> to vector<8x8xf32>
    %c3 = arith.constant 3 : index
    %c0_25 = arith.constant 0 : index
    %c0_26 = arith.constant 0 : index
    %58 = vector.load %arg4[%c3, %c0_25, %c0_26] : memref<4x8x32xf32, #tpu.memory_space<vmem>>, vector<1x8x32xf32>
    %59 = vector.shape_cast %58 : vector<1x8x32xf32> to vector<8x32xf32>
    %cst_27 = arith.constant dense<0.000000e+00> : vector<8x32xf32>
    %60 = tpu.matmul %57, %59, %cst_27 {dimension_numbers = #tpu.dot_dimension_numbers<[1], [0], [0], [1], [0, 0, 1, 1], [], []>} : vector<8x8xf32>, vector<8x32xf32>, vector<8x32xf32> -> vector<8x32xf32>
    %61 = arith.addf %55, %60 : vector<8x32xf32>
    %c0_28 = arith.constant 0 : index
    %c0_29 = arith.constant 0 : index
    %c0_30 = arith.constant 0 : index
    %62 = vector.load %arg6[%c0_28, %c0_29, %c0_30] : memref<1x8x32xf32, #tpu.memory_space<vmem>>, vector<1x8x32xf32>
    %63 = vector.shape_cast %62 : vector<1x8x32xf32> to vector<8x32xf32>
    %64 = vector.shape_cast %61 : vector<8x32xf32> to vector<1x8x32xf32>
    tpu.vector_store %arg6[%c0_28, %c0_29, %c0_30], %64 {strides = array<i32>} : memref<1x8x32xf32, #tpu.memory_space<vmem>>, vector<1x8x32xf32>,
    return
  }
  func.func @transform_0(%arg0: i32) -> (i32, i32, i32) {
    %c0_i32 = arith.constant 0 : i32
    %c0_i32_0 = arith.constant 0 : i32
    %c0_i32_1 = arith.constant 0 : i32
    return %arg0, %c0_i32, %c0_i32_0 : i32, i32, i32
  }
  func.func @transform_1(%arg0: i32) -> (i32, i32) {
    %c0_i32 = arith.constant 0 : i32
    %c0_i32_0 = arith.constant 0 : i32
    %c0_i32_1 = arith.constant 0 : i32
    return %c0_i32, %c0_i32_0 : i32, i32
  }
  func.func @transform_2(%arg0: i32) -> (i32, i32) {
    %c0_i32 = arith.constant 0 : i32
    %c0_i32_0 = arith.constant 0 : i32
    %c0_i32_1 = arith.constant 0 : i32
    return %c0_i32, %c0_i32_0 : i32, i32
  }
  func.func @transform_3(%arg0: i32) -> (i32, i32, i32) {
    %c0_i32 = arith.constant 0 : i32
    %c0_i32_0 = arith.constant 0 : i32
    %c0_i32_1 = arith.constant 0 : i32
    %c0_i32_2 = arith.constant 0 : i32
    return %c0_i32, %c0_i32_0, %c0_i32_1 : i32, i32, i32
  }
  func.func @transform_4(%arg0: i32) -> (i32, i32) {
    %c0_i32 = arith.constant 0 : i32
    %c0_i32_0 = arith.constant 0 : i32
    %c0_i32_1 = arith.constant 0 : i32
    return %c0_i32, %c0_i32_0 : i32, i32
  }
  func.func @transform_5(%arg0: i32) -> (i32, i32, i32) {
    %c0_i32 = arith.constant 0 : i32
    %c0_i32_0 = arith.constant 0 : i32
    %c0_i32_1 = arith.constant 0 : i32
    return %arg0, %c0_i32, %c0_i32_0 : i32, i32, i32
  }
}

module attributes {stable_mosaic.version = 11 : i64} {
  func.func @_self_attention_kernel(%arg0: i32, %arg1: memref<1x8x32xf32, #tpu.memory_space<vmem>>, %arg2: memref<32x96xf32, #tpu.memory_space<vmem>>, %arg3: memref<1x96xf32, #tpu.memory_space<vmem>>, %arg4: memref<4x8x32xf32, #tpu.memory_space<vmem>>, %arg5: memref<1x32xf32, #tpu.memory_space<vmem>>, %arg6: memref<1x8x32xf32, #tpu.memory_space<vmem>>) attributes {dimension_semantics = [#tpu.dimension_semantics<parallel>], iteration_bounds = array<i64: 2>, scalar_prefetch = 0 : i64, scratch_operands = 0 : i64, tpu.core_type = #tpu.core_type<tc>, window_params = [{transform_indices = @transform_0, window_bounds = array<i64: 1, 8, 32>}, {pipeline_mode = #tpu.pipeline_mode<synchronous>, transform_indices = @transform_1, window_bounds = array<i64: 32, 96>}, {pipeline_mode = #tpu.pipeline_mode<synchronous>, transform_indices = @transform_2, window_bounds = array<i64: 1, 96>}, {pipeline_mode = #tpu.pipeline_mode<synchronous>, transform_indices = @transform_3, window_bounds = array<i64: 4, 8, 32>}, {pipeline_mode = #tpu.pipeline_mode<synchronous>, transform_indices = @transform_4, window_bounds = array<i64: 1, 32>}, {transform_indices = @transform_5, window_bounds = array<i64: 1, 8, 32>}]} {
    %c0 = arith.constant 0 : index
    %c0_0 = arith.constant 0 : index
    %c0_1 = arith.constant 0 : index
    %0 = vector.load %arg1[%c0, %c0_0, %c0_1] : memref<1x8x32xf32, #tpu.memory_space<vmem>>, vector<1x8x32xf32>
    %1 = vector.shape_cast %0 : vector<1x8x32xf32> to vector<8x32xf32>
    %c0_2 = arith.constant 0 : index
    %c0_3 = arith.constant 0 : index
    %2 = vector.load %arg2[%c0_2, %c0_3] : memref<32x96xf32, #tpu.memory_space<vmem>>, vector<32x96xf32>
    %cst = arith.constant dense<0.000000e+00> : vector<8x96xf32>
    %3 = tpu.matmul %1, %2, %cst {dimension_numbers = #tpu.dot_dimension_numbers<[1], [0], [0], [1], [0, 0, 1, 1], [], []>} : vector<8x32xf32>, vector<32x96xf32>, vector<8x96xf32> -> vector<8x96xf32>
    %c0_4 = arith.constant 0 : index
    %c0_5 = arith.constant 0 : index
    %4 = vector.load %arg3[%c0_4, %c0_5] : memref<1x96xf32, #tpu.memory_space<vmem>>, vector<1x96xf32>
    %5 = vector.broadcast %4 : vector<1x96xf32> to vector<8x96xf32>
    %6 = arith.addf %3, %5 : vector<8x96xf32>
    %7 = vector.extract_strided_slice %6 {offsets = [0, 0], sizes = [8, 32], strides = [1, 1]} : vector<8x96xf32> to vector<8x32xf32>
    %8 = vector.shape_cast %7 : vector<8x32xf32> to vector<8x4x8xf32>
    %9 = vector.extract_strided_slice %6 {offsets = [0, 32], sizes = [8, 32], strides = [1, 1]} : vector<8x96xf32> to vector<8x32xf32>
    %10 = vector.shape_cast %9 : vector<8x32xf32> to vector<8x4x8xf32>
    %11 = vector.extract_strided_slice %6 {offsets = [0, 64], sizes = [8, 32], strides = [1, 1]} : vector<8x96xf32> to vector<8x32xf32>
    %12 = vector.shape_cast %11 : vector<8x32xf32> to vector<8x4x8xf32>
    %cst_6 = arith.constant 0xFF800000 : f32
    %13 = vector.broadcast %cst_6 : f32 to vector<4x8x1xf32>
    %cst_7 = arith.constant 0.000000e+00 : f32
    %14 = vector.broadcast %cst_7 : f32 to vector<4x8x1xf32>
    %cst_8 = arith.constant 0.000000e+00 : f32
    %15 = vector.broadcast %cst_8 : f32 to vector<4x8x8xf32>
    %cst_9 = arith.constant dense<0.000000e+00> : vector<4x8x8xf32>
    %16 = tpu.matmul %8, %10, %cst_9 {dimension_numbers = #tpu.dot_dimension_numbers<[2], [2], [0], [0], [0, 1, 0, 0, 1, 0], [1], [1]>} : vector<8x4x8xf32>, vector<8x4x8xf32>, vector<4x8x8xf32> -> vector<4x8x8xf32>
    %cst_10 = arith.constant dense<0xFF800000> : vector<4x8xf32>
    %17 = vector.multi_reduction <maximumf>, %16, %cst_10 [2] : vector<4x8x8xf32> to vector<4x8xf32>
    %18 = vector.shape_cast %17 : vector<4x8xf32> to vector<4x8x1xf32>
    %19 = arith.maximumf %13, %18 : vector<4x8x1xf32>
    %20 = arith.subf %13, %19 : vector<4x8x1xf32>
    %21 = math.exp %20 : vector<4x8x1xf32>
    %22 = vector.broadcast %19 : vector<4x8x1xf32> to vector<4x8x8xf32>
    %23 = arith.subf %16, %22 : vector<4x8x8xf32>
    %24 = math.exp %23 : vector<4x8x8xf32>
    %25 = arith.mulf %21, %14 : vector<4x8x1xf32>
    %cst_11 = arith.constant dense<0.000000e+00> : vector<4x8xf32>
    %26 = vector.multi_reduction <add>, %24, %cst_11 [2] : vector<4x8x8xf32> to vector<4x8xf32>
    %27 = vector.shape_cast %26 : vector<4x8xf32> to vector<4x8x1xf32>
    %28 = arith.addf %25, %27 : vector<4x8x1xf32>
    %29 = vector.broadcast %21 : vector<4x8x1xf32> to vector<4x8x8xf32>
    %30 = arith.mulf %29, %15 : vector<4x8x8xf32>
    %cst_12 = arith.constant dense<0.000000e+00> : vector<4x8x8xf32>
    %31 = tpu.matmul %24, %12, %cst_12 {dimension_numbers = #tpu.dot_dimension_numbers<[2], [0], [1], [2], [0, 0, 0, 1, 1, 2], [0], [1]>} : vector<4x8x8xf32>, vector<8x4x8xf32>, vector<4x8x8xf32> -> vector<4x8x8xf32>
    %32 = arith.addf %30, %31 : vector<4x8x8xf32>
    %33 = tpu.reciprocal %28 {approx = true} : vector<4x8x1xf32> -> vector<4x8x1xf32>
    %34 = vector.broadcast %33 : vector<4x8x1xf32> to vector<4x8x8xf32>
    %35 = arith.mulf %32, %34 : vector<4x8x8xf32>
    %c0_13 = arith.constant 0 : index
    %c0_14 = arith.constant 0 : index
    %36 = vector.load %arg5[%c0_13, %c0_14] : memref<1x32xf32, #tpu.memory_space<vmem>>, vector<1x32xf32>
    %37 = vector.extract_strided_slice %35 {offsets = [0, 0, 0], sizes = [1, 8, 8], strides = [1, 1, 1]} : vector<4x8x8xf32> to vector<1x8x8xf32>
    %38 = vector.shape_cast %37 : vector<1x8x8xf32> to vector<8x8xf32>
    %c0_15 = arith.constant 0 : index
    %c0_16 = arith.constant 0 : index
    %c0_17 = arith.constant 0 : index
    %39 = vector.load %arg4[%c0_15, %c0_16, %c0_17] : memref<4x8x32xf32, #tpu.memory_space<vmem>>, vector<1x8x32xf32>
    %40 = vector.shape_cast %39 : vector<1x8x32xf32> to vector<8x32xf32>
    %cst_18 = arith.constant dense<0.000000e+00> : vector<8x32xf32>
    %41 = tpu.matmul %38, %40, %cst_18 {dimension_numbers = #tpu.dot_dimension_numbers<[1], [0], [0], [1], [0, 0, 1, 1], [], []>} : vector<8x8xf32>, vector<8x32xf32>, vector<8x32xf32> -> vector<8x32xf32>
    %42 = vector.broadcast %36 : vector<1x32xf32> to vector<8x32xf32>
    %43 = arith.addf %42, %41 : vector<8x32xf32>
    %44 = vector.extract_strided_slice %35 {offsets = [1, 0, 0], sizes = [1, 8, 8], strides = [1, 1, 1]} : vector<4x8x8xf32> to vector<1x8x8xf32>
    %45 = vector.shape_cast %44 : vector<1x8x8xf32> to vector<8x8xf32>
    %c1 = arith.constant 1 : index
    %c0_19 = arith.constant 0 : index
    %c0_20 = arith.constant 0 : index
    %46 = vector.load %arg4[%c1, %c0_19, %c0_20] : memref<4x8x32xf32, #tpu.memory_space<vmem>>, vector<1x8x32xf32>
    %47 = vector.shape_cast %46 : vector<1x8x32xf32> to vector<8x32xf32>
    %cst_21 = arith.constant dense<0.000000e+00> : vector<8x32xf32>
    %48 = tpu.matmul %45, %47, %cst_21 {dimension_numbers = #tpu.dot_dimension_numbers<[1], [0], [0], [1], [0, 0, 1, 1], [], []>} : vector<8x8xf32>, vector<8x32xf32>, vector<8x32xf32> -> vector<8x32xf32>
    %49 = arith.addf %43, %48 : vector<8x32xf32>
    %50 = vector.extract_strided_slice %35 {offsets = [2, 0, 0], sizes = [1, 8, 8], strides = [1, 1, 1]} : vector<4x8x8xf32> to vector<1x8x8xf32>
    %51 = vector.shape_cast %50 : vector<1x8x8xf32> to vector<8x8xf32>
    %c2 = arith.constant 2 : index
    %c0_22 = arith.constant 0 : index
    %c0_23 = arith.constant 0 : index
    %52 = vector.load %arg4[%c2, %c0_22, %c0_23] : memref<4x8x32xf32, #tpu.memory_space<vmem>>, vector<1x8x32xf32>
    %53 = vector.shape_cast %52 : vector<1x8x32xf32> to vector<8x32xf32>
    %cst_24 = arith.constant dense<0.000000e+00> : vector<8x32xf32>
    %54 = tpu.matmul %51, %53, %cst_24 {dimension_numbers = #tpu.dot_dimension_numbers<[1], [0], [0], [1], [0, 0, 1, 1], [], []>} : vector<8x8xf32>, vector<8x32xf32>, vector<8x32xf32> -> vector<8x32xf32>
    %55 = arith.addf %49, %54 : vector<8x32xf32>
    %56 = vector.extract_strided_slice %35 {offsets = [3, 0, 0], sizes = [1, 8, 8], strides = [1, 1, 1]} : vector<4x8x8xf32> to vector<1x8x8xf32>
    %57 = vector.shape_cast %56 : vector<1x8x8xf32> to vector<8x8xf32>
    %c3 = arith.constant 3 : index
    %c0_25 = arith.constant 0 : index
    %c0_26 = arith.constant 0 : index
    %58 = vector.load %arg4[%c3, %c0_25, %c0_26] : memref<4x8x32xf32, #tpu.memory_space<vmem>>, vector<1x8x32xf32>
    %59 = vector.shape_cast %58 : vector<1x8x32xf32> to vector<8x32xf32>
    %cst_27 = arith.constant dense<0.000000e+00> : vector<8x32xf32>
    %60 = tpu.matmul %57, %59, %cst_27 {dimension_numbers = #tpu.dot_dimension_numbers<[1], [0], [0], [1], [0, 0, 1, 1], [], []>} : vector<8x8xf32>, vector<8x32xf32>, vector<8x32xf32> -> vector<8x32xf32>
    %61 = arith.addf %55, %60 : vector<8x32xf32>
    %c0_28 = arith.constant 0 : index
    %c0_29 = arith.constant 0 : index
    %c0_30 = arith.constant 0 : index
    %62 = vector.load %arg6[%c0_28, %c0_29, %c0_30] : memref<1x8x32xf32, #tpu.memory_space<vmem>>, vector<1x8x32xf32>
    %63 = vector.shape_cast %62 : vector<1x8x32xf32> to vector<8x32xf32>
    %64 = vector.shape_cast %61 : vector<8x32xf32> to vector<1x8x32xf32>
    tpu.vector_store %arg6[%c0_28, %c0_29, %c0_30], %64 {strides = array<i32>} : memref<1x8x32xf32, #tpu.memory_space<vmem>>, vector<1x8x32xf32>,
    return
  }
  func.func @transform_0(%arg0: i32) -> (i32, i32, i32) {
    %c0_i32 = arith.constant 0 : i32
    %c0_i32_0 = arith.constant 0 : i32
    %c0_i32_1 = arith.constant 0 : i32
    return %arg0, %c0_i32, %c0_i32_0 : i32, i32, i32
  }
  func.func @transform_1(%arg0: i32) -> (i32, i32) {
    %c0_i32 = arith.constant 0 : i32
    %c0_i32_0 = arith.constant 0 : i32
    %c0_i32_1 = arith.constant 0 : i32
    return %c0_i32, %c0_i32_0 : i32, i32
  }
  func.func @transform_2(%arg0: i32) -> (i32, i32) {
    %c0_i32 = arith.constant 0 : i32
    %c0_i32_0 = arith.constant 0 : i32
    %c0_i32_1 = arith.constant 0 : i32
    return %c0_i32, %c0_i32_0 : i32, i32
  }
  func.func @transform_3(%arg0: i32) -> (i32, i32, i32) {
    %c0_i32 = arith.constant 0 : i32
    %c0_i32_0 = arith.constant 0 : i32
    %c0_i32_1 = arith.constant 0 : i32
    %c0_i32_2 = arith.constant 0 : i32
    return %c0_i32, %c0_i32_0, %c0_i32_1 : i32, i32, i32
  }
  func.func @transform_4(%arg0: i32) -> (i32, i32) {
    %c0_i32 = arith.constant 0 : i32
    %c0_i32_0 = arith.constant 0 : i32
    %c0_i32_1 = arith.constant 0 : i32
    return %c0_i32, %c0_i32_0 : i32, i32
  }
  func.func @transform_5(%arg0: i32) -> (i32, i32, i32) {
    %c0_i32 = arith.constant 0 : i32
    %c0_i32_0 = arith.constant 0 : i32
    %c0_i32_1 = arith.constant 0 : i32
    return %arg0, %c0_i32, %c0_i32_0 : i32, i32, i32
  }
}

</mosaic_0001>

<llo_original>
// kernel: tpu_custom_call.1
$region0: #{tpu_custom_call.1}
  #allocation0 [shape = 'u32[]', space=smem, size = 0x4, offset = 0x4, fixed_abs, tag = 'smem constant byte address 0x4 - core index']
  #allocation1 [shape = 'u32[144,128]{1,0:T(1,128)}', space=vmem, size = 0x12000, scoped, tag = 'internal scratch']
  %s0 = inlined_call_operand.hbm [shape: f32[2,8,32], index: 0, kind: input, shape index: {}]
  %s1 = inlined_call_operand.hbm [shape: f32[32,96], index: 1, kind: input, shape index: {}]
  %s2 = inlined_call_operand.vmem [shape: f32[1,96], index: 2, kind: input, shape index: {}]
  %s3 = inlined_call_operand.hbm [shape: f32[4,8,32], index: 3, kind: input, shape index: {}]
  %s4 = inlined_call_operand.vmem [shape: f32[1,32], index: 4, kind: input, shape index: {}]
  %s5 = inlined_call_operand.hbm [shape: f32[2,8,32], index: 5, kind: output, shape index: {}]
  %s6 = sld [smem:[#allocation0]]
  $region65: #{tpu_custom_call.1} parent=0
    _
  %s8 = ssub.s32 1, %s6
  %s9 = scalar_select 0, %s8, %s6
  $region1: #{tpu_custom_call.1} parent=0
    #allocation2 [shape = 'u8[8192]{0}', space=vmem, size = 0x2000, scoped, tag = 'input window, operand 0']
    #allocation3 [shape = 's32[2]{0}', space=sflag, size = 0x8, scoped, tag = 'scoped memory for tpu_custom_call.1']
    #allocation4 [shape = 's32[2]{0}', space=sflag, size = 0x8, scoped, tag = 'scoped memory for tpu_custom_call.1']
    #allocation5 [shape = 'u8[16384]{0}', space=vmem, size = 0x4000, scoped, tag = 'input window, operand 1, single buffered']
    #allocation6 [shape = 's32[1]{0}', space=sflag, size = 0x4, scoped, tag = 'scoped memory for tpu_custom_call.1']
    #allocation7 [shape = 'u8[16384]{0}', space=vmem, size = 0x4000, scoped, tag = 'input window, operand 3, single buffered']
    #allocation8 [shape = 'u8[8192]{0}', space=vmem, size = 0x2000, scoped, tag = 'output window, operand 0']
    %10 = vsyncpa [#allocation3], 0
    %s11 = scalar_lea.sflag [#allocation3], 1
    %12 = vsyncpa %s11, 0
    %13 = vsyncpa [#allocation6], 0
    %14 = vsyncpa [#allocation4], 0
    %s15 = scalar_lea.sflag [#allocation4], 1
    %16 = vsyncpa %s15, 0
    loop: start=0, step=1, limit=4
    $region2: #{tpu_custom_call.1} parent=1 // loop_pre_header
      _
    $region3: #{tpu_custom_call.1} parent=1 // loop_header
      %s18 = sphi 0, %s22
      %p19 = scmp.ge.s32.totalorder %s18, 4
      %s28 = sphi 0, %s30
      %s31 = sphi 0, %s28
      %s32 = sphi 0, %s31
      %s48 = sphi 0, %s32
      %s52 = sphi 0, %s52
      %s54 = sphi 0, %s52
      %s55 = sphi 0, %s54
      %s69 = sphi 0, %s55
      %s73 = sphi 0, %s73
      %s75 = sphi 0, %s73
      %s76 = sphi 0, %s75
      %s90 = sphi 0, %s76
      %s94 = sphi 0, %s94
      %s96 = sphi 0, %s94
      %s97 = sphi 0, %s96
      %s111 = sphi 0, %s97
      %s115 = sphi 0, %s115
      %s117 = sphi 0, %s115
      %s118 = sphi 0, %s117
      %s132 = sphi 0, %s118
      %s138 = sphi 0, %s140
      %s141 = sphi 0, %s138
      %s142 = sphi 0, %s141
      %s158 = sphi 0, %s142
    $region4: #{tpu_custom_call.1} parent=1 // loop_header_branch
      %21 = sbr.rel (%p19) target = $region8
    $region5: #{tpu_custom_call.1} parent=1 // loop_body
      %s23 = ssub.s32 %s18, 1
      %s24 = ssub.s32 %s18, 2
      %s25 = sadd.s32 %s18, 1
      %s26 = ssub.s32 %s18, %s25
      %p27 = scmp.eq.s32.totalorder %s26, 0
      %s29 = sadd.s32 %s28, 1
      %s30 = scalar_select %p27, %s28, %s29
      %p33 = pneg %p27
      %p34 = scmp.eq.s32.totalorder %s18, 1
      %p35 = por %p33, %p34
      %p36 = scmp.ne.s32.totalorder %s28, %s31
      %p37 = scmp.eq.s32.totalorder %s18, 0
      %p38 = por %p36, %p37
      %p39 = scmp.ne.s32.totalorder %s28, %s31
      %p40 = scmp.eq.s32.totalorder %s23, 1
      %p41 = por %p39, %p40
      %p42 = scmp.ne.s32.totalorder %s31, %s32
      %p43 = scmp.eq.s32.totalorder %s23, 0
      %p44 = por %p42, %p43
      %p45 = scmp.ne.s32.totalorder %s31, %s32
      %p46 = scmp.eq.s32.totalorder %s24, 1
      %p47 = por %p45, %p46
      %p49 = scmp.ne.s32.totalorder %s32, %s48
      %p50 = scmp.eq.s32.totalorder %s24, 0
      %p51 = por %p49, %p50
      %s53 = sadd.s32 %s52, 1
      %p56 = scmp.eq.s32.totalorder %s18, 1
      %p57 = scmp.ne.s32.totalorder %s52, %s54
      %p58 = scmp.eq.s32.totalorder %s18, 0
      %p59 = por %p57, %p58
      %p60 = scmp.ne.s32.totalorder %s52, %s54
      %p61 = scmp.eq.s32.totalorder %s23, 1
      %p62 = por %p60, %p61
      %p63 = scmp.ne.s32.totalorder %s54, %s55
      %p64 = scmp.eq.s32.totalorder %s23, 0
      %p65 = por %p63, %p64
      %p66 = scmp.ne.s32.totalorder %s54, %s55
      %p67 = scmp.eq.s32.totalorder %s24, 1
      %p68 = por %p66, %p67
      %p70 = scmp.ne.s32.totalorder %s55, %s69
      %p71 = scmp.eq.s32.totalorder %s24, 0
      %p72 = por %p70, %p71
      %s74 = sadd.s32 %s73, 1
      %p77 = scmp.eq.s32.totalorder %s18, 1
      %p78 = scmp.ne.s32.totalorder %s73, %s75
      %p79 = scmp.eq.s32.totalorder %s18, 0
      %p80 = por %p78, %p79
      %p81 = scmp.ne.s32.totalorder %s73, %s75
      %p82 = scmp.eq.s32.totalorder %s23, 1
      %p83 = por %p81, %p82
      %p84 = scmp.ne.s32.totalorder %s75, %s76
      %p85 = scmp.eq.s32.totalorder %s23, 0
      %p86 = por %p84, %p85
      %p87 = scmp.ne.s32.totalorder %s75, %s76
      %p88 = scmp.eq.s32.totalorder %s24, 1
      %p89 = por %p87, %p88
      %p91 = scmp.ne.s32.totalorder %s76, %s90
      %p92 = scmp.eq.s32.totalorder %s24, 0
      %p93 = por %p91, %p92
      %s95 = sadd.s32 %s94, 1
      %p98 = scmp.eq.s32.totalorder %s18, 1
      %p99 = scmp.ne.s32.totalorder %s94, %s96
      %p100 = scmp.eq.s32.totalorder %s18, 0
      %p101 = por %p99, %p100
      %p102 = scmp.ne.s32.totalorder %s94, %s96
      %p103 = scmp.eq.s32.totalorder %s23, 1
      %p104 = por %p102, %p103
      %p105 = scmp.ne.s32.totalorder %s96, %s97
      %p106 = scmp.eq.s32.totalorder %s23, 0
      %p107 = por %p105, %p106
      %p108 = scmp.ne.s32.totalorder %s96, %s97
      %p109 = scmp.eq.s32.totalorder %s24, 1
      %p110 = por %p108, %p109
      %p112 = scmp.ne.s32.totalorder %s97, %s111
      %p113 = scmp.eq.s32.totalorder %s24, 0
      %p114 = por %p112, %p113
      %s116 = sadd.s32 %s115, 1
      %p119 = scmp.eq.s32.totalorder %s18, 1
      %p120 = scmp.ne.s32.totalorder %s115, %s117
      %p121 = scmp.eq.s32.totalorder %s18, 0
      %p122 = por %p120, %p121
      %p123 = scmp.ne.s32.totalorder %s115, %s117
      %p124 = scmp.eq.s32.totalorder %s23, 1
      %p125 = por %p123, %p124
      %p126 = scmp.ne.s32.totalorder %s117, %s118
      %p127 = scmp.eq.s32.totalorder %s23, 0
      %p128 = por %p126, %p127
      %p129 = scmp.ne.s32.totalorder %s117, %s118
      %p130 = scmp.eq.s32.totalorder %s24, 1
      %p131 = por %p129, %p130
      %p133 = scmp.ne.s32.totalorder %s118, %s132
      %p134 = scmp.eq.s32.totalorder %s24, 0
      %p135 = por %p133, %p134
      %s136 = ssub.s32 %s18, %s25
      %p137 = scmp.eq.s32.totalorder %s136, 0
      %s139 = sadd.s32 %s138, 1
      %s140 = scalar_select %p137, %s138, %s139
      %p143 = pneg %p137
      %p144 = scmp.eq.s32.totalorder %s18, 1
      %p145 = por %p143, %p144
      %p146 = scmp.ne.s32.totalorder %s138, %s141
      %p147 = scmp.eq.s32.totalorder %s18, 0
      %p148 = por %p146, %p147
      %p149 = scmp.ne.s32.totalorder %s138, %s141
      %p150 = scmp.eq.s32.totalorder %s23, 1
      %p151 = por %p149, %p150
      %p152 = scmp.ne.s32.totalorder %s141, %s142
      %p153 = scmp.eq.s32.totalorder %s23, 0
      %p154 = por %p152, %p153
      %p155 = scmp.ne.s32.totalorder %s141, %s142
      %p156 = scmp.eq.s32.totalorder %s24, 1
      %p157 = por %p155, %p156
      %p159 = scmp.ne.s32.totalorder %s142, %s158
      %p160 = scmp.eq.s32.totalorder %s24, 0
      %p161 = por %p159, %p160
      %p162 = scmp.le.s32.totalorder 1, %s18
      %p163 = scmp.lt.s32.totalorder %s18, 3
      %p164 = pnand %p162, %p163
      %p165 = pneg %p164
      // Predicated region
      $region9: #{tpu_custom_call.1} parent=5 // pred_check
        _
      $region10: #{tpu_custom_call.1} parent=5 // pred_check_branch
        %167 = sbr.rel (%p164) target = $region12
      $region11: #{tpu_custom_call.1} parent=5 // pred_region
        %s168 = ssub.s32 %s18, 1
        // Predicated region
        $region13: #{tpu_custom_call.1} parent=11 // pred_check
          %p169 = pneg %p65
        $region14: #{tpu_custom_call.1} parent=11 // pred_check_branch
          %171 = sbr.rel (%p169) target = $region16
        $region15: #{tpu_custom_call.1} parent=11 // pred_region
          %s173 = ssub.s32 512, 512
          %174 = vsyncadd [#allocation6], %s173
          %s175 = sshll.u32 [#allocation5], 4
          %s176 = int_to_ptr.vmem [resolvable:$true] %s175
          %181 = dma.hbm_to_vmem [thread:$0]  %s1, 512, %s176, [#allocation6], 128, 128, 8
        $region16: #{tpu_custom_call.1} parent=11 // pred_fallthru
          _
        // Predicated region
        $region17: #{tpu_custom_call.1} parent=11 // pred_check
          %p182 = pneg %p86
        $region18: #{tpu_custom_call.1} parent=11 // pred_check_branch
          %184 = sbr.rel (%p182) target = $region20
        $region19: #{tpu_custom_call.1} parent=11 // pred_region
          _
        $region20: #{tpu_custom_call.1} parent=11 // pred_fallthru
          _
        // Predicated region
        $region21: #{tpu_custom_call.1} parent=11 // pred_check
          %p185 = pneg %p107
        $region22: #{tpu_custom_call.1} parent=11 // pred_check_branch
          %187 = sbr.rel (%p185) target = $region24
        $region23: #{tpu_custom_call.1} parent=11 // pred_region
          %s189 = ssub.s32 512, 512
          %190 = vsyncadd [#allocation6], %s189
          %s191 = sshll.u32 [#allocation7], 4
          %s192 = int_to_ptr.vmem [resolvable:$true] %s191
          %197 = dma.hbm_to_vmem [thread:$0]  %s3, 512, %s192, [#allocation6], 128, 128, 8
        $region24: #{tpu_custom_call.1} parent=11 // pred_fallthru
          _
        // Predicated region
        $region25: #{tpu_custom_call.1} parent=11 // pred_check
          %p198 = pneg %p128
        $region26: #{tpu_custom_call.1} parent=11 // pred_check_branch
          %200 = sbr.rel (%p198) target = $region28
        $region27: #{tpu_custom_call.1} parent=11 // pred_region
          _
        $region28: #{tpu_custom_call.1} parent=11 // pred_fallthru
          _
      $region12: #{tpu_custom_call.1} parent=5 // pred_fallthru
        _
      %p201 = scmp.lt.s32.totalorder %s18, 2
      // Predicated region
      $region29: #{tpu_custom_call.1} parent=5 // pred_check
        %p202 = pneg %p201
      $region30: #{tpu_custom_call.1} parent=5 // pred_check_branch
        %204 = sbr.rel (%p202) target = $region32
      $region31: #{tpu_custom_call.1} parent=5 // pred_region
        // Predicated region
        $region33: #{tpu_custom_call.1} parent=31 // pred_check
          %p205 = pneg %p38
        $region34: #{tpu_custom_call.1} parent=31 // pred_check_branch
          %207 = sbr.rel (%p205) target = $region36
        $region35: #{tpu_custom_call.1} parent=31 // pred_region
          %s208 = sand.u32 %s28, 1
          %s209 = scalar_lea.sflag [#allocation3], %s208
          %s210 = sand.u32 %s28, 1
          %s211 = smul.addr %s210, 8
          %s212 = scalar_lea.vmem [#allocation2], %s211
          %s214 = ssub.s32 128, 128
          %215 = vsyncadd %s209, %s214
          %s216 = smul.addr %s18, 128
          %s217 = scalar_lea.hbm %s0, %s216
          %s219 = sshll.u32 %s212, 4
          %s220 = int_to_ptr.vmem [resolvable:$true] %s219
          %222 = dma.hbm_to_vmem [thread:$0]  %s217, 128, %s220, %s209
        $region36: #{tpu_custom_call.1} parent=31 // pred_fallthru
          _
      $region32: #{tpu_custom_call.1} parent=5 // pred_fallthru
        _
      %p223 = scmp.le.s32.totalorder 1, %s18
      %p224 = scmp.lt.s32.totalorder %s18, 3
      %p225 = pnand %p223, %p224
      %p226 = pneg %p225
      // Predicated region
      $region37: #{tpu_custom_call.1} parent=5 // pred_check
        _
      $region38: #{tpu_custom_call.1} parent=5 // pred_check_branch
        %228 = sbr.rel (%p225) target = $region40
      $region39: #{tpu_custom_call.1} parent=5 // pred_region
        %s229 = ssub.s32 %s18, 1
        %s230 = sand.u32 %s31, 1
        %s231 = scalar_lea.sflag [#allocation3], %s230
        %s232 = sand.u32 %s31, 1
        %s233 = smul.addr %s232, 8
        %s234 = scalar_lea.vmem [#allocation2], %s233
        // Predicated region
        $region41: #{tpu_custom_call.1} parent=39 // pred_check
          %p235 = pneg %p44
        $region42: #{tpu_custom_call.1} parent=39 // pred_check_branch
          %237 = sbr.rel (%p235) target = $region44
        $region43: #{tpu_custom_call.1} parent=39 // pred_region
          %238 = dma.done %s231, 128
        $region44: #{tpu_custom_call.1} parent=39 // pred_fallthru
          _
        // Predicated region
        $region45: #{tpu_custom_call.1} parent=39 // pred_check
          %p239 = pneg %p65
        $region46: #{tpu_custom_call.1} parent=39 // pred_check_branch
          %241 = sbr.rel (%p239) target = $region48
        $region47: #{tpu_custom_call.1} parent=39 // pred_region
          %242 = dma.done [#allocation6], 512
        $region48: #{tpu_custom_call.1} parent=39 // pred_fallthru
          _
        // Predicated region
        $region49: #{tpu_custom_call.1} parent=39 // pred_check
          %p243 = pneg %p107
        $region50: #{tpu_custom_call.1} parent=39 // pred_check_branch
          %245 = sbr.rel (%p243) target = $region52
        $region51: #{tpu_custom_call.1} parent=39 // pred_region
          %246 = dma.done [#allocation6], 512
        $region52: #{tpu_custom_call.1} parent=39 // pred_fallthru
          _
        %s247 = sand.u32 %s31, 1
        %s248 = scalar_lea.sflag [#allocation3], %s247
        %s249 = sand.u32 %s31, 1
        %s250 = smul.addr %s249, 8
        %s251 = scalar_lea.vmem [#allocation2], %s250
        %p252 = pneg %p44
        %p253 = pneg %p41
        %p254 = pneg %p65
        %p255 = pneg %p62
        %p256 = pneg %p86
        %p257 = pneg %p83
        %p258 = pneg %p107
        %p259 = pneg %p104
        %p260 = pneg %p128
        %p261 = pneg %p125
        %p262 = pneg %p154
        %p263 = pneg %p151
        %s264 = sand.u32 %s141, 1
        %s265 = scalar_lea.sflag [#allocation4], %s264
        %s266 = sand.u32 %s141, 1
        %s267 = smul.addr %s266, 8
        %s268 = scalar_lea.vmem [#allocation8], %s267
        %v269 = vld [vmem:[%s234] sm:$0xff]
        %v270 = vld [vmem:[#allocation5] sm:$0xff]
        %v271 = vld [vmem:[#allocation5 + $0x8] sm:$0xff]
        %v272 = vld [vmem:[#allocation5 + $0x10] sm:$0xff]
        %v273 = vld [vmem:[#allocation5 + $0x18] sm:$0xff]
        %v274 = vld [vmem:[%s2] sm:$0x1]
        %v276 = vlaneseq
        %v277 = vshrl.u32 %v276, 7
        %v278 = vsub.s32 0, %v277
        %v279 = vrot.slane %v274, %v278
        %vm281 = vcmask 261120
        %v283 = vsel %vm281, %v269, 0
        %285 = vmatprep.subr.mxu0 0.0
        %286 = vmatpush1.msra.mxu0 %v270
        %287 = vmatprep.subr.mxu0 0.0
        %288 = vmatpush1.msra.mxu0 %v271
        %289 = vmatprep.subr.mxu0 0.0
        %290 = vmatpush1.msra.mxu0 %v272
        %291 = vmatprep.subr.mxu0 0.0
        %292 = vmatpush1.msra.mxu0 %v273
        %293 = vmatprep.subr.mxu0 0.0
        %294 = vmatpush1.msra.mxu0 0.0
        %295 = vmatprep.subr.mxu0 0.0
        %296 = vmatpush1.msra.mxu0 0.0
        %297 = vmatprep.subr.mxu0 0.0
        %298 = vmatpush1.msra.mxu0 0.0
        %299 = vmatprep.subr.mxu0 0.0
        %300 = vmatpush1.msra.mxu0 0.0
        %301 = vmatprep.subr.mxu0 0.0
        %302 = vmatpush1.msra.mxu0 0.0
        %303 = vmatprep.subr.mxu0 0.0
        %304 = vmatpush1.msra.mxu0 0.0
        %305 = vmatprep.subr.mxu0 0.0
        %306 = vmatpush1.msra.mxu0 0.0
        %307 = vmatprep.subr.mxu0 0.0
        %308 = vmatpush1.msra.mxu0 0.0
        %309 = vmatprep.subr.mxu0 0.0
        %310 = vmatpush1.msra.mxu0 0.0
        %311 = vmatprep.subr.mxu0 0.0
        %312 = vmatpush1.msra.mxu0 0.0
        %313 = vmatprep.subr.mxu0 0.0
        %314 = vmatpush1.msra.mxu0 0.0
        %315 = vmatprep.subr.mxu0 0.0
        %316 = vmatpush1.msra.mxu0 0.0
        %317 = vmatprep.subr.mxu0 0.0
        %318 = vmatpush1.msra.mxu0 0.0
        %319 = vmatprep.subr.mxu0 0.0
        %320 = vmatpush1.msra.mxu0 0.0
        %321 = vmatprep.subr.mxu0 0.0
        %322 = vmatpush1.msra.mxu0 0.0
        %323 = vmatprep.subr.mxu0 0.0
        %324 = vmatpush1.msra.mxu0 0.0
        %325 = vmatprep.subr.mxu0 0.0
        %326 = vmatpush1.msra.mxu0 0.0
        %327 = vmatprep.subr.mxu0 0.0
        %328 = vmatpush1.msra.mxu0 0.0
        %329 = vmatprep.subr.mxu0 0.0
        %330 = vmatpush1.msra.mxu0 0.0
        %331 = vmatprep.subr.mxu0 0.0
        %332 = vmatpush1.msra.mxu0 0.0
        %333 = vmatprep.subr.mxu0 0.0
        %334 = vmatpush1.msra.mxu0 0.0
        %335 = vmatprep.subr.mxu0 0.0
        %336 = vmatpush1.msra.mxu0 0.0
        %337 = vmatprep.subr.mxu0 0.0
        %338 = vmatpush1.msra.mxu0 0.0
        %339 = vmatprep.subr.mxu0 0.0
        %340 = vmatpush1.msra.mxu0 0.0
        %341 = vmatprep.subr.mxu0 0.0
        %342 = vmatpush1.msra.mxu0 0.0
        %343 = vmatprep.subr.mxu0 0.0
        %344 = vmatpush1.msra.mxu0 0.0
        %345 = vmatprep.subr.mxu0 0.0
        %346 = vmatpush1.msra.mxu0 0.0
        %347 = vmatprep.subr.mxu0 0.0
        %348 = vmatpush1.msra.mxu0 0.0
        %349 = vmatprep.mubr.f32.mxu0 0.0
        %350 = vmatmul.mubr.f32.gmra.mrb[0].mxu0 %v283
        %v351 = vpop.f32.mrb[0].mxu0
        %v352 = vadd.f32 %v279, %v351
        %v353 = vpop.f32.mrb[0].mxu0
        %354 = vdwg.mxu0
        %356 = vrot.lane.b32.xlu0 %v352, 120
        %v357 = vpop.permute.xlu0 %356
        %358 = vrot.lane.b32.xlu0 %v352, 112
        %v359 = vpop.permute.xlu0 %358
        %360 = vrot.lane.b32.xlu0 %v352, 104
        %v361 = vpop.permute.xlu0 %360
        %362 = vrot.lane.b32.xlu0 %v352, 96
        %v363 = vpop.permute.xlu0 %362
        %364 = vrot.lane.b32.xlu0 %v357, 96
        %v365 = vpop.permute.xlu0 %364
        %366 = vrot.lane.b32.xlu0 %v359, 96
        %v367 = vpop.permute.xlu0 %366
        %368 = vrot.lane.b32.xlu0 %v361, 96
        %v369 = vpop.permute.xlu0 %368
        %374 = vxpose.xlu0.b32.start [1/16] %v363, 128
        %375 = vxpose.xlu0.b32.cont [2/16] 0.0, 128
        %376 = vxpose.xlu0.b32.cont [3/16] 0.0, 128
        %377 = vxpose.xlu0.b32.cont [4/16] 0.0, 128
        %378 = vxpose.xlu0.b32.cont [5/16] 0.0, 128
        %379 = vxpose.xlu0.b32.cont [6/16] 0.0, 128
        %380 = vxpose.xlu0.b32.cont [7/16] 0.0, 128
        %381 = vxpose.xlu0.b32.cont [8/16] 0.0, 128
        %382 = vxpose.xlu0.b32.cont [9/16] 0.0, 128
        %383 = vxpose.xlu0.b32.cont [10/16] 0.0, 128
        %384 = vxpose.xlu0.b32.cont [11/16] 0.0, 128
        %385 = vxpose.xlu0.b32.cont [12/16] 0.0, 128
        %386 = vxpose.xlu0.b32.cont [13/16] 0.0, 128
        %387 = vxpose.xlu0.b32.cont [14/16] 0.0, 128
        %388 = vxpose.xlu0.b32.cont [15/16] 0.0, 128
        %389 = vxpose.xlu0.b32.end [16/16] 0.0, 128
        %v390 = vpop.trf.xlu0
        %v391 = vpop.trf.xlu0
        %v392 = vpop.trf.xlu0
        %v393 = vpop.trf.xlu0
        %v394 = vpop.trf.xlu0
        %v395 = vpop.trf.xlu0
        %v396 = vpop.trf.xlu0
        %v397 = vpop.trf.xlu0
        %v398 = vpop.trf.xlu0
        %v399 = vpop.trf.xlu0
        %v400 = vpop.trf.xlu0
        %v401 = vpop.trf.xlu0
        %v402 = vpop.trf.xlu0
        %v403 = vpop.trf.xlu0
        %v404 = vpop.trf.xlu0
        %v405 = vpop.trf.xlu0
        %406 = vxpose.xlu0.b32.start [1/16] %v365, 128
        %407 = vxpose.xlu0.b32.cont [2/16] 0.0, 128
        %408 = vxpose.xlu0.b32.cont [3/16] 0.0, 128
        %409 = vxpose.xlu0.b32.cont [4/16] 0.0, 128
        %410 = vxpose.xlu0.b32.cont [5/16] 0.0, 128
        %411 = vxpose.xlu0.b32.cont [6/16] 0.0, 128
        %412 = vxpose.xlu0.b32.cont [7/16] 0.0, 128
        %413 = vxpose.xlu0.b32.cont [8/16] 0.0, 128
        %414 = vxpose.xlu0.b32.cont [9/16] 0.0, 128
        %415 = vxpose.xlu0.b32.cont [10/16] 0.0, 128
        %416 = vxpose.xlu0.b32.cont [11/16] 0.0, 128
        %417 = vxpose.xlu0.b32.cont [12/16] 0.0, 128
        %418 = vxpose.xlu0.b32.cont [13/16] 0.0, 128
        %419 = vxpose.xlu0.b32.cont [14/16] 0.0, 128
        %420 = vxpose.xlu0.b32.cont [15/16] 0.0, 128
        %421 = vxpose.xlu0.b32.end [16/16] 0.0, 128
        %v422 = vpop.trf.xlu0
        %v423 = vpop.trf.xlu0
        %v424 = vpop.trf.xlu0
        %v425 = vpop.trf.xlu0
        %v426 = vpop.trf.xlu0
        %v427 = vpop.trf.xlu0
        %v428 = vpop.trf.xlu0
        %v429 = vpop.trf.xlu0
        %v430 = vpop.trf.xlu0
        %v431 = vpop.trf.xlu0
        %v432 = vpop.trf.xlu0
        %v433 = vpop.trf.xlu0
        %v434 = vpop.trf.xlu0
        %v435 = vpop.trf.xlu0
        %v436 = vpop.trf.xlu0
        %v437 = vpop.trf.xlu0
        %438 = vxpose.xlu0.b32.start [1/16] %v367, 128
        %439 = vxpose.xlu0.b32.cont [2/16] 0.0, 128
        %440 = vxpose.xlu0.b32.cont [3/16] 0.0, 128
        %441 = vxpose.xlu0.b32.cont [4/16] 0.0, 128
        %442 = vxpose.xlu0.b32.cont [5/16] 0.0, 128
        %443 = vxpose.xlu0.b32.cont [6/16] 0.0, 128
        %444 = vxpose.xlu0.b32.cont [7/16] 0.0, 128
        %445 = vxpose.xlu0.b32.cont [8/16] 0.0, 128
        %446 = vxpose.xlu0.b32.cont [9/16] 0.0, 128
        %447 = vxpose.xlu0.b32.cont [10/16] 0.0, 128
        %448 = vxpose.xlu0.b32.cont [11/16] 0.0, 128
        %449 = vxpose.xlu0.b32.cont [12/16] 0.0, 128
        %450 = vxpose.xlu0.b32.cont [13/16] 0.0, 128
        %451 = vxpose.xlu0.b32.cont [14/16] 0.0, 128
        %452 = vxpose.xlu0.b32.cont [15/16] 0.0, 128
        %453 = vxpose.xlu0.b32.end [16/16] 0.0, 128
        %v454 = vpop.trf.xlu0
        %v455 = vpop.trf.xlu0
        %v456 = vpop.trf.xlu0
        %v457 = vpop.trf.xlu0
        %v458 = vpop.trf.xlu0
        %v459 = vpop.trf.xlu0
        %v460 = vpop.trf.xlu0
        %v461 = vpop.trf.xlu0
        %v462 = vpop.trf.xlu0
        %v463 = vpop.trf.xlu0
        %v464 = vpop.trf.xlu0
        %v465 = vpop.trf.xlu0
        %v466 = vpop.trf.xlu0
        %v467 = vpop.trf.xlu0
        %v468 = vpop.trf.xlu0
        %v469 = vpop.trf.xlu0
        %470 = vxpose.xlu0.b32.start [1/16] %v369, 128
        %471 = vxpose.xlu0.b32.cont [2/16] 0.0, 128
        %472 = vxpose.xlu0.b32.cont [3/16] 0.0, 128
        %473 = vxpose.xlu0.b32.cont [4/16] 0.0, 128
        %474 = vxpose.xlu0.b32.cont [5/16] 0.0, 128
        %475 = vxpose.xlu0.b32.cont [6/16] 0.0, 128
        %476 = vxpose.xlu0.b32.cont [7/16] 0.0, 128
        %477 = vxpose.xlu0.b32.cont [8/16] 0.0, 128
        %478 = vxpose.xlu0.b32.cont [9/16] 0.0, 128
        %479 = vxpose.xlu0.b32.cont [10/16] 0.0, 128
        %480 = vxpose.xlu0.b32.cont [11/16] 0.0, 128
        %481 = vxpose.xlu0.b32.cont [12/16] 0.0, 128
        %482 = vxpose.xlu0.b32.cont [13/16] 0.0, 128
        %483 = vxpose.xlu0.b32.cont [14/16] 0.0, 128
        %484 = vxpose.xlu0.b32.cont [15/16] 0.0, 128
        %485 = vxpose.xlu0.b32.end [16/16] 0.0, 128
        %v486 = vpop.trf.xlu0
        %v487 = vpop.trf.xlu0
        %v488 = vpop.trf.xlu0
        %v489 = vpop.trf.xlu0
        %v490 = vpop.trf.xlu0
        %v491 = vpop.trf.xlu0
        %v492 = vpop.trf.xlu0
        %v493 = vpop.trf.xlu0
        %v494 = vpop.trf.xlu0
        %v495 = vpop.trf.xlu0
        %v496 = vpop.trf.xlu0
        %v497 = vpop.trf.xlu0
        %v498 = vpop.trf.xlu0
        %v499 = vpop.trf.xlu0
        %v500 = vpop.trf.xlu0
        %v501 = vpop.trf.xlu0
        %vm502 = vcmask 64512
        %v503 = vsel %vm502, %v352, 0
        %505 = vmatprep.subr.mxu0 0.0
        %506 = vmatpush1.msra.mxu0 %v390
        %507 = vmatprep.subr.mxu0 0.0
        %508 = vmatpush1.msra.mxu0 0.0
        %509 = vmatprep.subr.mxu0 0.0
        %510 = vmatpush1.msra.mxu0 0.0
        %511 = vmatprep.subr.mxu0 0.0
        %512 = vmatpush1.msra.mxu0 0.0
        %513 = vmatprep.subr.mxu0 0.0
        %514 = vmatpush1.msra.mxu0 0.0
        %515 = vmatprep.subr.mxu0 0.0
        %516 = vmatpush1.msra.mxu0 0.0
        %517 = vmatprep.subr.mxu0 0.0
        %518 = vmatpush1.msra.mxu0 0.0
        %519 = vmatprep.subr.mxu0 0.0
        %520 = vmatpush1.msra.mxu0 0.0
        %521 = vmatprep.subr.mxu0 0.0
        %522 = vmatpush1.msra.mxu0 0.0
        %523 = vmatprep.subr.mxu0 0.0
        %524 = vmatpush1.msra.mxu0 0.0
        %525 = vmatprep.subr.mxu0 0.0
        %526 = vmatpush1.msra.mxu0 0.0
        %527 = vmatprep.subr.mxu0 0.0
        %528 = vmatpush1.msra.mxu0 0.0
        %529 = vmatprep.subr.mxu0 0.0
        %530 = vmatpush1.msra.mxu0 0.0
        %531 = vmatprep.subr.mxu0 0.0
        %532 = vmatpush1.msra.mxu0 0.0
        %533 = vmatprep.subr.mxu0 0.0
        %534 = vmatpush1.msra.mxu0 0.0
        %535 = vmatprep.subr.mxu0 0.0
        %536 = vmatpush1.msra.mxu0 0.0
        %537 = vmatprep.subr.mxu0 0.0
        %538 = vmatpush1.msra.mxu0 0.0
        %539 = vmatprep.subr.mxu0 0.0
        %540 = vmatpush1.msra.mxu0 0.0
        %541 = vmatprep.subr.mxu0 0.0
        %542 = vmatpush1.msra.mxu0 0.0
        %543 = vmatprep.subr.mxu0 0.0
        %544 = vmatpush1.msra.mxu0 0.0
        %545 = vmatprep.subr.mxu0 0.0
        %546 = vmatpush1.msra.mxu0 0.0
        %547 = vmatprep.subr.mxu0 0.0
        %548 = vmatpush1.msra.mxu0 0.0
        %549 = vmatprep.subr.mxu0 0.0
        %550 = vmatpush1.msra.mxu0 0.0
        %551 = vmatprep.subr.mxu0 0.0
        %552 = vmatpush1.msra.mxu0 0.0
        %553 = vmatprep.subr.mxu0 0.0
        %554 = vmatpush1.msra.mxu0 0.0
        %555 = vmatprep.subr.mxu0 0.0
        %556 = vmatpush1.msra.mxu0 0.0
        %557 = vmatprep.subr.mxu0 0.0
        %558 = vmatpush1.msra.mxu0 0.0
        %559 = vmatprep.subr.mxu0 0.0
        %560 = vmatpush1.msra.mxu0 0.0
        %561 = vmatprep.subr.mxu0 0.0
        %562 = vmatpush1.msra.mxu0 0.0
        %563 = vmatprep.subr.mxu0 0.0
        %564 = vmatpush1.msra.mxu0 0.0
        %565 = vmatprep.subr.mxu0 0.0
        %566 = vmatpush1.msra.mxu0 0.0
        %567 = vmatprep.subr.mxu0 0.0
        %568 = vmatpush1.msra.mxu0 0.0
        %569 = vmatprep.mubr.f32.mxu0 0.0
        %570 = vmatmul.mubr.f32.gmra.mrb[0].mxu0 %v503
        %v571 = vpop.f32.mrb[0].mxu0
        %v572 = vadd.f32 0.0, %v571
        %v573 = vpop.f32.mrb[0].mxu0
        %574 = vdwg.mxu0
        %v575 = vsel %vm502, %v357, 0
        %577 = vmatprep.subr.mxu0 0.0
        %578 = vmatpush1.msra.mxu0 %v422
        %579 = vmatprep.subr.mxu0 0.0
        %580 = vmatpush1.msra.mxu0 0.0
        %581 = vmatprep.subr.mxu0 0.0
        %582 = vmatpush1.msra.mxu0 0.0
        %583 = vmatprep.subr.mxu0 0.0
        %584 = vmatpush1.msra.mxu0 0.0
        %585 = vmatprep.subr.mxu0 0.0
        %586 = vmatpush1.msra.mxu0 0.0
        %587 = vmatprep.subr.mxu0 0.0
        %588 = vmatpush1.msra.mxu0 0.0
        %589 = vmatprep.subr.mxu0 0.0
        %590 = vmatpush1.msra.mxu0 0.0
        %591 = vmatprep.subr.mxu0 0.0
        %592 = vmatpush1.msra.mxu0 0.0
        %593 = vmatprep.subr.mxu0 0.0
        %594 = vmatpush1.msra.mxu0 0.0
        %595 = vmatprep.subr.mxu0 0.0
        %596 = vmatpush1.msra.mxu0 0.0
        %597 = vmatprep.subr.mxu0 0.0
        %598 = vmatpush1.msra.mxu0 0.0
        %599 = vmatprep.subr.mxu0 0.0
        %600 = vmatpush1.msra.mxu0 0.0
        %601 = vmatprep.subr.mxu0 0.0
        %602 = vmatpush1.msra.mxu0 0.0
        %603 = vmatprep.subr.mxu0 0.0
        %604 = vmatpush1.msra.mxu0 0.0
        %605 = vmatprep.subr.mxu0 0.0
        %606 = vmatpush1.msra.mxu0 0.0
        %607 = vmatprep.subr.mxu0 0.0
        %608 = vmatpush1.msra.mxu0 0.0
        %609 = vmatprep.subr.mxu0 0.0
        %610 = vmatpush1.msra.mxu0 0.0
        %611 = vmatprep.subr.mxu0 0.0
        %612 = vmatpush1.msra.mxu0 0.0
        %613 = vmatprep.subr.mxu0 0.0
        %614 = vmatpush1.msra.mxu0 0.0
        %615 = vmatprep.subr.mxu0 0.0
        %616 = vmatpush1.msra.mxu0 0.0
        %617 = vmatprep.subr.mxu0 0.0
        %618 = vmatpush1.msra.mxu0 0.0
        %619 = vmatprep.subr.mxu0 0.0
        %620 = vmatpush1.msra.mxu0 0.0
        %621 = vmatprep.subr.mxu0 0.0
        %622 = vmatpush1.msra.mxu0 0.0
        %623 = vmatprep.subr.mxu0 0.0
        %624 = vmatpush1.msra.mxu0 0.0
        %625 = vmatprep.subr.mxu0 0.0
        %626 = vmatpush1.msra.mxu0 0.0
        %627 = vmatprep.subr.mxu0 0.0
        %628 = vmatpush1.msra.mxu0 0.0
        %629 = vmatprep.subr.mxu0 0.0
        %630 = vmatpush1.msra.mxu0 0.0
        %631 = vmatprep.subr.mxu0 0.0
        %632 = vmatpush1.msra.mxu0 0.0
        %633 = vmatprep.subr.mxu0 0.0
        %634 = vmatpush1.msra.mxu0 0.0
        %635 = vmatprep.subr.mxu0 0.0
        %636 = vmatpush1.msra.mxu0 0.0
        %637 = vmatprep.subr.mxu0 0.0
        %638 = vmatpush1.msra.mxu0 0.0
        %639 = vmatprep.subr.mxu0 0.0
        %640 = vmatpush1.msra.mxu0 0.0
        %641 = vmatprep.mubr.f32.mxu0 0.0
        %642 = vmatmul.mubr.f32.gmra.mrb[0].mxu0 %v575
        %v643 = vpop.f32.mrb[0].mxu0
        %v644 = vadd.f32 0.0, %v643
        %v645 = vpop.f32.mrb[0].mxu0
        %646 = vdwg.mxu0
        %v647 = vsel %vm502, %v359, 0
        %649 = vmatprep.subr.mxu0 0.0
        %650 = vmatpush1.msra.mxu0 %v454
        %651 = vmatprep.subr.mxu0 0.0
        %652 = vmatpush1.msra.mxu0 0.0
        %653 = vmatprep.subr.mxu0 0.0
        %654 = vmatpush1.msra.mxu0 0.0
        %655 = vmatprep.subr.mxu0 0.0
        %656 = vmatpush1.msra.mxu0 0.0
        %657 = vmatprep.subr.mxu0 0.0
        %658 = vmatpush1.msra.mxu0 0.0
        %659 = vmatprep.subr.mxu0 0.0
        %660 = vmatpush1.msra.mxu0 0.0
        %661 = vmatprep.subr.mxu0 0.0
        %662 = vmatpush1.msra.mxu0 0.0
        %663 = vmatprep.subr.mxu0 0.0
        %664 = vmatpush1.msra.mxu0 0.0
        %665 = vmatprep.subr.mxu0 0.0
        %666 = vmatpush1.msra.mxu0 0.0
        %667 = vmatprep.subr.mxu0 0.0
        %668 = vmatpush1.msra.mxu0 0.0
        %669 = vmatprep.subr.mxu0 0.0
        %670 = vmatpush1.msra.mxu0 0.0
        %671 = vmatprep.subr.mxu0 0.0
        %672 = vmatpush1.msra.mxu0 0.0
        %673 = vmatprep.subr.mxu0 0.0
        %674 = vmatpush1.msra.mxu0 0.0
        %675 = vmatprep.subr.mxu0 0.0
        %676 = vmatpush1.msra.mxu0 0.0
        %677 = vmatprep.subr.mxu0 0.0
        %678 = vmatpush1.msra.mxu0 0.0
        %679 = vmatprep.subr.mxu0 0.0
        %680 = vmatpush1.msra.mxu0 0.0
        %681 = vmatprep.subr.mxu0 0.0
        %682 = vmatpush1.msra.mxu0 0.0
        %683 = vmatprep.subr.mxu0 0.0
        %684 = vmatpush1.msra.mxu0 0.0
        %685 = vmatprep.subr.mxu0 0.0
        %686 = vmatpush1.msra.mxu0 0.0
        %687 = vmatprep.subr.mxu0 0.0
        %688 = vmatpush1.msra.mxu0 0.0
        %689 = vmatprep.subr.mxu0 0.0
        %690 = vmatpush1.msra.mxu0 0.0
        %691 = vmatprep.subr.mxu0 0.0
        %692 = vmatpush1.msra.mxu0 0.0
        %693 = vmatprep.subr.mxu0 0.0
        %694 = vmatpush1.msra.mxu0 0.0
        %695 = vmatprep.subr.mxu0 0.0
        %696 = vmatpush1.msra.mxu0 0.0
        %697 = vmatprep.subr.mxu0 0.0
        %698 = vmatpush1.msra.mxu0 0.0
        %699 = vmatprep.subr.mxu0 0.0
        %700 = vmatpush1.msra.mxu0 0.0
        %701 = vmatprep.subr.mxu0 0.0
        %702 = vmatpush1.msra.mxu0 0.0
        %703 = vmatprep.subr.mxu0 0.0
        %704 = vmatpush1.msra.mxu0 0.0
        %705 = vmatprep.subr.mxu0 0.0
        %706 = vmatpush1.msra.mxu0 0.0
        %707 = vmatprep.subr.mxu0 0.0
        %708 = vmatpush1.msra.mxu0 0.0
        %709 = vmatprep.subr.mxu0 0.0
        %710 = vmatpush1.msra.mxu0 0.0
        %711 = vmatprep.subr.mxu0 0.0
        %712 = vmatpush1.msra.mxu0 0.0
        %713 = vmatprep.mubr.f32.mxu0 0.0
        %714 = vmatmul.mubr.f32.gmra.mrb[0].mxu0 %v647
        %v715 = vpop.f32.mrb[0].mxu0
        %v716 = vadd.f32 0.0, %v715
        %v717 = vpop.f32.mrb[0].mxu0
        %718 = vdwg.mxu0
        %v719 = vsel %vm502, %v361, 0
        %721 = vmatprep.subr.mxu0 0.0
        %722 = vmatpush1.msra.mxu0 %v486
        %723 = vmatprep.subr.mxu0 0.0
        %724 = vmatpush1.msra.mxu0 0.0
        %725 = vmatprep.subr.mxu0 0.0
        %726 = vmatpush1.msra.mxu0 0.0
        %727 = vmatprep.subr.mxu0 0.0
        %728 = vmatpush1.msra.mxu0 0.0
        %729 = vmatprep.subr.mxu0 0.0
        %730 = vmatpush1.msra.mxu0 0.0
        %731 = vmatprep.subr.mxu0 0.0
        %732 = vmatpush1.msra.mxu0 0.0
        %733 = vmatprep.subr.mxu0 0.0
        %734 = vmatpush1.msra.mxu0 0.0
        %735 = vmatprep.subr.mxu0 0.0
        %736 = vmatpush1.msra.mxu0 0.0
        %737 = vmatprep.subr.mxu0 0.0
        %738 = vmatpush1.msra.mxu0 0.0
        %739 = vmatprep.subr.mxu0 0.0
        %740 = vmatpush1.msra.mxu0 0.0
        %741 = vmatprep.subr.mxu0 0.0
        %742 = vmatpush1.msra.mxu0 0.0
        %743 = vmatprep.subr.mxu0 0.0
        %744 = vmatpush1.msra.mxu0 0.0
        %745 = vmatprep.subr.mxu0 0.0
        %746 = vmatpush1.msra.mxu0 0.0
        %747 = vmatprep.subr.mxu0 0.0
        %748 = vmatpush1.msra.mxu0 0.0
        %749 = vmatprep.subr.mxu0 0.0
        %750 = vmatpush1.msra.mxu0 0.0
        %751 = vmatprep.subr.mxu0 0.0
        %752 = vmatpush1.msra.mxu0 0.0
        %753 = vmatprep.subr.mxu0 0.0
        %754 = vmatpush1.msra.mxu0 0.0
        %755 = vmatprep.subr.mxu0 0.0
        %756 = vmatpush1.msra.mxu0 0.0
        %757 = vmatprep.subr.mxu0 0.0
        %758 = vmatpush1.msra.mxu0 0.0
        %759 = vmatprep.subr.mxu0 0.0
        %760 = vmatpush1.msra.mxu0 0.0
        %761 = vmatprep.subr.mxu0 0.0
        %762 = vmatpush1.msra.mxu0 0.0
        %763 = vmatprep.subr.mxu0 0.0
        %764 = vmatpush1.msra.mxu0 0.0
        %765 = vmatprep.subr.mxu0 0.0
        %766 = vmatpush1.msra.mxu0 0.0
        %767 = vmatprep.subr.mxu0 0.0
        %768 = vmatpush1.msra.mxu0 0.0
        %769 = vmatprep.subr.mxu0 0.0
        %770 = vmatpush1.msra.mxu0 0.0
        %771 = vmatprep.subr.mxu0 0.0
        %772 = vmatpush1.msra.mxu0 0.0
        %773 = vmatprep.subr.mxu0 0.0
        %774 = vmatpush1.msra.mxu0 0.0
        %775 = vmatprep.subr.mxu0 0.0
        %776 = vmatpush1.msra.mxu0 0.0
        %777 = vmatprep.subr.mxu0 0.0
        %778 = vmatpush1.msra.mxu0 0.0
        %779 = vmatprep.subr.mxu0 0.0
        %780 = vmatpush1.msra.mxu0 0.0
        %781 = vmatprep.subr.mxu0 0.0
        %782 = vmatpush1.msra.mxu0 0.0
        %783 = vmatprep.subr.mxu0 0.0
        %784 = vmatpush1.msra.mxu0 0.0
        %785 = vmatprep.mubr.f32.mxu0 0.0
        %786 = vmatmul.mubr.f32.gmra.mrb[0].mxu0 %v719
        %v787 = vpop.f32.mrb[0].mxu0
        %v788 = vadd.f32 0.0, %v787
        %v789 = vpop.f32.mrb[0].mxu0
        %790 = vdwg.mxu0
        %v791 = vsel %vm502, %v572, -inf
        %792 = vmax.xlane.f32.xlu0 %v791
        %v793 = vpop.xlane.xlu0 %792
        %v794 = vsel %vm502, %v644, -inf
        %795 = vmax.xlane.f32.xlu0 %v794
        %v796 = vpop.xlane.xlu0 %795
        %v797 = vsel %vm502, %v716, -inf
        %798 = vmax.xlane.f32.xlu0 %v797
        %v799 = vpop.xlane.xlu0 %798
        %v800 = vsel %vm502, %v788, -inf
        %801 = vmax.xlane.f32.xlu0 %v800
        %v802 = vpop.xlane.xlu0 %801
        %v803 = vsub.f32 -inf, %v793
        %v804 = vsub.f32 -inf, %v796
        %v805 = vsub.f32 -inf, %v799
        %v806 = vsub.f32 -inf, %v802
        %v807 = vmul.f32 %v803, 1.442695
        %v808 = vpow.pop %v807
        %v809 = vmul.f32 %v804, 1.442695
        %v810 = vpow.pop %v809
        %v811 = vmul.f32 %v805, 1.442695
        %v812 = vpow.pop %v811
        %v813 = vmul.f32 %v806, 1.442695
        %v814 = vpow.pop %v813
        %v815 = vsub.f32 %v572, %v793
        %v816 = vsub.f32 %v644, %v796
        %v817 = vsub.f32 %v716, %v799
        %v818 = vsub.f32 %v788, %v802
        %v819 = vmul.f32 %v815, 1.442695
        %v820 = vpow.pop %v819
        %v821 = vmul.f32 %v816, 1.442695
        %v822 = vpow.pop %v821
        %v823 = vmul.f32 %v817, 1.442695
        %v824 = vpow.pop %v823
        %v825 = vmul.f32 %v818, 1.442695
        %v826 = vpow.pop %v825
        %v827 = vmul.f32 %v808, 0.0
        %v828 = vmul.f32 %v810, 0.0
        %v829 = vmul.f32 %v812, 0.0
        %v830 = vmul.f32 %v814, 0.0
        %v831 = vsel %vm502, %v820, 0.0
        %832 = vadd.xlane.f32.xlu0 %v831
        %v833 = vpop.xlane.xlu0 %832
        %v834 = vsel %vm502, %v822, 0.0
        %835 = vadd.xlane.f32.xlu0 %v834
        %v836 = vpop.xlane.xlu0 %835
        %v837 = vsel %vm502, %v824, 0.0
        %838 = vadd.xlane.f32.xlu0 %v837
        %v839 = vpop.xlane.xlu0 %838
        %v840 = vsel %vm502, %v826, 0.0
        %841 = vadd.xlane.f32.xlu0 %v840
        %v842 = vpop.xlane.xlu0 %841
        %v843 = vadd.f32 %v827, %v833
        %v844 = vadd.f32 %v828, %v836
        %v845 = vadd.f32 %v829, %v839
        %v846 = vadd.f32 %v830, %v842
        %847 = vrot.lane.b32.xlu0 %v352, 64
        %v848 = vpop.permute.xlu0 %847
        %v851 = vsel %vm502, %v820, 0
        %853 = vmatprep.subr.mxu0 0.0
        %854 = vmatpush1.msra.mxu0 %v848
        %855 = vmatprep.subr.mxu0 0.0
        %856 = vmatpush1.msra.mxu0 0.0
        %857 = vmatprep.subr.mxu0 0.0
        %858 = vmatpush1.msra.mxu0 0.0
        %859 = vmatprep.subr.mxu0 0.0
        %860 = vmatpush1.msra.mxu0 0.0
        %861 = vmatprep.subr.mxu0 0.0
        %862 = vmatpush1.msra.mxu0 0.0
        %863 = vmatprep.subr.mxu0 0.0
        %864 = vmatpush1.msra.mxu0 0.0
        %865 = vmatprep.subr.mxu0 0.0
        %866 = vmatpush1.msra.mxu0 0.0
        %867 = vmatprep.subr.mxu0 0.0
        %868 = vmatpush1.msra.mxu0 0.0
        %869 = vmatprep.subr.mxu0 0.0
        %870 = vmatpush1.msra.mxu0 0.0
        %871 = vmatprep.subr.mxu0 0.0
        %872 = vmatpush1.msra.mxu0 0.0
        %873 = vmatprep.subr.mxu0 0.0
        %874 = vmatpush1.msra.mxu0 0.0
        %875 = vmatprep.subr.mxu0 0.0
        %876 = vmatpush1.msra.mxu0 0.0
        %877 = vmatprep.subr.mxu0 0.0
        %878 = vmatpush1.msra.mxu0 0.0
        %879 = vmatprep.subr.mxu0 0.0
        %880 = vmatpush1.msra.mxu0 0.0
        %881 = vmatprep.subr.mxu0 0.0
        %882 = vmatpush1.msra.mxu0 0.0
        %883 = vmatprep.subr.mxu0 0.0
        %884 = vmatpush1.msra.mxu0 0.0
        %885 = vmatprep.subr.mxu0 0.0
        %886 = vmatpush1.msra.mxu0 0.0
        %887 = vmatprep.subr.mxu0 0.0
        %888 = vmatpush1.msra.mxu0 0.0
        %889 = vmatprep.subr.mxu0 0.0
        %890 = vmatpush1.msra.mxu0 0.0
        %891 = vmatprep.subr.mxu0 0.0
        %892 = vmatpush1.msra.mxu0 0.0
        %893 = vmatprep.subr.mxu0 0.0
        %894 = vmatpush1.msra.mxu0 0.0
        %895 = vmatprep.subr.mxu0 0.0
        %896 = vmatpush1.msra.mxu0 0.0
        %897 = vmatprep.subr.mxu0 0.0
        %898 = vmatpush1.msra.mxu0 0.0
        %899 = vmatprep.subr.mxu0 0.0
        %900 = vmatpush1.msra.mxu0 0.0
        %901 = vmatprep.subr.mxu0 0.0
        %902 = vmatpush1.msra.mxu0 0.0
        %903 = vmatprep.subr.mxu0 0.0
        %904 = vmatpush1.msra.mxu0 0.0
        %905 = vmatprep.subr.mxu0 0.0
        %906 = vmatpush1.msra.mxu0 0.0
        %907 = vmatprep.subr.mxu0 0.0
        %908 = vmatpush1.msra.mxu0 0.0
        %909 = vmatprep.subr.mxu0 0.0
        %910 = vmatpush1.msra.mxu0 0.0
        %911 = vmatprep.subr.mxu0 0.0
        %912 = vmatpush1.msra.mxu0 0.0
        %913 = vmatprep.subr.mxu0 0.0
        %914 = vmatpush1.msra.mxu0 0.0
        %915 = vmatprep.subr.mxu0 0.0
        %916 = vmatpush1.msra.mxu0 0.0
        %917 = vmatprep.mubr.f32.mxu0 0.0
        %918 = vmatmul.mubr.f32.gmra.mrb[0].mxu0 %v851
        %v919 = vpop.f32.mrb[0].mxu0
        %v920 = vadd.f32 0.0, %v919
        %v921 = vpop.f32.mrb[0].mxu0
        %922 = vdwg.mxu0
        %923 = vrot.lane.b32.xlu0 %v357, 64
        %v924 = vpop.permute.xlu0 %923
        %v927 = vsel %vm502, %v822, 0
        %929 = vmatprep.subr.mxu0 0.0
        %930 = vmatpush1.msra.mxu0 %v924
        %931 = vmatprep.subr.mxu0 0.0
        %932 = vmatpush1.msra.mxu0 0.0
        %933 = vmatprep.subr.mxu0 0.0
        %934 = vmatpush1.msra.mxu0 0.0
        %935 = vmatprep.subr.mxu0 0.0
        %936 = vmatpush1.msra.mxu0 0.0
        %937 = vmatprep.subr.mxu0 0.0
        %938 = vmatpush1.msra.mxu0 0.0
        %939 = vmatprep.subr.mxu0 0.0
        %940 = vmatpush1.msra.mxu0 0.0
        %941 = vmatprep.subr.mxu0 0.0
        %942 = vmatpush1.msra.mxu0 0.0
        %943 = vmatprep.subr.mxu0 0.0
        %944 = vmatpush1.msra.mxu0 0.0
        %945 = vmatprep.subr.mxu0 0.0
        %946 = vmatpush1.msra.mxu0 0.0
        %947 = vmatprep.subr.mxu0 0.0
        %948 = vmatpush1.msra.mxu0 0.0
        %949 = vmatprep.subr.mxu0 0.0
        %950 = vmatpush1.msra.mxu0 0.0
        %951 = vmatprep.subr.mxu0 0.0
        %952 = vmatpush1.msra.mxu0 0.0
        %953 = vmatprep.subr.mxu0 0.0
        %954 = vmatpush1.msra.mxu0 0.0
        %955 = vmatprep.subr.mxu0 0.0
        %956 = vmatpush1.msra.mxu0 0.0
        %957 = vmatprep.subr.mxu0 0.0
        %958 = vmatpush1.msra.mxu0 0.0
        %959 = vmatprep.subr.mxu0 0.0
        %960 = vmatpush1.msra.mxu0 0.0
        %961 = vmatprep.subr.mxu0 0.0
        %962 = vmatpush1.msra.mxu0 0.0
        %963 = vmatprep.subr.mxu0 0.0
        %964 = vmatpush1.msra.mxu0 0.0
        %965 = vmatprep.subr.mxu0 0.0
        %966 = vmatpush1.msra.mxu0 0.0
        %967 = vmatprep.subr.mxu0 0.0
        %968 = vmatpush1.msra.mxu0 0.0
        %969 = vmatprep.subr.mxu0 0.0
        %970 = vmatpush1.msra.mxu0 0.0
        %971 = vmatprep.subr.mxu0 0.0
        %972 = vmatpush1.msra.mxu0 0.0
        %973 = vmatprep.subr.mxu0 0.0
        %974 = vmatpush1.msra.mxu0 0.0
        %975 = vmatprep.subr.mxu0 0.0
        %976 = vmatpush1.msra.mxu0 0.0
        %977 = vmatprep.subr.mxu0 0.0
        %978 = vmatpush1.msra.mxu0 0.0
        %979 = vmatprep.subr.mxu0 0.0
        %980 = vmatpush1.msra.mxu0 0.0
        %981 = vmatprep.subr.mxu0 0.0
        %982 = vmatpush1.msra.mxu0 0.0
        %983 = vmatprep.subr.mxu0 0.0
        %984 = vmatpush1.msra.mxu0 0.0
        %985 = vmatprep.subr.mxu0 0.0
        %986 = vmatpush1.msra.mxu0 0.0
        %987 = vmatprep.subr.mxu0 0.0
        %988 = vmatpush1.msra.mxu0 0.0
        %989 = vmatprep.subr.mxu0 0.0
        %990 = vmatpush1.msra.mxu0 0.0
        %991 = vmatprep.subr.mxu0 0.0
        %992 = vmatpush1.msra.mxu0 0.0
        %993 = vmatprep.mubr.f32.mxu0 0.0
        %994 = vmatmul.mubr.f32.gmra.mrb[0].mxu0 %v927
        %v995 = vpop.f32.mrb[0].mxu0
        %v996 = vadd.f32 0.0, %v995
        %v997 = vpop.f32.mrb[0].mxu0
        %998 = vdwg.mxu0
        %999 = vrot.lane.b32.xlu0 %v359, 64
        %v1000 = vpop.permute.xlu0 %999
        %v1003 = vsel %vm502, %v824, 0
        %1005 = vmatprep.subr.mxu0 0.0
        %1006 = vmatpush1.msra.mxu0 %v1000
        %1007 = vmatprep.subr.mxu0 0.0
        %1008 = vmatpush1.msra.mxu0 0.0
        %1009 = vmatprep.subr.mxu0 0.0
        %1010 = vmatpush1.msra.mxu0 0.0
        %1011 = vmatprep.subr.mxu0 0.0
        %1012 = vmatpush1.msra.mxu0 0.0
        %1013 = vmatprep.subr.mxu0 0.0
        %1014 = vmatpush1.msra.mxu0 0.0
        %1015 = vmatprep.subr.mxu0 0.0
        %1016 = vmatpush1.msra.mxu0 0.0
        %1017 = vmatprep.subr.mxu0 0.0
        %1018 = vmatpush1.msra.mxu0 0.0
        %1019 = vmatprep.subr.mxu0 0.0
        %1020 = vmatpush1.msra.mxu0 0.0
        %1021 = vmatprep.subr.mxu0 0.0
        %1022 = vmatpush1.msra.mxu0 0.0
        %1023 = vmatprep.subr.mxu0 0.0
        %1024 = vmatpush1.msra.mxu0 0.0
        %1025 = vmatprep.subr.mxu0 0.0
        %1026 = vmatpush1.msra.mxu0 0.0
        %1027 = vmatprep.subr.mxu0 0.0
        %1028 = vmatpush1.msra.mxu0 0.0
        %1029 = vmatprep.subr.mxu0 0.0
        %1030 = vmatpush1.msra.mxu0 0.0
        %1031 = vmatprep.subr.mxu0 0.0
        %1032 = vmatpush1.msra.mxu0 0.0
        %1033 = vmatprep.subr.mxu0 0.0
        %1034 = vmatpush1.msra.mxu0 0.0
        %1035 = vmatprep.subr.mxu0 0.0
        %1036 = vmatpush1.msra.mxu0 0.0
        %1037 = vmatprep.subr.mxu0 0.0
        %1038 = vmatpush1.msra.mxu0 0.0
        %1039 = vmatprep.subr.mxu0 0.0
        %1040 = vmatpush1.msra.mxu0 0.0
        %1041 = vmatprep.subr.mxu0 0.0
        %1042 = vmatpush1.msra.mxu0 0.0
        %1043 = vmatprep.subr.mxu0 0.0
        %1044 = vmatpush1.msra.mxu0 0.0
        %1045 = vmatprep.subr.mxu0 0.0
        %1046 = vmatpush1.msra.mxu0 0.0
        %1047 = vmatprep.subr.mxu0 0.0
        %1048 = vmatpush1.msra.mxu0 0.0
        %1049 = vmatprep.subr.mxu0 0.0
        %1050 = vmatpush1.msra.mxu0 0.0
        %1051 = vmatprep.subr.mxu0 0.0
        %1052 = vmatpush1.msra.mxu0 0.0
        %1053 = vmatprep.subr.mxu0 0.0
        %1054 = vmatpush1.msra.mxu0 0.0
        %1055 = vmatprep.subr.mxu0 0.0
        %1056 = vmatpush1.msra.mxu0 0.0
        %1057 = vmatprep.subr.mxu0 0.0
        %1058 = vmatpush1.msra.mxu0 0.0
        %1059 = vmatprep.subr.mxu0 0.0
        %1060 = vmatpush1.msra.mxu0 0.0
        %1061 = vmatprep.subr.mxu0 0.0
        %1062 = vmatpush1.msra.mxu0 0.0
        %1063 = vmatprep.subr.mxu0 0.0
        %1064 = vmatpush1.msra.mxu0 0.0
        %1065 = vmatprep.subr.mxu0 0.0
        %1066 = vmatpush1.msra.mxu0 0.0
        %1067 = vmatprep.subr.mxu0 0.0
        %1068 = vmatpush1.msra.mxu0 0.0
        %1069 = vmatprep.mubr.f32.mxu0 0.0
        %1070 = vmatmul.mubr.f32.gmra.mrb[0].mxu0 %v1003
        %v1071 = vpop.f32.mrb[0].mxu0
        %v1072 = vadd.f32 0.0, %v1071
        %v1073 = vpop.f32.mrb[0].mxu0
        %1074 = vdwg.mxu0
        %1075 = vrot.lane.b32.xlu0 %v361, 64
        %v1076 = vpop.permute.xlu0 %1075
        %v1079 = vsel %vm502, %v826, 0
        %1081 = vmatprep.subr.mxu0 0.0
        %1082 = vmatpush1.msra.mxu0 %v1076
        %1083 = vmatprep.subr.mxu0 0.0
        %1084 = vmatpush1.msra.mxu0 0.0
        %1085 = vmatprep.subr.mxu0 0.0
        %1086 = vmatpush1.msra.mxu0 0.0
        %1087 = vmatprep.subr.mxu0 0.0
        %1088 = vmatpush1.msra.mxu0 0.0
        %1089 = vmatprep.subr.mxu0 0.0
        %1090 = vmatpush1.msra.mxu0 0.0
        %1091 = vmatprep.subr.mxu0 0.0
        %1092 = vmatpush1.msra.mxu0 0.0
        %1093 = vmatprep.subr.mxu0 0.0
        %1094 = vmatpush1.msra.mxu0 0.0
        %1095 = vmatprep.subr.mxu0 0.0
        %1096 = vmatpush1.msra.mxu0 0.0
        %1097 = vmatprep.subr.mxu0 0.0
        %1098 = vmatpush1.msra.mxu0 0.0
        %1099 = vmatprep.subr.mxu0 0.0
        %1100 = vmatpush1.msra.mxu0 0.0
        %1101 = vmatprep.subr.mxu0 0.0
        %1102 = vmatpush1.msra.mxu0 0.0
        %1103 = vmatprep.subr.mxu0 0.0
        %1104 = vmatpush1.msra.mxu0 0.0
        %1105 = vmatprep.subr.mxu0 0.0
        %1106 = vmatpush1.msra.mxu0 0.0
        %1107 = vmatprep.subr.mxu0 0.0
        %1108 = vmatpush1.msra.mxu0 0.0
        %1109 = vmatprep.subr.mxu0 0.0
        %1110 = vmatpush1.msra.mxu0 0.0
        %1111 = vmatprep.subr.mxu0 0.0
        %1112 = vmatpush1.msra.mxu0 0.0
        %1113 = vmatprep.subr.mxu0 0.0
        %1114 = vmatpush1.msra.mxu0 0.0
        %1115 = vmatprep.subr.mxu0 0.0
        %1116 = vmatpush1.msra.mxu0 0.0
        %1117 = vmatprep.subr.mxu0 0.0
        %1118 = vmatpush1.msra.mxu0 0.0
        %1119 = vmatprep.subr.mxu0 0.0
        %1120 = vmatpush1.msra.mxu0 0.0
        %1121 = vmatprep.subr.mxu0 0.0
        %1122 = vmatpush1.msra.mxu0 0.0
        %1123 = vmatprep.subr.mxu0 0.0
        %1124 = vmatpush1.msra.mxu0 0.0
        %1125 = vmatprep.subr.mxu0 0.0
        %1126 = vmatpush1.msra.mxu0 0.0
        %1127 = vmatprep.subr.mxu0 0.0
        %1128 = vmatpush1.msra.mxu0 0.0
        %1129 = vmatprep.subr.mxu0 0.0
        %1130 = vmatpush1.msra.mxu0 0.0
        %1131 = vmatprep.subr.mxu0 0.0
        %1132 = vmatpush1.msra.mxu0 0.0
        %1133 = vmatprep.subr.mxu0 0.0
        %1134 = vmatpush1.msra.mxu0 0.0
        %1135 = vmatprep.subr.mxu0 0.0
        %1136 = vmatpush1.msra.mxu0 0.0
        %1137 = vmatprep.subr.mxu0 0.0
        %1138 = vmatpush1.msra.mxu0 0.0
        %1139 = vmatprep.subr.mxu0 0.0
        %1140 = vmatpush1.msra.mxu0 0.0
        %1141 = vmatprep.subr.mxu0 0.0
        %1142 = vmatpush1.msra.mxu0 0.0
        %1143 = vmatprep.subr.mxu0 0.0
        %1144 = vmatpush1.msra.mxu0 0.0
        %1145 = vmatprep.mubr.f32.mxu0 0.0
        %1146 = vmatmul.mubr.f32.gmra.mrb[0].mxu0 %v1079
        %v1147 = vpop.f32.mrb[0].mxu0
        %v1148 = vadd.f32 0.0, %v1147
        %v1149 = vpop.f32.mrb[0].mxu0
        %1150 = vdwg.mxu0
        %v1151 = vadd.f32 %v827, %v920
        %v1152 = vadd.f32 %v828, %v996
        %v1153 = vadd.f32 %v829, %v1072
        %v1154 = vadd.f32 %v830, %v1148
        %v1155 = vrcp.pop %v843
        %v1156 = vrcp.pop %v844
        %v1157 = vrcp.pop %v845
        %v1158 = vrcp.pop %v846
        %v1159 = vmul.f32 %v1151, %v1155
        %v1160 = vmul.f32 %v1152, %v1156
        %v1161 = vmul.f32 %v1153, %v1157
        %v1162 = vmul.f32 %v1154, %v1158
        %v1163 = vld [vmem:[%s4] sm:$0x1]
        %v1164 = vld [vmem:[#allocation7] sm:$0xff]
        %v1166 = vsel %vm502, %v1159, 0
        %1168 = vmatprep.subr.mxu0 0.0
        %1169 = vmatpush1.msra.mxu0 %v1164
        %1170 = vmatprep.subr.mxu0 0.0
        %1171 = vmatpush1.msra.mxu0 0.0
        %1172 = vmatprep.subr.mxu0 0.0
        %1173 = vmatpush1.msra.mxu0 0.0
        %1174 = vmatprep.subr.mxu0 0.0
        %1175 = vmatpush1.msra.mxu0 0.0
        %1176 = vmatprep.subr.mxu0 0.0
        %1177 = vmatpush1.msra.mxu0 0.0
        %1178 = vmatprep.subr.mxu0 0.0
        %1179 = vmatpush1.msra.mxu0 0.0
        %1180 = vmatprep.subr.mxu0 0.0
        %1181 = vmatpush1.msra.mxu0 0.0
        %1182 = vmatprep.subr.mxu0 0.0
        %1183 = vmatpush1.msra.mxu0 0.0
        %1184 = vmatprep.subr.mxu0 0.0
        %1185 = vmatpush1.msra.mxu0 0.0
        %1186 = vmatprep.subr.mxu0 0.0
        %1187 = vmatpush1.msra.mxu0 0.0
        %1188 = vmatprep.subr.mxu0 0.0
        %1189 = vmatpush1.msra.mxu0 0.0
        %1190 = vmatprep.subr.mxu0 0.0
        %1191 = vmatpush1.msra.mxu0 0.0
        %1192 = vmatprep.subr.mxu0 0.0
        %1193 = vmatpush1.msra.mxu0 0.0
        %1194 = vmatprep.subr.mxu0 0.0
        %1195 = vmatpush1.msra.mxu0 0.0
        %1196 = vmatprep.subr.mxu0 0.0
        %1197 = vmatpush1.msra.mxu0 0.0
        %1198 = vmatprep.subr.mxu0 0.0
        %1199 = vmatpush1.msra.mxu0 0.0
        %1200 = vmatprep.subr.mxu0 0.0
        %1201 = vmatpush1.msra.mxu0 0.0
        %1202 = vmatprep.subr.mxu0 0.0
        %1203 = vmatpush1.msra.mxu0 0.0
        %1204 = vmatprep.subr.mxu0 0.0
        %1205 = vmatpush1.msra.mxu0 0.0
        %1206 = vmatprep.subr.mxu0 0.0
        %1207 = vmatpush1.msra.mxu0 0.0
        %1208 = vmatprep.subr.mxu0 0.0
        %1209 = vmatpush1.msra.mxu0 0.0
        %1210 = vmatprep.subr.mxu0 0.0
        %1211 = vmatpush1.msra.mxu0 0.0
        %1212 = vmatprep.subr.mxu0 0.0
        %1213 = vmatpush1.msra.mxu0 0.0
        %1214 = vmatprep.subr.mxu0 0.0
        %1215 = vmatpush1.msra.mxu0 0.0
        %1216 = vmatprep.subr.mxu0 0.0
        %1217 = vmatpush1.msra.mxu0 0.0
        %1218 = vmatprep.subr.mxu0 0.0
        %1219 = vmatpush1.msra.mxu0 0.0
        %1220 = vmatprep.subr.mxu0 0.0
        %1221 = vmatpush1.msra.mxu0 0.0
        %1222 = vmatprep.subr.mxu0 0.0
        %1223 = vmatpush1.msra.mxu0 0.0
        %1224 = vmatprep.subr.mxu0 0.0
        %1225 = vmatpush1.msra.mxu0 0.0
        %1226 = vmatprep.subr.mxu0 0.0
        %1227 = vmatpush1.msra.mxu0 0.0
        %1228 = vmatprep.subr.mxu0 0.0
        %1229 = vmatpush1.msra.mxu0 0.0
        %1230 = vmatprep.subr.mxu0 0.0
        %1231 = vmatpush1.msra.mxu0 0.0
        %1232 = vmatprep.mubr.f32.mxu0 0.0
        %1233 = vmatmul.mubr.f32.gmra.mrb[0].mxu0 %v1166
        %v1234 = vpop.f32.mrb[0].mxu0
        %v1235 = vadd.f32 0.0, %v1234
        %v1236 = vpop.f32.mrb[0].mxu0
        %1237 = vdwg.mxu0
        %v1239 = vlaneseq
        %v1240 = vshrl.u32 %v1239, 7
        %v1241 = vsub.s32 0, %v1240
        %v1242 = vrot.slane %v1163, %v1241
        %v1244 = vadd.f32 %v1242, %v1235
        %s1245 = scalar_lea.vmem [#allocation7], 8
        %v1246 = vld [vmem:[%s1245] sm:$0xff]
        %v1248 = vsel %vm502, %v1160, 0
        %1250 = vmatprep.subr.mxu0 0.0
        %1251 = vmatpush1.msra.mxu0 %v1246
        %1252 = vmatprep.subr.mxu0 0.0
        %1253 = vmatpush1.msra.mxu0 0.0
        %1254 = vmatprep.subr.mxu0 0.0
        %1255 = vmatpush1.msra.mxu0 0.0
        %1256 = vmatprep.subr.mxu0 0.0
        %1257 = vmatpush1.msra.mxu0 0.0
        %1258 = vmatprep.subr.mxu0 0.0
        %1259 = vmatpush1.msra.mxu0 0.0
        %1260 = vmatprep.subr.mxu0 0.0
        %1261 = vmatpush1.msra.mxu0 0.0
        %1262 = vmatprep.subr.mxu0 0.0
        %1263 = vmatpush1.msra.mxu0 0.0
        %1264 = vmatprep.subr.mxu0 0.0
        %1265 = vmatpush1.msra.mxu0 0.0
        %1266 = vmatprep.subr.mxu0 0.0
        %1267 = vmatpush1.msra.mxu0 0.0
        %1268 = vmatprep.subr.mxu0 0.0
        %1269 = vmatpush1.msra.mxu0 0.0
        %1270 = vmatprep.subr.mxu0 0.0
        %1271 = vmatpush1.msra.mxu0 0.0
        %1272 = vmatprep.subr.mxu0 0.0
        %1273 = vmatpush1.msra.mxu0 0.0
        %1274 = vmatprep.subr.mxu0 0.0
        %1275 = vmatpush1.msra.mxu0 0.0
        %1276 = vmatprep.subr.mxu0 0.0
        %1277 = vmatpush1.msra.mxu0 0.0
        %1278 = vmatprep.subr.mxu0 0.0
        %1279 = vmatpush1.msra.mxu0 0.0
        %1280 = vmatprep.subr.mxu0 0.0
        %1281 = vmatpush1.msra.mxu0 0.0
        %1282 = vmatprep.subr.mxu0 0.0
        %1283 = vmatpush1.msra.mxu0 0.0
        %1284 = vmatprep.subr.mxu0 0.0
        %1285 = vmatpush1.msra.mxu0 0.0
        %1286 = vmatprep.subr.mxu0 0.0
        %1287 = vmatpush1.msra.mxu0 0.0
        %1288 = vmatprep.subr.mxu0 0.0
        %1289 = vmatpush1.msra.mxu0 0.0
        %1290 = vmatprep.subr.mxu0 0.0
        %1291 = vmatpush1.msra.mxu0 0.0
        %1292 = vmatprep.subr.mxu0 0.0
        %1293 = vmatpush1.msra.mxu0 0.0
        %1294 = vmatprep.subr.mxu0 0.0
        %1295 = vmatpush1.msra.mxu0 0.0
        %1296 = vmatprep.subr.mxu0 0.0
        %1297 = vmatpush1.msra.mxu0 0.0
        %1298 = vmatprep.subr.mxu0 0.0
        %1299 = vmatpush1.msra.mxu0 0.0
        %1300 = vmatprep.subr.mxu0 0.0
        %1301 = vmatpush1.msra.mxu0 0.0
        %1302 = vmatprep.subr.mxu0 0.0
        %1303 = vmatpush1.msra.mxu0 0.0
        %1304 = vmatprep.subr.mxu0 0.0
        %1305 = vmatpush1.msra.mxu0 0.0
        %1306 = vmatprep.subr.mxu0 0.0
        %1307 = vmatpush1.msra.mxu0 0.0
        %1308 = vmatprep.subr.mxu0 0.0
        %1309 = vmatpush1.msra.mxu0 0.0
        %1310 = vmatprep.subr.mxu0 0.0
        %1311 = vmatpush1.msra.mxu0 0.0
        %1312 = vmatprep.subr.mxu0 0.0
        %1313 = vmatpush1.msra.mxu0 0.0
        %1314 = vmatprep.mubr.f32.mxu0 0.0
        %1315 = vmatmul.mubr.f32.gmra.mrb[0].mxu0 %v1248
        %v1316 = vpop.f32.mrb[0].mxu0
        %v1317 = vadd.f32 0.0, %v1316
        %v1318 = vpop.f32.mrb[0].mxu0
        %1319 = vdwg.mxu0
        %v1320 = vadd.f32 %v1244, %v1317
        %s1321 = scalar_lea.vmem [#allocation7], 16
        %v1322 = vld [vmem:[%s1321] sm:$0xff]
        %v1324 = vsel %vm502, %v1161, 0
        %1326 = vmatprep.subr.mxu0 0.0
        %1327 = vmatpush1.msra.mxu0 %v1322
        %1328 = vmatprep.subr.mxu0 0.0
        %1329 = vmatpush1.msra.mxu0 0.0
        %1330 = vmatprep.subr.mxu0 0.0
        %1331 = vmatpush1.msra.mxu0 0.0
        %1332 = vmatprep.subr.mxu0 0.0
        %1333 = vmatpush1.msra.mxu0 0.0
        %1334 = vmatprep.subr.mxu0 0.0
        %1335 = vmatpush1.msra.mxu0 0.0
        %1336 = vmatprep.subr.mxu0 0.0
        %1337 = vmatpush1.msra.mxu0 0.0
        %1338 = vmatprep.subr.mxu0 0.0
        %1339 = vmatpush1.msra.mxu0 0.0
        %1340 = vmatprep.subr.mxu0 0.0
        %1341 = vmatpush1.msra.mxu0 0.0
        %1342 = vmatprep.subr.mxu0 0.0
        %1343 = vmatpush1.msra.mxu0 0.0
        %1344 = vmatprep.subr.mxu0 0.0
        %1345 = vmatpush1.msra.mxu0 0.0
        %1346 = vmatprep.subr.mxu0 0.0
        %1347 = vmatpush1.msra.mxu0 0.0
        %1348 = vmatprep.subr.mxu0 0.0
        %1349 = vmatpush1.msra.mxu0 0.0
        %1350 = vmatprep.subr.mxu0 0.0
        %1351 = vmatpush1.msra.mxu0 0.0
        %1352 = vmatprep.subr.mxu0 0.0
        %1353 = vmatpush1.msra.mxu0 0.0
        %1354 = vmatprep.subr.mxu0 0.0
        %1355 = vmatpush1.msra.mxu0 0.0
        %1356 = vmatprep.subr.mxu0 0.0
        %1357 = vmatpush1.msra.mxu0 0.0
        %1358 = vmatprep.subr.mxu0 0.0
        %1359 = vmatpush1.msra.mxu0 0.0
        %1360 = vmatprep.subr.mxu0 0.0
        %1361 = vmatpush1.msra.mxu0 0.0
        %1362 = vmatprep.subr.mxu0 0.0
        %1363 = vmatpush1.msra.mxu0 0.0
        %1364 = vmatprep.subr.mxu0 0.0
        %1365 = vmatpush1.msra.mxu0 0.0
        %1366 = vmatprep.subr.mxu0 0.0
        %1367 = vmatpush1.msra.mxu0 0.0
        %1368 = vmatprep.subr.mxu0 0.0
        %1369 = vmatpush1.msra.mxu0 0.0
        %1370 = vmatprep.subr.mxu0 0.0
        %1371 = vmatpush1.msra.mxu0 0.0
        %1372 = vmatprep.subr.mxu0 0.0
        %1373 = vmatpush1.msra.mxu0 0.0
        %1374 = vmatprep.subr.mxu0 0.0
        %1375 = vmatpush1.msra.mxu0 0.0
        %1376 = vmatprep.subr.mxu0 0.0
        %1377 = vmatpush1.msra.mxu0 0.0
        %1378 = vmatprep.subr.mxu0 0.0
        %1379 = vmatpush1.msra.mxu0 0.0
        %1380 = vmatprep.subr.mxu0 0.0
        %1381 = vmatpush1.msra.mxu0 0.0
        %1382 = vmatprep.subr.mxu0 0.0
        %1383 = vmatpush1.msra.mxu0 0.0
        %1384 = vmatprep.subr.mxu0 0.0
        %1385 = vmatpush1.msra.mxu0 0.0
        %1386 = vmatprep.subr.mxu0 0.0
        %1387 = vmatpush1.msra.mxu0 0.0
        %1388 = vmatprep.subr.mxu0 0.0
        %1389 = vmatpush1.msra.mxu0 0.0
        %1390 = vmatprep.mubr.f32.mxu0 0.0
        %1391 = vmatmul.mubr.f32.gmra.mrb[0].mxu0 %v1324
        %v1392 = vpop.f32.mrb[0].mxu0
        %v1393 = vadd.f32 0.0, %v1392
        %v1394 = vpop.f32.mrb[0].mxu0
        %1395 = vdwg.mxu0
        %v1396 = vadd.f32 %v1320, %v1393
        %s1397 = scalar_lea.vmem [#allocation7], 24
        %v1398 = vld [vmem:[%s1397] sm:$0xff]
        %v1400 = vsel %vm502, %v1162, 0
        %1402 = vmatprep.subr.mxu0 0.0
        %1403 = vmatpush1.msra.mxu0 %v1398
        %1404 = vmatprep.subr.mxu0 0.0
        %1405 = vmatpush1.msra.mxu0 0.0
        %1406 = vmatprep.subr.mxu0 0.0
        %1407 = vmatpush1.msra.mxu0 0.0
        %1408 = vmatprep.subr.mxu0 0.0
        %1409 = vmatpush1.msra.mxu0 0.0
        %1410 = vmatprep.subr.mxu0 0.0
        %1411 = vmatpush1.msra.mxu0 0.0
        %1412 = vmatprep.subr.mxu0 0.0
        %1413 = vmatpush1.msra.mxu0 0.0
        %1414 = vmatprep.subr.mxu0 0.0
        %1415 = vmatpush1.msra.mxu0 0.0
        %1416 = vmatprep.subr.mxu0 0.0
        %1417 = vmatpush1.msra.mxu0 0.0
        %1418 = vmatprep.subr.mxu0 0.0
        %1419 = vmatpush1.msra.mxu0 0.0
        %1420 = vmatprep.subr.mxu0 0.0
        %1421 = vmatpush1.msra.mxu0 0.0
        %1422 = vmatprep.subr.mxu0 0.0
        %1423 = vmatpush1.msra.mxu0 0.0
        %1424 = vmatprep.subr.mxu0 0.0
        %1425 = vmatpush1.msra.mxu0 0.0
        %1426 = vmatprep.subr.mxu0 0.0
        %1427 = vmatpush1.msra.mxu0 0.0
        %1428 = vmatprep.subr.mxu0 0.0
        %1429 = vmatpush1.msra.mxu0 0.0
        %1430 = vmatprep.subr.mxu0 0.0
        %1431 = vmatpush1.msra.mxu0 0.0
        %1432 = vmatprep.subr.mxu0 0.0
        %1433 = vmatpush1.msra.mxu0 0.0
        %1434 = vmatprep.subr.mxu0 0.0
        %1435 = vmatpush1.msra.mxu0 0.0
        %1436 = vmatprep.subr.mxu0 0.0
        %1437 = vmatpush1.msra.mxu0 0.0
        %1438 = vmatprep.subr.mxu0 0.0
        %1439 = vmatpush1.msra.mxu0 0.0
        %1440 = vmatprep.subr.mxu0 0.0
        %1441 = vmatpush1.msra.mxu0 0.0
        %1442 = vmatprep.subr.mxu0 0.0
        %1443 = vmatpush1.msra.mxu0 0.0
        %1444 = vmatprep.subr.mxu0 0.0
        %1445 = vmatpush1.msra.mxu0 0.0
        %1446 = vmatprep.subr.mxu0 0.0
        %1447 = vmatpush1.msra.mxu0 0.0
        %1448 = vmatprep.subr.mxu0 0.0
        %1449 = vmatpush1.msra.mxu0 0.0
        %1450 = vmatprep.subr.mxu0 0.0
        %1451 = vmatpush1.msra.mxu0 0.0
        %1452 = vmatprep.subr.mxu0 0.0
        %1453 = vmatpush1.msra.mxu0 0.0
        %1454 = vmatprep.subr.mxu0 0.0
        %1455 = vmatpush1.msra.mxu0 0.0
        %1456 = vmatprep.subr.mxu0 0.0
        %1457 = vmatpush1.msra.mxu0 0.0
        %1458 = vmatprep.subr.mxu0 0.0
        %1459 = vmatpush1.msra.mxu0 0.0
        %1460 = vmatprep.subr.mxu0 0.0
        %1461 = vmatpush1.msra.mxu0 0.0
        %1462 = vmatprep.subr.mxu0 0.0
        %1463 = vmatpush1.msra.mxu0 0.0
        %1464 = vmatprep.subr.mxu0 0.0
        %1465 = vmatpush1.msra.mxu0 0.0
        %1466 = vmatprep.mubr.f32.mxu0 0.0
        %1467 = vmatmul.mubr.f32.gmra.mrb[0].mxu0 %v1400
        %v1468 = vpop.f32.mrb[0].mxu0
        %v1469 = vadd.f32 0.0, %v1468
        %v1470 = vpop.f32.mrb[0].mxu0
        %1471 = vdwg.mxu0
        %v1472 = vadd.f32 %v1396, %v1469
        %1473 = vst.msk [vmem:[%s268] sm:$0xff] %vm281, %v1472
        %s1474 = sand.u32 %s141, 1
        %s1475 = scalar_lea.sflag [#allocation4], %s1474
        %s1476 = sand.u32 %s141, 1
        %s1477 = smul.addr %s1476, 8
        %s1478 = scalar_lea.vmem [#allocation8], %s1477
        // Predicated region
        $region53: #{tpu_custom_call.1} parent=39 // pred_check
          %p1479 = pneg %p151
        $region54: #{tpu_custom_call.1} parent=39 // pred_check_branch
          %1481 = sbr.rel (%p1479) target = $region56
        $region55: #{tpu_custom_call.1} parent=39 // pred_region
          %s1483 = ssub.s32 128, 128
          %1484 = vsyncadd %s1475, %s1483
          %s1485 = smul.addr %s23, 128
          %s1486 = scalar_lea.hbm %s5, %s1485
          %s1488 = sshll.u32 %s1478, 4
          %s1489 = int_to_ptr.vmem [resolvable:$true] %s1488
          %1491 = dma.vmem_to_hbm [thread:$0]  %s1489, 128, %s1486, %s1475
        $region56: #{tpu_custom_call.1} parent=39 // pred_fallthru
          _
      $region40: #{tpu_custom_call.1} parent=5 // pred_fallthru
        _
      %p1492 = scmp.le.s32.totalorder 2, %s18
      // Predicated region
      $region57: #{tpu_custom_call.1} parent=5 // pred_check
        %p1493 = pneg %p1492
      $region58: #{tpu_custom_call.1} parent=5 // pred_check_branch
        %1495 = sbr.rel (%p1493) target = $region60
      $region59: #{tpu_custom_call.1} parent=5 // pred_region
        %s1496 = ssub.s32 %s18, 2
        // Predicated region
        $region61: #{tpu_custom_call.1} parent=59 // pred_check
          %p1497 = pneg %p157
        $region62: #{tpu_custom_call.1} parent=59 // pred_check_branch
          %1499 = sbr.rel (%p1497) target = $region64
        $region63: #{tpu_custom_call.1} parent=59 // pred_region
          %s1500 = sand.u32 %s142, 1
          %s1501 = scalar_lea.sflag [#allocation4], %s1500
          %s1502 = sand.u32 %s142, 1
          %s1503 = smul.addr %s1502, 8
          %s1504 = scalar_lea.vmem [#allocation8], %s1503
          %1505 = dma.done %s1501, 128
        $region64: #{tpu_custom_call.1} parent=59 // pred_fallthru
          _
      $region60: #{tpu_custom_call.1} parent=5 // pred_fallthru
        _
    $region6: #{tpu_custom_call.1} parent=1 // loop_footer
      %s22 = sadd.s32 1, %s18
    $region7: #{tpu_custom_call.1} parent=1 // loop_footer_branch
      %17 = sbr.rel target = $region3
    $region8: #{tpu_custom_call.1} parent=1 // loop_exit
      _
    %1506 = vsyncpa [#allocation3], 1
    %s1507 = scalar_lea.sflag [#allocation3], 1
    %1508 = vsyncpa %s1507, 1
    %1509 = vsyncpa [#allocation6], 1
    %1510 = vsyncpa [#allocation4], 1
    %s1511 = scalar_lea.sflag [#allocation4], 1
    %1512 = vsyncpa %s1511, 1

// kernel: tpu_custom_call.1
$region0: #{tpu_custom_call.1}
  #allocation0 [shape = 'u32[]', space=smem, size = 0x4, offset = 0x4, fixed_abs, tag = 'smem constant byte address 0x4 - core index']
  #allocation1 [shape = 'u32[144,128]{1,0:T(1,128)}', space=vmem, size = 0x12000, scoped, tag = 'internal scratch']
  %s0 = inlined_call_operand.hbm [shape: f32[2,8,32], index: 0, kind: input, shape index: {}]
  %s1 = inlined_call_operand.hbm [shape: f32[32,96], index: 1, kind: input, shape index: {}]
  %s2 = inlined_call_operand.vmem [shape: f32[1,96], index: 2, kind: input, shape index: {}]
  %s3 = inlined_call_operand.hbm [shape: f32[4,8,32], index: 3, kind: input, shape index: {}]
  %s4 = inlined_call_operand.vmem [shape: f32[1,32], index: 4, kind: input, shape index: {}]
  %s5 = inlined_call_operand.hbm [shape: f32[2,8,32], index: 5, kind: output, shape index: {}]
  %s6 = sld [smem:[#allocation0]]
  $region65: #{tpu_custom_call.1} parent=0
    _
  %s8 = ssub.s32 1, %s6
  %s9 = scalar_select 0, %s8, %s6
  $region1: #{tpu_custom_call.1} parent=0
    #allocation2 [shape = 'u8[8192]{0}', space=vmem, size = 0x2000, scoped, tag = 'input window, operand 0']
    #allocation3 [shape = 's32[2]{0}', space=sflag, size = 0x8, scoped, tag = 'scoped memory for tpu_custom_call.1']
    #allocation4 [shape = 's32[2]{0}', space=sflag, size = 0x8, scoped, tag = 'scoped memory for tpu_custom_call.1']
    #allocation5 [shape = 'u8[16384]{0}', space=vmem, size = 0x4000, scoped, tag = 'input window, operand 1, single buffered']
    #allocation6 [shape = 's32[1]{0}', space=sflag, size = 0x4, scoped, tag = 'scoped memory for tpu_custom_call.1']
    #allocation7 [shape = 'u8[16384]{0}', space=vmem, size = 0x4000, scoped, tag = 'input window, operand 3, single buffered']
    #allocation8 [shape = 'u8[8192]{0}', space=vmem, size = 0x2000, scoped, tag = 'output window, operand 0']
    %10 = vsyncpa [#allocation3], 0
    %s11 = scalar_lea.sflag [#allocation3], 1
    %12 = vsyncpa %s11, 0
    %13 = vsyncpa [#allocation6], 0
    %14 = vsyncpa [#allocation4], 0
    %s15 = scalar_lea.sflag [#allocation4], 1
    %16 = vsyncpa %s15, 0
    loop: start=0, step=1, limit=4
    $region2: #{tpu_custom_call.1} parent=1 // loop_pre_header
      _
    $region3: #{tpu_custom_call.1} parent=1 // loop_header
      %s18 = sphi 0, %s22
      %p19 = scmp.ge.s32.totalorder %s18, 4
      %s28 = sphi 0, %s30
      %s31 = sphi 0, %s28
      %s32 = sphi 0, %s31
      %s48 = sphi 0, %s32
      %s52 = sphi 0, %s52
      %s54 = sphi 0, %s52
      %s55 = sphi 0, %s54
      %s69 = sphi 0, %s55
      %s73 = sphi 0, %s73
      %s75 = sphi 0, %s73
      %s76 = sphi 0, %s75
      %s90 = sphi 0, %s76
      %s94 = sphi 0, %s94
      %s96 = sphi 0, %s94
      %s97 = sphi 0, %s96
      %s111 = sphi 0, %s97
      %s115 = sphi 0, %s115
      %s117 = sphi 0, %s115
      %s118 = sphi 0, %s117
      %s132 = sphi 0, %s118
      %s138 = sphi 0, %s140
      %s141 = sphi 0, %s138
      %s142 = sphi 0, %s141
      %s158 = sphi 0, %s142
    $region4: #{tpu_custom_call.1} parent=1 // loop_header_branch
      %21 = sbr.rel (%p19) target = $region8
    $region5: #{tpu_custom_call.1} parent=1 // loop_body
      %s23 = ssub.s32 %s18, 1
      %s24 = ssub.s32 %s18, 2
      %s25 = sadd.s32 %s18, 1
      %s26 = ssub.s32 %s18, %s25
      %p27 = scmp.eq.s32.totalorder %s26, 0
      %s29 = sadd.s32 %s28, 1
      %s30 = scalar_select %p27, %s28, %s29
      %p33 = pneg %p27
      %p34 = scmp.eq.s32.totalorder %s18, 1
      %p35 = por %p33, %p34
      %p36 = scmp.ne.s32.totalorder %s28, %s31
      %p37 = scmp.eq.s32.totalorder %s18, 0
      %p38 = por %p36, %p37
      %p39 = scmp.ne.s32.totalorder %s28, %s31
      %p40 = scmp.eq.s32.totalorder %s23, 1
      %p41 = por %p39, %p40
      %p42 = scmp.ne.s32.totalorder %s31, %s32
      %p43 = scmp.eq.s32.totalorder %s23, 0
      %p44 = por %p42, %p43
      %p45 = scmp.ne.s32.totalorder %s31, %s32
      %p46 = scmp.eq.s32.totalorder %s24, 1
      %p47 = por %p45, %p46
      %p49 = scmp.ne.s32.totalorder %s32, %s48
      %p50 = scmp.eq.s32.totalorder %s24, 0
      %p51 = por %p49, %p50
      %s53 = sadd.s32 %s52, 1
      %p56 = scmp.eq.s32.totalorder %s18, 1
      %p57 = scmp.ne.s32.totalorder %s52, %s54
      %p58 = scmp.eq.s32.totalorder %s18, 0
      %p59 = por %p57, %p58
      %p60 = scmp.ne.s32.totalorder %s52, %s54
      %p61 = scmp.eq.s32.totalorder %s23, 1
      %p62 = por %p60, %p61
      %p63 = scmp.ne.s32.totalorder %s54, %s55
      %p64 = scmp.eq.s32.totalorder %s23, 0
      %p65 = por %p63, %p64
      %p66 = scmp.ne.s32.totalorder %s54, %s55
      %p67 = scmp.eq.s32.totalorder %s24, 1
      %p68 = por %p66, %p67
      %p70 = scmp.ne.s32.totalorder %s55, %s69
      %p71 = scmp.eq.s32.totalorder %s24, 0
      %p72 = por %p70, %p71
      %s74 = sadd.s32 %s73, 1
      %p77 = scmp.eq.s32.totalorder %s18, 1
      %p78 = scmp.ne.s32.totalorder %s73, %s75
      %p79 = scmp.eq.s32.totalorder %s18, 0
      %p80 = por %p78, %p79
      %p81 = scmp.ne.s32.totalorder %s73, %s75
      %p82 = scmp.eq.s32.totalorder %s23, 1
      %p83 = por %p81, %p82
      %p84 = scmp.ne.s32.totalorder %s75, %s76
      %p85 = scmp.eq.s32.totalorder %s23, 0
      %p86 = por %p84, %p85
      %p87 = scmp.ne.s32.totalorder %s75, %s76
      %p88 = scmp.eq.s32.totalorder %s24, 1
      %p89 = por %p87, %p88
      %p91 = scmp.ne.s32.totalorder %s76, %s90
      %p92 = scmp.eq.s32.totalorder %s24, 0
      %p93 = por %p91, %p92
      %s95 = sadd.s32 %s94, 1
      %p98 = scmp.eq.s32.totalorder %s18, 1
      %p99 = scmp.ne.s32.totalorder %s94, %s96
      %p100 = scmp.eq.s32.totalorder %s18, 0
      %p101 = por %p99, %p100
      %p102 = scmp.ne.s32.totalorder %s94, %s96
      %p103 = scmp.eq.s32.totalorder %s23, 1
      %p104 = por %p102, %p103
      %p105 = scmp.ne.s32.totalorder %s96, %s97
      %p106 = scmp.eq.s32.totalorder %s23, 0
      %p107 = por %p105, %p106
      %p108 = scmp.ne.s32.totalorder %s96, %s97
      %p109 = scmp.eq.s32.totalorder %s24, 1
      %p110 = por %p108, %p109
      %p112 = scmp.ne.s32.totalorder %s97, %s111
      %p113 = scmp.eq.s32.totalorder %s24, 0
      %p114 = por %p112, %p113
      %s116 = sadd.s32 %s115, 1
      %p119 = scmp.eq.s32.totalorder %s18, 1
      %p120 = scmp.ne.s32.totalorder %s115, %s117
      %p121 = scmp.eq.s32.totalorder %s18, 0
      %p122 = por %p120, %p121
      %p123 = scmp.ne.s32.totalorder %s115, %s117
      %p124 = scmp.eq.s32.totalorder %s23, 1
      %p125 = por %p123, %p124
      %p126 = scmp.ne.s32.totalorder %s117, %s118
      %p127 = scmp.eq.s32.totalorder %s23, 0
      %p128 = por %p126, %p127
      %p129 = scmp.ne.s32.totalorder %s117, %s118
      %p130 = scmp.eq.s32.totalorder %s24, 1
      %p131 = por %p129, %p130
      %p133 = scmp.ne.s32.totalorder %s118, %s132
      %p134 = scmp.eq.s32.totalorder %s24, 0
      %p135 = por %p133, %p134
      %s136 = ssub.s32 %s18, %s25
      %p137 = scmp.eq.s32.totalorder %s136, 0
      %s139 = sadd.s32 %s138, 1
      %s140 = scalar_select %p137, %s138, %s139
      %p143 = pneg %p137
      %p144 = scmp.eq.s32.totalorder %s18, 1
      %p145 = por %p143, %p144
      %p146 = scmp.ne.s32.totalorder %s138, %s141
      %p147 = scmp.eq.s32.totalorder %s18, 0
      %p148 = por %p146, %p147
      %p149 = scmp.ne.s32.totalorder %s138, %s141
      %p150 = scmp.eq.s32.totalorder %s23, 1
      %p151 = por %p149, %p150
      %p152 = scmp.ne.s32.totalorder %s141, %s142
      %p153 = scmp.eq.s32.totalorder %s23, 0
      %p154 = por %p152, %p153
      %p155 = scmp.ne.s32.totalorder %s141, %s142
      %p156 = scmp.eq.s32.totalorder %s24, 1
      %p157 = por %p155, %p156
      %p159 = scmp.ne.s32.totalorder %s142, %s158
      %p160 = scmp.eq.s32.totalorder %s24, 0
      %p161 = por %p159, %p160
      %p162 = scmp.le.s32.totalorder 1, %s18
      %p163 = scmp.lt.s32.totalorder %s18, 3
      %p164 = pnand %p162, %p163
      %p165 = pneg %p164
      // Predicated region
      $region9: #{tpu_custom_call.1} parent=5 // pred_check
        _
      $region10: #{tpu_custom_call.1} parent=5 // pred_check_branch
        %167 = sbr.rel (%p164) target = $region12
      $region11: #{tpu_custom_call.1} parent=5 // pred_region
        %s168 = ssub.s32 %s18, 1
        // Predicated region
        $region13: #{tpu_custom_call.1} parent=11 // pred_check
          %p169 = pneg %p65
        $region14: #{tpu_custom_call.1} parent=11 // pred_check_branch
          %171 = sbr.rel (%p169) target = $region16
        $region15: #{tpu_custom_call.1} parent=11 // pred_region
          %s173 = ssub.s32 512, 512
          %174 = vsyncadd [#allocation6], %s173
          %s175 = sshll.u32 [#allocation5], 4
          %s176 = int_to_ptr.vmem [resolvable:$true] %s175
          %181 = dma.hbm_to_vmem [thread:$0]  %s1, 512, %s176, [#allocation6], 128, 128, 8
        $region16: #{tpu_custom_call.1} parent=11 // pred_fallthru
          _
        // Predicated region
        $region17: #{tpu_custom_call.1} parent=11 // pred_check
          %p182 = pneg %p86
        $region18: #{tpu_custom_call.1} parent=11 // pred_check_branch
          %184 = sbr.rel (%p182) target = $region20
        $region19: #{tpu_custom_call.1} parent=11 // pred_region
          _
        $region20: #{tpu_custom_call.1} parent=11 // pred_fallthru
          _
        // Predicated region
        $region21: #{tpu_custom_call.1} parent=11 // pred_check
          %p185 = pneg %p107
        $region22: #{tpu_custom_call.1} parent=11 // pred_check_branch
          %187 = sbr.rel (%p185) target = $region24
        $region23: #{tpu_custom_call.1} parent=11 // pred_region
          %s189 = ssub.s32 512, 512
          %190 = vsyncadd [#allocation6], %s189
          %s191 = sshll.u32 [#allocation7], 4
          %s192 = int_to_ptr.vmem [resolvable:$true] %s191
          %197 = dma.hbm_to_vmem [thread:$0]  %s3, 512, %s192, [#allocation6], 128, 128, 8
        $region24: #{tpu_custom_call.1} parent=11 // pred_fallthru
          _
        // Predicated region
        $region25: #{tpu_custom_call.1} parent=11 // pred_check
          %p198 = pneg %p128
        $region26: #{tpu_custom_call.1} parent=11 // pred_check_branch
          %200 = sbr.rel (%p198) target = $region28
        $region27: #{tpu_custom_call.1} parent=11 // pred_region
          _
        $region28: #{tpu_custom_call.1} parent=11 // pred_fallthru
          _
      $region12: #{tpu_custom_call.1} parent=5 // pred_fallthru
        _
      %p201 = scmp.lt.s32.totalorder %s18, 2
      // Predicated region
      $region29: #{tpu_custom_call.1} parent=5 // pred_check
        %p202 = pneg %p201
      $region30: #{tpu_custom_call.1} parent=5 // pred_check_branch
        %204 = sbr.rel (%p202) target = $region32
      $region31: #{tpu_custom_call.1} parent=5 // pred_region
        // Predicated region
        $region33: #{tpu_custom_call.1} parent=31 // pred_check
          %p205 = pneg %p38
        $region34: #{tpu_custom_call.1} parent=31 // pred_check_branch
          %207 = sbr.rel (%p205) target = $region36
        $region35: #{tpu_custom_call.1} parent=31 // pred_region
          %s208 = sand.u32 %s28, 1
          %s209 = scalar_lea.sflag [#allocation3], %s208
          %s210 = sand.u32 %s28, 1
          %s211 = smul.addr %s210, 8
          %s212 = scalar_lea.vmem [#allocation2], %s211
          %s214 = ssub.s32 128, 128
          %215 = vsyncadd %s209, %s214
          %s216 = smul.addr %s18, 128
          %s217 = scalar_lea.hbm %s0, %s216
          %s219 = sshll.u32 %s212, 4
          %s220 = int_to_ptr.vmem [resolvable:$true] %s219
          %222 = dma.hbm_to_vmem [thread:$0]  %s217, 128, %s220, %s209
        $region36: #{tpu_custom_call.1} parent=31 // pred_fallthru
          _
      $region32: #{tpu_custom_call.1} parent=5 // pred_fallthru
        _
      %p223 = scmp.le.s32.totalorder 1, %s18
      %p224 = scmp.lt.s32.totalorder %s18, 3
      %p225 = pnand %p223, %p224
      %p226 = pneg %p225
      // Predicated region
      $region37: #{tpu_custom_call.1} parent=5 // pred_check
        _
      $region38: #{tpu_custom_call.1} parent=5 // pred_check_branch
        %228 = sbr.rel (%p225) target = $region40
      $region39: #{tpu_custom_call.1} parent=5 // pred_region
        %s229 = ssub.s32 %s18, 1
        %s230 = sand.u32 %s31, 1
        %s231 = scalar_lea.sflag [#allocation3], %s230
        %s232 = sand.u32 %s31, 1
        %s233 = smul.addr %s232, 8
        %s234 = scalar_lea.vmem [#allocation2], %s233
        // Predicated region
        $region41: #{tpu_custom_call.1} parent=39 // pred_check
          %p235 = pneg %p44
        $region42: #{tpu_custom_call.1} parent=39 // pred_check_branch
          %237 = sbr.rel (%p235) target = $region44
        $region43: #{tpu_custom_call.1} parent=39 // pred_region
          %238 = dma.done %s231, 128
        $region44: #{tpu_custom_call.1} parent=39 // pred_fallthru
          _
        // Predicated region
        $region45: #{tpu_custom_call.1} parent=39 // pred_check
          %p239 = pneg %p65
        $region46: #{tpu_custom_call.1} parent=39 // pred_check_branch
          %241 = sbr.rel (%p239) target = $region48
        $region47: #{tpu_custom_call.1} parent=39 // pred_region
          %242 = dma.done [#allocation6], 512
        $region48: #{tpu_custom_call.1} parent=39 // pred_fallthru
          _
        // Predicated region
        $region49: #{tpu_custom_call.1} parent=39 // pred_check
          %p243 = pneg %p107
        $region50: #{tpu_custom_call.1} parent=39 // pred_check_branch
          %245 = sbr.rel (%p243) target = $region52
        $region51: #{tpu_custom_call.1} parent=39 // pred_region
          %246 = dma.done [#allocation6], 512
        $region52: #{tpu_custom_call.1} parent=39 // pred_fallthru
          _
        %s247 = sand.u32 %s31, 1
        %s248 = scalar_lea.sflag [#allocation3], %s247
        %s249 = sand.u32 %s31, 1
        %s250 = smul.addr %s249, 8
        %s251 = scalar_lea.vmem [#allocation2], %s250
        %p252 = pneg %p44
        %p253 = pneg %p41
        %p254 = pneg %p65
        %p255 = pneg %p62
        %p256 = pneg %p86
        %p257 = pneg %p83
        %p258 = pneg %p107
        %p259 = pneg %p104
        %p260 = pneg %p128
        %p261 = pneg %p125
        %p262 = pneg %p154
        %p263 = pneg %p151
        %s264 = sand.u32 %s141, 1
        %s265 = scalar_lea.sflag [#allocation4], %s264
        %s266 = sand.u32 %s141, 1
        %s267 = smul.addr %s266, 8
        %s268 = scalar_lea.vmem [#allocation8], %s267
        %v269 = vld [vmem:[%s234] sm:$0xff]
        %v270 = vld [vmem:[#allocation5] sm:$0xff]
        %v271 = vld [vmem:[#allocation5 + $0x8] sm:$0xff]
        %v272 = vld [vmem:[#allocation5 + $0x10] sm:$0xff]
        %v273 = vld [vmem:[#allocation5 + $0x18] sm:$0xff]
        %v274 = vld [vmem:[%s2] sm:$0x1]
        %v276 = vlaneseq
        %v277 = vshrl.u32 %v276, 7
        %v278 = vsub.s32 0, %v277
        %v279 = vrot.slane %v274, %v278
        %vm281 = vcmask 261120
        %v283 = vsel %vm281, %v269, 0
        %285 = vmatprep.subr.mxu0 0.0
        %286 = vmatpush1.msra.mxu0 %v270
        %287 = vmatprep.subr.mxu0 0.0
        %288 = vmatpush1.msra.mxu0 %v271
        %289 = vmatprep.subr.mxu0 0.0
        %290 = vmatpush1.msra.mxu0 %v272
        %291 = vmatprep.subr.mxu0 0.0
        %292 = vmatpush1.msra.mxu0 %v273
        %293 = vmatprep.subr.mxu0 0.0
        %294 = vmatpush1.msra.mxu0 0.0
        %295 = vmatprep.subr.mxu0 0.0
        %296 = vmatpush1.msra.mxu0 0.0
        %297 = vmatprep.subr.mxu0 0.0
        %298 = vmatpush1.msra.mxu0 0.0
        %299 = vmatprep.subr.mxu0 0.0
        %300 = vmatpush1.msra.mxu0 0.0
        %301 = vmatprep.subr.mxu0 0.0
        %302 = vmatpush1.msra.mxu0 0.0
        %303 = vmatprep.subr.mxu0 0.0
        %304 = vmatpush1.msra.mxu0 0.0
        %305 = vmatprep.subr.mxu0 0.0
        %306 = vmatpush1.msra.mxu0 0.0
        %307 = vmatprep.subr.mxu0 0.0
        %308 = vmatpush1.msra.mxu0 0.0
        %309 = vmatprep.subr.mxu0 0.0
        %310 = vmatpush1.msra.mxu0 0.0
        %311 = vmatprep.subr.mxu0 0.0
        %312 = vmatpush1.msra.mxu0 0.0
        %313 = vmatprep.subr.mxu0 0.0
        %314 = vmatpush1.msra.mxu0 0.0
        %315 = vmatprep.subr.mxu0 0.0
        %316 = vmatpush1.msra.mxu0 0.0
        %317 = vmatprep.subr.mxu0 0.0
        %318 = vmatpush1.msra.mxu0 0.0
        %319 = vmatprep.subr.mxu0 0.0
        %320 = vmatpush1.msra.mxu0 0.0
        %321 = vmatprep.subr.mxu0 0.0
        %322 = vmatpush1.msra.mxu0 0.0
        %323 = vmatprep.subr.mxu0 0.0
        %324 = vmatpush1.msra.mxu0 0.0
        %325 = vmatprep.subr.mxu0 0.0
        %326 = vmatpush1.msra.mxu0 0.0
        %327 = vmatprep.subr.mxu0 0.0
        %328 = vmatpush1.msra.mxu0 0.0
        %329 = vmatprep.subr.mxu0 0.0
        %330 = vmatpush1.msra.mxu0 0.0
        %331 = vmatprep.subr.mxu0 0.0
        %332 = vmatpush1.msra.mxu0 0.0
        %333 = vmatprep.subr.mxu0 0.0
        %334 = vmatpush1.msra.mxu0 0.0
        %335 = vmatprep.subr.mxu0 0.0
        %336 = vmatpush1.msra.mxu0 0.0
        %337 = vmatprep.subr.mxu0 0.0
        %338 = vmatpush1.msra.mxu0 0.0
        %339 = vmatprep.subr.mxu0 0.0
        %340 = vmatpush1.msra.mxu0 0.0
        %341 = vmatprep.subr.mxu0 0.0
        %342 = vmatpush1.msra.mxu0 0.0
        %343 = vmatprep.subr.mxu0 0.0
        %344 = vmatpush1.msra.mxu0 0.0
        %345 = vmatprep.subr.mxu0 0.0
        %346 = vmatpush1.msra.mxu0 0.0
        %347 = vmatprep.subr.mxu0 0.0
        %348 = vmatpush1.msra.mxu0 0.0
        %349 = vmatprep.mubr.f32.mxu0 0.0
        %350 = vmatmul.mubr.f32.gmra.mrb[0].mxu0 %v283
        %v351 = vpop.f32.mrb[0].mxu0
        %v352 = vadd.f32 %v279, %v351
        %v353 = vpop.f32.mrb[0].mxu0
        %354 = vdwg.mxu0
        %356 = vrot.lane.b32.xlu0 %v352, 120
        %v357 = vpop.permute.xlu0 %356
        %358 = vrot.lane.b32.xlu0 %v352, 112
        %v359 = vpop.permute.xlu0 %358
        %360 = vrot.lane.b32.xlu0 %v352, 104
        %v361 = vpop.permute.xlu0 %360
        %362 = vrot.lane.b32.xlu0 %v352, 96
        %v363 = vpop.permute.xlu0 %362
        %364 = vrot.lane.b32.xlu0 %v357, 96
        %v365 = vpop.permute.xlu0 %364
        %366 = vrot.lane.b32.xlu0 %v359, 96
        %v367 = vpop.permute.xlu0 %366
        %368 = vrot.lane.b32.xlu0 %v361, 96
        %v369 = vpop.permute.xlu0 %368
        %374 = vxpose.xlu0.b32.start [1/16] %v363, 128
        %375 = vxpose.xlu0.b32.cont [2/16] 0.0, 128
        %376 = vxpose.xlu0.b32.cont [3/16] 0.0, 128
        %377 = vxpose.xlu0.b32.cont [4/16] 0.0, 128
        %378 = vxpose.xlu0.b32.cont [5/16] 0.0, 128
        %379 = vxpose.xlu0.b32.cont [6/16] 0.0, 128
        %380 = vxpose.xlu0.b32.cont [7/16] 0.0, 128
        %381 = vxpose.xlu0.b32.cont [8/16] 0.0, 128
        %382 = vxpose.xlu0.b32.cont [9/16] 0.0, 128
        %383 = vxpose.xlu0.b32.cont [10/16] 0.0, 128
        %384 = vxpose.xlu0.b32.cont [11/16] 0.0, 128
        %385 = vxpose.xlu0.b32.cont [12/16] 0.0, 128
        %386 = vxpose.xlu0.b32.cont [13/16] 0.0, 128
        %387 = vxpose.xlu0.b32.cont [14/16] 0.0, 128
        %388 = vxpose.xlu0.b32.cont [15/16] 0.0, 128
        %389 = vxpose.xlu0.b32.end [16/16] 0.0, 128
        %v390 = vpop.trf.xlu0
        %v391 = vpop.trf.xlu0
        %v392 = vpop.trf.xlu0
        %v393 = vpop.trf.xlu0
        %v394 = vpop.trf.xlu0
        %v395 = vpop.trf.xlu0
        %v396 = vpop.trf.xlu0
        %v397 = vpop.trf.xlu0
        %v398 = vpop.trf.xlu0
        %v399 = vpop.trf.xlu0
        %v400 = vpop.trf.xlu0
        %v401 = vpop.trf.xlu0
        %v402 = vpop.trf.xlu0
        %v403 = vpop.trf.xlu0
        %v404 = vpop.trf.xlu0
        %v405 = vpop.trf.xlu0
        %406 = vxpose.xlu0.b32.start [1/16] %v365, 128
        %407 = vxpose.xlu0.b32.cont [2/16] 0.0, 128
        %408 = vxpose.xlu0.b32.cont [3/16] 0.0, 128
        %409 = vxpose.xlu0.b32.cont [4/16] 0.0, 128
        %410 = vxpose.xlu0.b32.cont [5/16] 0.0, 128
        %411 = vxpose.xlu0.b32.cont [6/16] 0.0, 128
        %412 = vxpose.xlu0.b32.cont [7/16] 0.0, 128
        %413 = vxpose.xlu0.b32.cont [8/16] 0.0, 128
        %414 = vxpose.xlu0.b32.cont [9/16] 0.0, 128
        %415 = vxpose.xlu0.b32.cont [10/16] 0.0, 128
        %416 = vxpose.xlu0.b32.cont [11/16] 0.0, 128
        %417 = vxpose.xlu0.b32.cont [12/16] 0.0, 128
        %418 = vxpose.xlu0.b32.cont [13/16] 0.0, 128
        %419 = vxpose.xlu0.b32.cont [14/16] 0.0, 128
        %420 = vxpose.xlu0.b32.cont [15/16] 0.0, 128
        %421 = vxpose.xlu0.b32.end [16/16] 0.0, 128
        %v422 = vpop.trf.xlu0
        %v423 = vpop.trf.xlu0
        %v424 = vpop.trf.xlu0
        %v425 = vpop.trf.xlu0
        %v426 = vpop.trf.xlu0
        %v427 = vpop.trf.xlu0
        %v428 = vpop.trf.xlu0
        %v429 = vpop.trf.xlu0
        %v430 = vpop.trf.xlu0
        %v431 = vpop.trf.xlu0
        %v432 = vpop.trf.xlu0
        %v433 = vpop.trf.xlu0
        %v434 = vpop.trf.xlu0
        %v435 = vpop.trf.xlu0
        %v436 = vpop.trf.xlu0
        %v437 = vpop.trf.xlu0
        %438 = vxpose.xlu0.b32.start [1/16] %v367, 128
        %439 = vxpose.xlu0.b32.cont [2/16] 0.0, 128
        %440 = vxpose.xlu0.b32.cont [3/16] 0.0, 128
        %441 = vxpose.xlu0.b32.cont [4/16] 0.0, 128
        %442 = vxpose.xlu0.b32.cont [5/16] 0.0, 128
        %443 = vxpose.xlu0.b32.cont [6/16] 0.0, 128
        %444 = vxpose.xlu0.b32.cont [7/16] 0.0, 128
        %445 = vxpose.xlu0.b32.cont [8/16] 0.0, 128
        %446 = vxpose.xlu0.b32.cont [9/16] 0.0, 128
        %447 = vxpose.xlu0.b32.cont [10/16] 0.0, 128
        %448 = vxpose.xlu0.b32.cont [11/16] 0.0, 128
        %449 = vxpose.xlu0.b32.cont [12/16] 0.0, 128
        %450 = vxpose.xlu0.b32.cont [13/16] 0.0, 128
        %451 = vxpose.xlu0.b32.cont [14/16] 0.0, 128
        %452 = vxpose.xlu0.b32.cont [15/16] 0.0, 128
        %453 = vxpose.xlu0.b32.end [16/16] 0.0, 128
        %v454 = vpop.trf.xlu0
        %v455 = vpop.trf.xlu0
        %v456 = vpop.trf.xlu0
        %v457 = vpop.trf.xlu0
        %v458 = vpop.trf.xlu0
        %v459 = vpop.trf.xlu0
        %v460 = vpop.trf.xlu0
        %v461 = vpop.trf.xlu0
        %v462 = vpop.trf.xlu0
        %v463 = vpop.trf.xlu0
        %v464 = vpop.trf.xlu0
        %v465 = vpop.trf.xlu0
        %v466 = vpop.trf.xlu0
        %v467 = vpop.trf.xlu0
        %v468 = vpop.trf.xlu0
        %v469 = vpop.trf.xlu0
        %470 = vxpose.xlu0.b32.start [1/16] %v369, 128
        %471 = vxpose.xlu0.b32.cont [2/16] 0.0, 128
        %472 = vxpose.xlu0.b32.cont [3/16] 0.0, 128
        %473 = vxpose.xlu0.b32.cont [4/16] 0.0, 128
        %474 = vxpose.xlu0.b32.cont [5/16] 0.0, 128
        %475 = vxpose.xlu0.b32.cont [6/16] 0.0, 128
        %476 = vxpose.xlu0.b32.cont [7/16] 0.0, 128
        %477 = vxpose.xlu0.b32.cont [8/16] 0.0, 128
        %478 = vxpose.xlu0.b32.cont [9/16] 0.0, 128
        %479 = vxpose.xlu0.b32.cont [10/16] 0.0, 128
        %480 = vxpose.xlu0.b32.cont [11/16] 0.0, 128
        %481 = vxpose.xlu0.b32.cont [12/16] 0.0, 128
        %482 = vxpose.xlu0.b32.cont [13/16] 0.0, 128
        %483 = vxpose.xlu0.b32.cont [14/16] 0.0, 128
        %484 = vxpose.xlu0.b32.cont [15/16] 0.0, 128
        %485 = vxpose.xlu0.b32.end [16/16] 0.0, 128
        %v486 = vpop.trf.xlu0
        %v487 = vpop.trf.xlu0
        %v488 = vpop.trf.xlu0
        %v489 = vpop.trf.xlu0
        %v490 = vpop.trf.xlu0
        %v491 = vpop.trf.xlu0
        %v492 = vpop.trf.xlu0
        %v493 = vpop.trf.xlu0
        %v494 = vpop.trf.xlu0
        %v495 = vpop.trf.xlu0
        %v496 = vpop.trf.xlu0
        %v497 = vpop.trf.xlu0
        %v498 = vpop.trf.xlu0
        %v499 = vpop.trf.xlu0
        %v500 = vpop.trf.xlu0
        %v501 = vpop.trf.xlu0
        %vm502 = vcmask 64512
        %v503 = vsel %vm502, %v352, 0
        %505 = vmatprep.subr.mxu0 0.0
        %506 = vmatpush1.msra.mxu0 %v390
        %507 = vmatprep.subr.mxu0 0.0
        %508 = vmatpush1.msra.mxu0 0.0
        %509 = vmatprep.subr.mxu0 0.0
        %510 = vmatpush1.msra.mxu0 0.0
        %511 = vmatprep.subr.mxu0 0.0
        %512 = vmatpush1.msra.mxu0 0.0
        %513 = vmatprep.subr.mxu0 0.0
        %514 = vmatpush1.msra.mxu0 0.0
        %515 = vmatprep.subr.mxu0 0.0
        %516 = vmatpush1.msra.mxu0 0.0
        %517 = vmatprep.subr.mxu0 0.0
        %518 = vmatpush1.msra.mxu0 0.0
        %519 = vmatprep.subr.mxu0 0.0
        %520 = vmatpush1.msra.mxu0 0.0
        %521 = vmatprep.subr.mxu0 0.0
        %522 = vmatpush1.msra.mxu0 0.0
        %523 = vmatprep.subr.mxu0 0.0
        %524 = vmatpush1.msra.mxu0 0.0
        %525 = vmatprep.subr.mxu0 0.0
        %526 = vmatpush1.msra.mxu0 0.0
        %527 = vmatprep.subr.mxu0 0.0
        %528 = vmatpush1.msra.mxu0 0.0
        %529 = vmatprep.subr.mxu0 0.0
        %530 = vmatpush1.msra.mxu0 0.0
        %531 = vmatprep.subr.mxu0 0.0
        %532 = vmatpush1.msra.mxu0 0.0
        %533 = vmatprep.subr.mxu0 0.0
        %534 = vmatpush1.msra.mxu0 0.0
        %535 = vmatprep.subr.mxu0 0.0
        %536 = vmatpush1.msra.mxu0 0.0
        %537 = vmatprep.subr.mxu0 0.0
        %538 = vmatpush1.msra.mxu0 0.0
        %539 = vmatprep.subr.mxu0 0.0
        %540 = vmatpush1.msra.mxu0 0.0
        %541 = vmatprep.subr.mxu0 0.0
        %542 = vmatpush1.msra.mxu0 0.0
        %543 = vmatprep.subr.mxu0 0.0
        %544 = vmatpush1.msra.mxu0 0.0
        %545 = vmatprep.subr.mxu0 0.0
        %546 = vmatpush1.msra.mxu0 0.0
        %547 = vmatprep.subr.mxu0 0.0
        %548 = vmatpush1.msra.mxu0 0.0
        %549 = vmatprep.subr.mxu0 0.0
        %550 = vmatpush1.msra.mxu0 0.0
        %551 = vmatprep.subr.mxu0 0.0
        %552 = vmatpush1.msra.mxu0 0.0
        %553 = vmatprep.subr.mxu0 0.0
        %554 = vmatpush1.msra.mxu0 0.0
        %555 = vmatprep.subr.mxu0 0.0
        %556 = vmatpush1.msra.mxu0 0.0
        %557 = vmatprep.subr.mxu0 0.0
        %558 = vmatpush1.msra.mxu0 0.0
        %559 = vmatprep.subr.mxu0 0.0
        %560 = vmatpush1.msra.mxu0 0.0
        %561 = vmatprep.subr.mxu0 0.0
        %562 = vmatpush1.msra.mxu0 0.0
        %563 = vmatprep.subr.mxu0 0.0
        %564 = vmatpush1.msra.mxu0 0.0
        %565 = vmatprep.subr.mxu0 0.0
        %566 = vmatpush1.msra.mxu0 0.0
        %567 = vmatprep.subr.mxu0 0.0
        %568 = vmatpush1.msra.mxu0 0.0
        %569 = vmatprep.mubr.f32.mxu0 0.0
        %570 = vmatmul.mubr.f32.gmra.mrb[0].mxu0 %v503
        %v571 = vpop.f32.mrb[0].mxu0
        %v572 = vadd.f32 0.0, %v571
        %v573 = vpop.f32.mrb[0].mxu0
        %574 = vdwg.mxu0
        %v575 = vsel %vm502, %v357, 0
        %577 = vmatprep.subr.mxu0 0.0
        %578 = vmatpush1.msra.mxu0 %v422
        %579 = vmatprep.subr.mxu0 0.0
        %580 = vmatpush1.msra.mxu0 0.0
        %581 = vmatprep.subr.mxu0 0.0
        %582 = vmatpush1.msra.mxu0 0.0
        %583 = vmatprep.subr.mxu0 0.0
        %584 = vmatpush1.msra.mxu0 0.0
        %585 = vmatprep.subr.mxu0 0.0
        %586 = vmatpush1.msra.mxu0 0.0
        %587 = vmatprep.subr.mxu0 0.0
        %588 = vmatpush1.msra.mxu0 0.0
        %589 = vmatprep.subr.mxu0 0.0
        %590 = vmatpush1.msra.mxu0 0.0
        %591 = vmatprep.subr.mxu0 0.0
        %592 = vmatpush1.msra.mxu0 0.0
        %593 = vmatprep.subr.mxu0 0.0
        %594 = vmatpush1.msra.mxu0 0.0
        %595 = vmatprep.subr.mxu0 0.0
        %596 = vmatpush1.msra.mxu0 0.0
        %597 = vmatprep.subr.mxu0 0.0
        %598 = vmatpush1.msra.mxu0 0.0
        %599 = vmatprep.subr.mxu0 0.0
        %600 = vmatpush1.msra.mxu0 0.0
        %601 = vmatprep.subr.mxu0 0.0
        %602 = vmatpush1.msra.mxu0 0.0
        %603 = vmatprep.subr.mxu0 0.0
        %604 = vmatpush1.msra.mxu0 0.0
        %605 = vmatprep.subr.mxu0 0.0
        %606 = vmatpush1.msra.mxu0 0.0
        %607 = vmatprep.subr.mxu0 0.0
        %608 = vmatpush1.msra.mxu0 0.0
        %609 = vmatprep.subr.mxu0 0.0
        %610 = vmatpush1.msra.mxu0 0.0
        %611 = vmatprep.subr.mxu0 0.0
        %612 = vmatpush1.msra.mxu0 0.0
        %613 = vmatprep.subr.mxu0 0.0
        %614 = vmatpush1.msra.mxu0 0.0
        %615 = vmatprep.subr.mxu0 0.0
        %616 = vmatpush1.msra.mxu0 0.0
        %617 = vmatprep.subr.mxu0 0.0
        %618 = vmatpush1.msra.mxu0 0.0
        %619 = vmatprep.subr.mxu0 0.0
        %620 = vmatpush1.msra.mxu0 0.0
        %621 = vmatprep.subr.mxu0 0.0
        %622 = vmatpush1.msra.mxu0 0.0
        %623 = vmatprep.subr.mxu0 0.0
        %624 = vmatpush1.msra.mxu0 0.0
        %625 = vmatprep.subr.mxu0 0.0
        %626 = vmatpush1.msra.mxu0 0.0
        %627 = vmatprep.subr.mxu0 0.0
        %628 = vmatpush1.msra.mxu0 0.0
        %629 = vmatprep.subr.mxu0 0.0
        %630 = vmatpush1.msra.mxu0 0.0
        %631 = vmatprep.subr.mxu0 0.0
        %632 = vmatpush1.msra.mxu0 0.0
        %633 = vmatprep.subr.mxu0 0.0
        %634 = vmatpush1.msra.mxu0 0.0
        %635 = vmatprep.subr.mxu0 0.0
        %636 = vmatpush1.msra.mxu0 0.0
        %637 = vmatprep.subr.mxu0 0.0
        %638 = vmatpush1.msra.mxu0 0.0
        %639 = vmatprep.subr.mxu0 0.0
        %640 = vmatpush1.msra.mxu0 0.0
        %641 = vmatprep.mubr.f32.mxu0 0.0
        %642 = vmatmul.mubr.f32.gmra.mrb[0].mxu0 %v575
        %v643 = vpop.f32.mrb[0].mxu0
        %v644 = vadd.f32 0.0, %v643
        %v645 = vpop.f32.mrb[0].mxu0
        %646 = vdwg.mxu0
        %v647 = vsel %vm502, %v359, 0
        %649 = vmatprep.subr.mxu0 0.0
        %650 = vmatpush1.msra.mxu0 %v454
        %651 = vmatprep.subr.mxu0 0.0
        %652 = vmatpush1.msra.mxu0 0.0
        %653 = vmatprep.subr.mxu0 0.0
        %654 = vmatpush1.msra.mxu0 0.0
        %655 = vmatprep.subr.mxu0 0.0
        %656 = vmatpush1.msra.mxu0 0.0
        %657 = vmatprep.subr.mxu0 0.0
        %658 = vmatpush1.msra.mxu0 0.0
        %659 = vmatprep.subr.mxu0 0.0
        %660 = vmatpush1.msra.mxu0 0.0
        %661 = vmatprep.subr.mxu0 0.0
        %662 = vmatpush1.msra.mxu0 0.0
        %663 = vmatprep.subr.mxu0 0.0
        %664 = vmatpush1.msra.mxu0 0.0
        %665 = vmatprep.subr.mxu0 0.0
        %666 = vmatpush1.msra.mxu0 0.0
        %667 = vmatprep.subr.mxu0 0.0
        %668 = vmatpush1.msra.mxu0 0.0
        %669 = vmatprep.subr.mxu0 0.0
        %670 = vmatpush1.msra.mxu0 0.0
        %671 = vmatprep.subr.mxu0 0.0
        %672 = vmatpush1.msra.mxu0 0.0
        %673 = vmatprep.subr.mxu0 0.0
        %674 = vmatpush1.msra.mxu0 0.0
        %675 = vmatprep.subr.mxu0 0.0
        %676 = vmatpush1.msra.mxu0 0.0
        %677 = vmatprep.subr.mxu0 0.0
        %678 = vmatpush1.msra.mxu0 0.0
        %679 = vmatprep.subr.mxu0 0.0
        %680 = vmatpush1.msra.mxu0 0.0
        %681 = vmatprep.subr.mxu0 0.0
        %682 = vmatpush1.msra.mxu0 0.0
        %683 = vmatprep.subr.mxu0 0.0
        %684 = vmatpush1.msra.mxu0 0.0
        %685 = vmatprep.subr.mxu0 0.0
        %686 = vmatpush1.msra.mxu0 0.0
        %687 = vmatprep.subr.mxu0 0.0
        %688 = vmatpush1.msra.mxu0 0.0
        %689 = vmatprep.subr.mxu0 0.0
        %690 = vmatpush1.msra.mxu0 0.0
        %691 = vmatprep.subr.mxu0 0.0
        %692 = vmatpush1.msra.mxu0 0.0
        %693 = vmatprep.subr.mxu0 0.0
        %694 = vmatpush1.msra.mxu0 0.0
        %695 = vmatprep.subr.mxu0 0.0
        %696 = vmatpush1.msra.mxu0 0.0
        %697 = vmatprep.subr.mxu0 0.0
        %698 = vmatpush1.msra.mxu0 0.0
        %699 = vmatprep.subr.mxu0 0.0
        %700 = vmatpush1.msra.mxu0 0.0
        %701 = vmatprep.subr.mxu0 0.0
        %702 = vmatpush1.msra.mxu0 0.0
        %703 = vmatprep.subr.mxu0 0.0
        %704 = vmatpush1.msra.mxu0 0.0
        %705 = vmatprep.subr.mxu0 0.0
        %706 = vmatpush1.msra.mxu0 0.0
        %707 = vmatprep.subr.mxu0 0.0
        %708 = vmatpush1.msra.mxu0 0.0
        %709 = vmatprep.subr.mxu0 0.0
        %710 = vmatpush1.msra.mxu0 0.0
        %711 = vmatprep.subr.mxu0 0.0
        %712 = vmatpush1.msra.mxu0 0.0
        %713 = vmatprep.mubr.f32.mxu0 0.0
        %714 = vmatmul.mubr.f32.gmra.mrb[0].mxu0 %v647
        %v715 = vpop.f32.mrb[0].mxu0
        %v716 = vadd.f32 0.0, %v715
        %v717 = vpop.f32.mrb[0].mxu0
        %718 = vdwg.mxu0
        %v719 = vsel %vm502, %v361, 0
        %721 = vmatprep.subr.mxu0 0.0
        %722 = vmatpush1.msra.mxu0 %v486
        %723 = vmatprep.subr.mxu0 0.0
        %724 = vmatpush1.msra.mxu0 0.0
        %725 = vmatprep.subr.mxu0 0.0
        %726 = vmatpush1.msra.mxu0 0.0
        %727 = vmatprep.subr.mxu0 0.0
        %728 = vmatpush1.msra.mxu0 0.0
        %729 = vmatprep.subr.mxu0 0.0
        %730 = vmatpush1.msra.mxu0 0.0
        %731 = vmatprep.subr.mxu0 0.0
        %732 = vmatpush1.msra.mxu0 0.0
        %733 = vmatprep.subr.mxu0 0.0
        %734 = vmatpush1.msra.mxu0 0.0
        %735 = vmatprep.subr.mxu0 0.0
        %736 = vmatpush1.msra.mxu0 0.0
        %737 = vmatprep.subr.mxu0 0.0
        %738 = vmatpush1.msra.mxu0 0.0
        %739 = vmatprep.subr.mxu0 0.0
        %740 = vmatpush1.msra.mxu0 0.0
        %741 = vmatprep.subr.mxu0 0.0
        %742 = vmatpush1.msra.mxu0 0.0
        %743 = vmatprep.subr.mxu0 0.0
        %744 = vmatpush1.msra.mxu0 0.0
        %745 = vmatprep.subr.mxu0 0.0
        %746 = vmatpush1.msra.mxu0 0.0
        %747 = vmatprep.subr.mxu0 0.0
        %748 = vmatpush1.msra.mxu0 0.0
        %749 = vmatprep.subr.mxu0 0.0
        %750 = vmatpush1.msra.mxu0 0.0
        %751 = vmatprep.subr.mxu0 0.0
        %752 = vmatpush1.msra.mxu0 0.0
        %753 = vmatprep.subr.mxu0 0.0
        %754 = vmatpush1.msra.mxu0 0.0
        %755 = vmatprep.subr.mxu0 0.0
        %756 = vmatpush1.msra.mxu0 0.0
        %757 = vmatprep.subr.mxu0 0.0
        %758 = vmatpush1.msra.mxu0 0.0
        %759 = vmatprep.subr.mxu0 0.0
        %760 = vmatpush1.msra.mxu0 0.0
        %761 = vmatprep.subr.mxu0 0.0
        %762 = vmatpush1.msra.mxu0 0.0
        %763 = vmatprep.subr.mxu0 0.0
        %764 = vmatpush1.msra.mxu0 0.0
        %765 = vmatprep.subr.mxu0 0.0
        %766 = vmatpush1.msra.mxu0 0.0
        %767 = vmatprep.subr.mxu0 0.0
        %768 = vmatpush1.msra.mxu0 0.0
        %769 = vmatprep.subr.mxu0 0.0
        %770 = vmatpush1.msra.mxu0 0.0
        %771 = vmatprep.subr.mxu0 0.0
        %772 = vmatpush1.msra.mxu0 0.0
        %773 = vmatprep.subr.mxu0 0.0
        %774 = vmatpush1.msra.mxu0 0.0
        %775 = vmatprep.subr.mxu0 0.0
        %776 = vmatpush1.msra.mxu0 0.0
        %777 = vmatprep.subr.mxu0 0.0
        %778 = vmatpush1.msra.mxu0 0.0
        %779 = vmatprep.subr.mxu0 0.0
        %780 = vmatpush1.msra.mxu0 0.0
        %781 = vmatprep.subr.mxu0 0.0
        %782 = vmatpush1.msra.mxu0 0.0
        %783 = vmatprep.subr.mxu0 0.0
        %784 = vmatpush1.msra.mxu0 0.0
        %785 = vmatprep.mubr.f32.mxu0 0.0
        %786 = vmatmul.mubr.f32.gmra.mrb[0].mxu0 %v719
        %v787 = vpop.f32.mrb[0].mxu0
        %v788 = vadd.f32 0.0, %v787
        %v789 = vpop.f32.mrb[0].mxu0
        %790 = vdwg.mxu0
        %v791 = vsel %vm502, %v572, -inf
        %792 = vmax.xlane.f32.xlu0 %v791
        %v793 = vpop.xlane.xlu0 %792
        %v794 = vsel %vm502, %v644, -inf
        %795 = vmax.xlane.f32.xlu0 %v794
        %v796 = vpop.xlane.xlu0 %795
        %v797 = vsel %vm502, %v716, -inf
        %798 = vmax.xlane.f32.xlu0 %v797
        %v799 = vpop.xlane.xlu0 %798
        %v800 = vsel %vm502, %v788, -inf
        %801 = vmax.xlane.f32.xlu0 %v800
        %v802 = vpop.xlane.xlu0 %801
        %v803 = vsub.f32 -inf, %v793
        %v804 = vsub.f32 -inf, %v796
        %v805 = vsub.f32 -inf, %v799
        %v806 = vsub.f32 -inf, %v802
        %v807 = vmul.f32 %v803, 1.442695
        %v808 = vpow.pop %v807
        %v809 = vmul.f32 %v804, 1.442695
        %v810 = vpow.pop %v809
        %v811 = vmul.f32 %v805, 1.442695
        %v812 = vpow.pop %v811
        %v813 = vmul.f32 %v806, 1.442695
        %v814 = vpow.pop %v813
        %v815 = vsub.f32 %v572, %v793
        %v816 = vsub.f32 %v644, %v796
        %v817 = vsub.f32 %v716, %v799
        %v818 = vsub.f32 %v788, %v802
        %v819 = vmul.f32 %v815, 1.442695
        %v820 = vpow.pop %v819
        %v821 = vmul.f32 %v816, 1.442695
        %v822 = vpow.pop %v821
        %v823 = vmul.f32 %v817, 1.442695
        %v824 = vpow.pop %v823
        %v825 = vmul.f32 %v818, 1.442695
        %v826 = vpow.pop %v825
        %v827 = vmul.f32 %v808, 0.0
        %v828 = vmul.f32 %v810, 0.0
        %v829 = vmul.f32 %v812, 0.0
        %v830 = vmul.f32 %v814, 0.0
        %v831 = vsel %vm502, %v820, 0.0
        %832 = vadd.xlane.f32.xlu0 %v831
        %v833 = vpop.xlane.xlu0 %832
        %v834 = vsel %vm502, %v822, 0.0
        %835 = vadd.xlane.f32.xlu0 %v834
        %v836 = vpop.xlane.xlu0 %835
        %v837 = vsel %vm502, %v824, 0.0
        %838 = vadd.xlane.f32.xlu0 %v837
        %v839 = vpop.xlane.xlu0 %838
        %v840 = vsel %vm502, %v826, 0.0
        %841 = vadd.xlane.f32.xlu0 %v840
        %v842 = vpop.xlane.xlu0 %841
        %v843 = vadd.f32 %v827, %v833
        %v844 = vadd.f32 %v828, %v836
        %v845 = vadd.f32 %v829, %v839
        %v846 = vadd.f32 %v830, %v842
        %847 = vrot.lane.b32.xlu0 %v352, 64
        %v848 = vpop.permute.xlu0 %847
        %v851 = vsel %vm502, %v820, 0
        %853 = vmatprep.subr.mxu0 0.0
        %854 = vmatpush1.msra.mxu0 %v848
        %855 = vmatprep.subr.mxu0 0.0
        %856 = vmatpush1.msra.mxu0 0.0
        %857 = vmatprep.subr.mxu0 0.0
        %858 = vmatpush1.msra.mxu0 0.0
        %859 = vmatprep.subr.mxu0 0.0
        %860 = vmatpush1.msra.mxu0 0.0
        %861 = vmatprep.subr.mxu0 0.0
        %862 = vmatpush1.msra.mxu0 0.0
        %863 = vmatprep.subr.mxu0 0.0
        %864 = vmatpush1.msra.mxu0 0.0
        %865 = vmatprep.subr.mxu0 0.0
        %866 = vmatpush1.msra.mxu0 0.0
        %867 = vmatprep.subr.mxu0 0.0
        %868 = vmatpush1.msra.mxu0 0.0
        %869 = vmatprep.subr.mxu0 0.0
        %870 = vmatpush1.msra.mxu0 0.0
        %871 = vmatprep.subr.mxu0 0.0
        %872 = vmatpush1.msra.mxu0 0.0
        %873 = vmatprep.subr.mxu0 0.0
        %874 = vmatpush1.msra.mxu0 0.0
        %875 = vmatprep.subr.mxu0 0.0
        %876 = vmatpush1.msra.mxu0 0.0
        %877 = vmatprep.subr.mxu0 0.0
        %878 = vmatpush1.msra.mxu0 0.0
        %879 = vmatprep.subr.mxu0 0.0
        %880 = vmatpush1.msra.mxu0 0.0
        %881 = vmatprep.subr.mxu0 0.0
        %882 = vmatpush1.msra.mxu0 0.0
        %883 = vmatprep.subr.mxu0 0.0
        %884 = vmatpush1.msra.mxu0 0.0
        %885 = vmatprep.subr.mxu0 0.0
        %886 = vmatpush1.msra.mxu0 0.0
        %887 = vmatprep.subr.mxu0 0.0
        %888 = vmatpush1.msra.mxu0 0.0
        %889 = vmatprep.subr.mxu0 0.0
        %890 = vmatpush1.msra.mxu0 0.0
        %891 = vmatprep.subr.mxu0 0.0
        %892 = vmatpush1.msra.mxu0 0.0
        %893 = vmatprep.subr.mxu0 0.0
        %894 = vmatpush1.msra.mxu0 0.0
        %895 = vmatprep.subr.mxu0 0.0
        %896 = vmatpush1.msra.mxu0 0.0
        %897 = vmatprep.subr.mxu0 0.0
        %898 = vmatpush1.msra.mxu0 0.0
        %899 = vmatprep.subr.mxu0 0.0
        %900 = vmatpush1.msra.mxu0 0.0
        %901 = vmatprep.subr.mxu0 0.0
        %902 = vmatpush1.msra.mxu0 0.0
        %903 = vmatprep.subr.mxu0 0.0
        %904 = vmatpush1.msra.mxu0 0.0
        %905 = vmatprep.subr.mxu0 0.0
        %906 = vmatpush1.msra.mxu0 0.0
        %907 = vmatprep.subr.mxu0 0.0
        %908 = vmatpush1.msra.mxu0 0.0
        %909 = vmatprep.subr.mxu0 0.0
        %910 = vmatpush1.msra.mxu0 0.0
        %911 = vmatprep.subr.mxu0 0.0
        %912 = vmatpush1.msra.mxu0 0.0
        %913 = vmatprep.subr.mxu0 0.0
        %914 = vmatpush1.msra.mxu0 0.0
        %915 = vmatprep.subr.mxu0 0.0
        %916 = vmatpush1.msra.mxu0 0.0
        %917 = vmatprep.mubr.f32.mxu0 0.0
        %918 = vmatmul.mubr.f32.gmra.mrb[0].mxu0 %v851
        %v919 = vpop.f32.mrb[0].mxu0
        %v920 = vadd.f32 0.0, %v919
        %v921 = vpop.f32.mrb[0].mxu0
        %922 = vdwg.mxu0
        %923 = vrot.lane.b32.xlu0 %v357, 64
        %v924 = vpop.permute.xlu0 %923
        %v927 = vsel %vm502, %v822, 0
        %929 = vmatprep.subr.mxu0 0.0
        %930 = vmatpush1.msra.mxu0 %v924
        %931 = vmatprep.subr.mxu0 0.0
        %932 = vmatpush1.msra.mxu0 0.0
        %933 = vmatprep.subr.mxu0 0.0
        %934 = vmatpush1.msra.mxu0 0.0
        %935 = vmatprep.subr.mxu0 0.0
        %936 = vmatpush1.msra.mxu0 0.0
        %937 = vmatprep.subr.mxu0 0.0
        %938 = vmatpush1.msra.mxu0 0.0
        %939 = vmatprep.subr.mxu0 0.0
        %940 = vmatpush1.msra.mxu0 0.0
        %941 = vmatprep.subr.mxu0 0.0
        %942 = vmatpush1.msra.mxu0 0.0
        %943 = vmatprep.subr.mxu0 0.0
        %944 = vmatpush1.msra.mxu0 0.0
        %945 = vmatprep.subr.mxu0 0.0
        %946 = vmatpush1.msra.mxu0 0.0
        %947 = vmatprep.subr.mxu0 0.0
        %948 = vmatpush1.msra.mxu0 0.0
        %949 = vmatprep.subr.mxu0 0.0
        %950 = vmatpush1.msra.mxu0 0.0
        %951 = vmatprep.subr.mxu0 0.0
        %952 = vmatpush1.msra.mxu0 0.0
        %953 = vmatprep.subr.mxu0 0.0
        %954 = vmatpush1.msra.mxu0 0.0
        %955 = vmatprep.subr.mxu0 0.0
        %956 = vmatpush1.msra.mxu0 0.0
        %957 = vmatprep.subr.mxu0 0.0
        %958 = vmatpush1.msra.mxu0 0.0
        %959 = vmatprep.subr.mxu0 0.0
        %960 = vmatpush1.msra.mxu0 0.0
        %961 = vmatprep.subr.mxu0 0.0
        %962 = vmatpush1.msra.mxu0 0.0
        %963 = vmatprep.subr.mxu0 0.0
        %964 = vmatpush1.msra.mxu0 0.0
        %965 = vmatprep.subr.mxu0 0.0
        %966 = vmatpush1.msra.mxu0 0.0
        %967 = vmatprep.subr.mxu0 0.0
        %968 = vmatpush1.msra.mxu0 0.0
        %969 = vmatprep.subr.mxu0 0.0
        %970 = vmatpush1.msra.mxu0 0.0
        %971 = vmatprep.subr.mxu0 0.0
        %972 = vmatpush1.msra.mxu0 0.0
        %973 = vmatprep.subr.mxu0 0.0
        %974 = vmatpush1.msra.mxu0 0.0
        %975 = vmatprep.subr.mxu0 0.0
        %976 = vmatpush1.msra.mxu0 0.0
        %977 = vmatprep.subr.mxu0 0.0
        %978 = vmatpush1.msra.mxu0 0.0
        %979 = vmatprep.subr.mxu0 0.0
        %980 = vmatpush1.msra.mxu0 0.0
        %981 = vmatprep.subr.mxu0 0.0
        %982 = vmatpush1.msra.mxu0 0.0
        %983 = vmatprep.subr.mxu0 0.0
        %984 = vmatpush1.msra.mxu0 0.0
        %985 = vmatprep.subr.mxu0 0.0
        %986 = vmatpush1.msra.mxu0 0.0
        %987 = vmatprep.subr.mxu0 0.0
        %988 = vmatpush1.msra.mxu0 0.0
        %989 = vmatprep.subr.mxu0 0.0
        %990 = vmatpush1.msra.mxu0 0.0
        %991 = vmatprep.subr.mxu0 0.0
        %992 = vmatpush1.msra.mxu0 0.0
        %993 = vmatprep.mubr.f32.mxu0 0.0
        %994 = vmatmul.mubr.f32.gmra.mrb[0].mxu0 %v927
        %v995 = vpop.f32.mrb[0].mxu0
        %v996 = vadd.f32 0.0, %v995
        %v997 = vpop.f32.mrb[0].mxu0
        %998 = vdwg.mxu0
        %999 = vrot.lane.b32.xlu0 %v359, 64
        %v1000 = vpop.permute.xlu0 %999
        %v1003 = vsel %vm502, %v824, 0
        %1005 = vmatprep.subr.mxu0 0.0
        %1006 = vmatpush1.msra.mxu0 %v1000
        %1007 = vmatprep.subr.mxu0 0.0
        %1008 = vmatpush1.msra.mxu0 0.0
        %1009 = vmatprep.subr.mxu0 0.0
        %1010 = vmatpush1.msra.mxu0 0.0
        %1011 = vmatprep.subr.mxu0 0.0
        %1012 = vmatpush1.msra.mxu0 0.0
        %1013 = vmatprep.subr.mxu0 0.0
        %1014 = vmatpush1.msra.mxu0 0.0
        %1015 = vmatprep.subr.mxu0 0.0
        %1016 = vmatpush1.msra.mxu0 0.0
        %1017 = vmatprep.subr.mxu0 0.0
        %1018 = vmatpush1.msra.mxu0 0.0
        %1019 = vmatprep.subr.mxu0 0.0
        %1020 = vmatpush1.msra.mxu0 0.0
        %1021 = vmatprep.subr.mxu0 0.0
        %1022 = vmatpush1.msra.mxu0 0.0
        %1023 = vmatprep.subr.mxu0 0.0
        %1024 = vmatpush1.msra.mxu0 0.0
        %1025 = vmatprep.subr.mxu0 0.0
        %1026 = vmatpush1.msra.mxu0 0.0
        %1027 = vmatprep.subr.mxu0 0.0
        %1028 = vmatpush1.msra.mxu0 0.0
        %1029 = vmatprep.subr.mxu0 0.0
        %1030 = vmatpush1.msra.mxu0 0.0
        %1031 = vmatprep.subr.mxu0 0.0
        %1032 = vmatpush1.msra.mxu0 0.0
        %1033 = vmatprep.subr.mxu0 0.0
        %1034 = vmatpush1.msra.mxu0 0.0
        %1035 = vmatprep.subr.mxu0 0.0
        %1036 = vmatpush1.msra.mxu0 0.0
        %1037 = vmatprep.subr.mxu0 0.0
        %1038 = vmatpush1.msra.mxu0 0.0
        %1039 = vmatprep.subr.mxu0 0.0
        %1040 = vmatpush1.msra.mxu0 0.0
        %1041 = vmatprep.subr.mxu0 0.0
        %1042 = vmatpush1.msra.mxu0 0.0
        %1043 = vmatprep.subr.mxu0 0.0
        %1044 = vmatpush1.msra.mxu0 0.0
        %1045 = vmatprep.subr.mxu0 0.0
        %1046 = vmatpush1.msra.mxu0 0.0
        %1047 = vmatprep.subr.mxu0 0.0
        %1048 = vmatpush1.msra.mxu0 0.0
        %1049 = vmatprep.subr.mxu0 0.0
        %1050 = vmatpush1.msra.mxu0 0.0
        %1051 = vmatprep.subr.mxu0 0.0
        %1052 = vmatpush1.msra.mxu0 0.0
        %1053 = vmatprep.subr.mxu0 0.0
        %1054 = vmatpush1.msra.mxu0 0.0
        %1055 = vmatprep.subr.mxu0 0.0
        %1056 = vmatpush1.msra.mxu0 0.0
        %1057 = vmatprep.subr.mxu0 0.0
        %1058 = vmatpush1.msra.mxu0 0.0
        %1059 = vmatprep.subr.mxu0 0.0
        %1060 = vmatpush1.msra.mxu0 0.0
        %1061 = vmatprep.subr.mxu0 0.0
        %1062 = vmatpush1.msra.mxu0 0.0
        %1063 = vmatprep.subr.mxu0 0.0
        %1064 = vmatpush1.msra.mxu0 0.0
        %1065 = vmatprep.subr.mxu0 0.0
        %1066 = vmatpush1.msra.mxu0 0.0
        %1067 = vmatprep.subr.mxu0 0.0
        %1068 = vmatpush1.msra.mxu0 0.0
        %1069 = vmatprep.mubr.f32.mxu0 0.0
        %1070 = vmatmul.mubr.f32.gmra.mrb[0].mxu0 %v1003
        %v1071 = vpop.f32.mrb[0].mxu0
        %v1072 = vadd.f32 0.0, %v1071
        %v1073 = vpop.f32.mrb[0].mxu0
        %1074 = vdwg.mxu0
        %1075 = vrot.lane.b32.xlu0 %v361, 64
        %v1076 = vpop.permute.xlu0 %1075
        %v1079 = vsel %vm502, %v826, 0
        %1081 = vmatprep.subr.mxu0 0.0
        %1082 = vmatpush1.msra.mxu0 %v1076
        %1083 = vmatprep.subr.mxu0 0.0
        %1084 = vmatpush1.msra.mxu0 0.0
        %1085 = vmatprep.subr.mxu0 0.0
        %1086 = vmatpush1.msra.mxu0 0.0
        %1087 = vmatprep.subr.mxu0 0.0
        %1088 = vmatpush1.msra.mxu0 0.0
        %1089 = vmatprep.subr.mxu0 0.0
        %1090 = vmatpush1.msra.mxu0 0.0
        %1091 = vmatprep.subr.mxu0 0.0
        %1092 = vmatpush1.msra.mxu0 0.0
        %1093 = vmatprep.subr.mxu0 0.0
        %1094 = vmatpush1.msra.mxu0 0.0
        %1095 = vmatprep.subr.mxu0 0.0
        %1096 = vmatpush1.msra.mxu0 0.0
        %1097 = vmatprep.subr.mxu0 0.0
        %1098 = vmatpush1.msra.mxu0 0.0
        %1099 = vmatprep.subr.mxu0 0.0
        %1100 = vmatpush1.msra.mxu0 0.0
        %1101 = vmatprep.subr.mxu0 0.0
        %1102 = vmatpush1.msra.mxu0 0.0
        %1103 = vmatprep.subr.mxu0 0.0
        %1104 = vmatpush1.msra.mxu0 0.0
        %1105 = vmatprep.subr.mxu0 0.0
        %1106 = vmatpush1.msra.mxu0 0.0
        %1107 = vmatprep.subr.mxu0 0.0
        %1108 = vmatpush1.msra.mxu0 0.0
        %1109 = vmatprep.subr.mxu0 0.0
        %1110 = vmatpush1.msra.mxu0 0.0
        %1111 = vmatprep.subr.mxu0 0.0
        %1112 = vmatpush1.msra.mxu0 0.0
        %1113 = vmatprep.subr.mxu0 0.0
        %1114 = vmatpush1.msra.mxu0 0.0
        %1115 = vmatprep.subr.mxu0 0.0
        %1116 = vmatpush1.msra.mxu0 0.0
        %1117 = vmatprep.subr.mxu0 0.0
        %1118 = vmatpush1.msra.mxu0 0.0
        %1119 = vmatprep.subr.mxu0 0.0
        %1120 = vmatpush1.msra.mxu0 0.0
        %1121 = vmatprep.subr.mxu0 0.0
        %1122 = vmatpush1.msra.mxu0 0.0
        %1123 = vmatprep.subr.mxu0 0.0
        %1124 = vmatpush1.msra.mxu0 0.0
        %1125 = vmatprep.subr.mxu0 0.0
        %1126 = vmatpush1.msra.mxu0 0.0
        %1127 = vmatprep.subr.mxu0 0.0
        %1128 = vmatpush1.msra.mxu0 0.0
        %1129 = vmatprep.subr.mxu0 0.0
        %1130 = vmatpush1.msra.mxu0 0.0
        %1131 = vmatprep.subr.mxu0 0.0
        %1132 = vmatpush1.msra.mxu0 0.0
        %1133 = vmatprep.subr.mxu0 0.0
        %1134 = vmatpush1.msra.mxu0 0.0
        %1135 = vmatprep.subr.mxu0 0.0
        %1136 = vmatpush1.msra.mxu0 0.0
        %1137 = vmatprep.subr.mxu0 0.0
        %1138 = vmatpush1.msra.mxu0 0.0
        %1139 = vmatprep.subr.mxu0 0.0
        %1140 = vmatpush1.msra.mxu0 0.0
        %1141 = vmatprep.subr.mxu0 0.0
        %1142 = vmatpush1.msra.mxu0 0.0
        %1143 = vmatprep.subr.mxu0 0.0
        %1144 = vmatpush1.msra.mxu0 0.0
        %1145 = vmatprep.mubr.f32.mxu0 0.0
        %1146 = vmatmul.mubr.f32.gmra.mrb[0].mxu0 %v1079
        %v1147 = vpop.f32.mrb[0].mxu0
        %v1148 = vadd.f32 0.0, %v1147
        %v1149 = vpop.f32.mrb[0].mxu0
        %1150 = vdwg.mxu0
        %v1151 = vadd.f32 %v827, %v920
        %v1152 = vadd.f32 %v828, %v996
        %v1153 = vadd.f32 %v829, %v1072
        %v1154 = vadd.f32 %v830, %v1148
        %v1155 = vrcp.pop %v843
        %v1156 = vrcp.pop %v844
        %v1157 = vrcp.pop %v845
        %v1158 = vrcp.pop %v846
        %v1159 = vmul.f32 %v1151, %v1155
        %v1160 = vmul.f32 %v1152, %v1156
        %v1161 = vmul.f32 %v1153, %v1157
        %v1162 = vmul.f32 %v1154, %v1158
        %v1163 = vld [vmem:[%s4] sm:$0x1]
        %v1164 = vld [vmem:[#allocation7] sm:$0xff]
        %v1166 = vsel %vm502, %v1159, 0
        %1168 = vmatprep.subr.mxu0 0.0
        %1169 = vmatpush1.msra.mxu0 %v1164
        %1170 = vmatprep.subr.mxu0 0.0
        %1171 = vmatpush1.msra.mxu0 0.0
        %1172 = vmatprep.subr.mxu0 0.0
        %1173 = vmatpush1.msra.mxu0 0.0
        %1174 = vmatprep.subr.mxu0 0.0
        %1175 = vmatpush1.msra.mxu0 0.0
        %1176 = vmatprep.subr.mxu0 0.0
        %1177 = vmatpush1.msra.mxu0 0.0
        %1178 = vmatprep.subr.mxu0 0.0
        %1179 = vmatpush1.msra.mxu0 0.0
        %1180 = vmatprep.subr.mxu0 0.0
        %1181 = vmatpush1.msra.mxu0 0.0
        %1182 = vmatprep.subr.mxu0 0.0
        %1183 = vmatpush1.msra.mxu0 0.0
        %1184 = vmatprep.subr.mxu0 0.0
        %1185 = vmatpush1.msra.mxu0 0.0
        %1186 = vmatprep.subr.mxu0 0.0
        %1187 = vmatpush1.msra.mxu0 0.0
        %1188 = vmatprep.subr.mxu0 0.0
        %1189 = vmatpush1.msra.mxu0 0.0
        %1190 = vmatprep.subr.mxu0 0.0
        %1191 = vmatpush1.msra.mxu0 0.0
        %1192 = vmatprep.subr.mxu0 0.0
        %1193 = vmatpush1.msra.mxu0 0.0
        %1194 = vmatprep.subr.mxu0 0.0
        %1195 = vmatpush1.msra.mxu0 0.0
        %1196 = vmatprep.subr.mxu0 0.0
        %1197 = vmatpush1.msra.mxu0 0.0
        %1198 = vmatprep.subr.mxu0 0.0
        %1199 = vmatpush1.msra.mxu0 0.0
        %1200 = vmatprep.subr.mxu0 0.0
        %1201 = vmatpush1.msra.mxu0 0.0
        %1202 = vmatprep.subr.mxu0 0.0
        %1203 = vmatpush1.msra.mxu0 0.0
        %1204 = vmatprep.subr.mxu0 0.0
        %1205 = vmatpush1.msra.mxu0 0.0
        %1206 = vmatprep.subr.mxu0 0.0
        %1207 = vmatpush1.msra.mxu0 0.0
        %1208 = vmatprep.subr.mxu0 0.0
        %1209 = vmatpush1.msra.mxu0 0.0
        %1210 = vmatprep.subr.mxu0 0.0
        %1211 = vmatpush1.msra.mxu0 0.0
        %1212 = vmatprep.subr.mxu0 0.0
        %1213 = vmatpush1.msra.mxu0 0.0
        %1214 = vmatprep.subr.mxu0 0.0
        %1215 = vmatpush1.msra.mxu0 0.0
        %1216 = vmatprep.subr.mxu0 0.0
        %1217 = vmatpush1.msra.mxu0 0.0
        %1218 = vmatprep.subr.mxu0 0.0
        %1219 = vmatpush1.msra.mxu0 0.0
        %1220 = vmatprep.subr.mxu0 0.0
        %1221 = vmatpush1.msra.mxu0 0.0
        %1222 = vmatprep.subr.mxu0 0.0
        %1223 = vmatpush1.msra.mxu0 0.0
        %1224 = vmatprep.subr.mxu0 0.0
        %1225 = vmatpush1.msra.mxu0 0.0
        %1226 = vmatprep.subr.mxu0 0.0
        %1227 = vmatpush1.msra.mxu0 0.0
        %1228 = vmatprep.subr.mxu0 0.0
        %1229 = vmatpush1.msra.mxu0 0.0
        %1230 = vmatprep.subr.mxu0 0.0
        %1231 = vmatpush1.msra.mxu0 0.0
        %1232 = vmatprep.mubr.f32.mxu0 0.0
        %1233 = vmatmul.mubr.f32.gmra.mrb[0].mxu0 %v1166
        %v1234 = vpop.f32.mrb[0].mxu0
        %v1235 = vadd.f32 0.0, %v1234
        %v1236 = vpop.f32.mrb[0].mxu0
        %1237 = vdwg.mxu0
        %v1239 = vlaneseq
        %v1240 = vshrl.u32 %v1239, 7
        %v1241 = vsub.s32 0, %v1240
        %v1242 = vrot.slane %v1163, %v1241
        %v1244 = vadd.f32 %v1242, %v1235
        %s1245 = scalar_lea.vmem [#allocation7], 8
        %v1246 = vld [vmem:[%s1245] sm:$0xff]
        %v1248 = vsel %vm502, %v1160, 0
        %1250 = vmatprep.subr.mxu0 0.0
        %1251 = vmatpush1.msra.mxu0 %v1246
        %1252 = vmatprep.subr.mxu0 0.0
        %1253 = vmatpush1.msra.mxu0 0.0
        %1254 = vmatprep.subr.mxu0 0.0
        %1255 = vmatpush1.msra.mxu0 0.0
        %1256 = vmatprep.subr.mxu0 0.0
        %1257 = vmatpush1.msra.mxu0 0.0
        %1258 = vmatprep.subr.mxu0 0.0
        %1259 = vmatpush1.msra.mxu0 0.0
        %1260 = vmatprep.subr.mxu0 0.0
        %1261 = vmatpush1.msra.mxu0 0.0
        %1262 = vmatprep.subr.mxu0 0.0
        %1263 = vmatpush1.msra.mxu0 0.0
        %1264 = vmatprep.subr.mxu0 0.0
        %1265 = vmatpush1.msra.mxu0 0.0
        %1266 = vmatprep.subr.mxu0 0.0
        %1267 = vmatpush1.msra.mxu0 0.0
        %1268 = vmatprep.subr.mxu0 0.0
        %1269 = vmatpush1.msra.mxu0 0.0
        %1270 = vmatprep.subr.mxu0 0.0
        %1271 = vmatpush1.msra.mxu0 0.0
        %1272 = vmatprep.subr.mxu0 0.0
        %1273 = vmatpush1.msra.mxu0 0.0
        %1274 = vmatprep.subr.mxu0 0.0
        %1275 = vmatpush1.msra.mxu0 0.0
        %1276 = vmatprep.subr.mxu0 0.0
        %1277 = vmatpush1.msra.mxu0 0.0
        %1278 = vmatprep.subr.mxu0 0.0
        %1279 = vmatpush1.msra.mxu0 0.0
        %1280 = vmatprep.subr.mxu0 0.0
        %1281 = vmatpush1.msra.mxu0 0.0
        %1282 = vmatprep.subr.mxu0 0.0
        %1283 = vmatpush1.msra.mxu0 0.0
        %1284 = vmatprep.subr.mxu0 0.0
        %1285 = vmatpush1.msra.mxu0 0.0
        %1286 = vmatprep.subr.mxu0 0.0
        %1287 = vmatpush1.msra.mxu0 0.0
        %1288 = vmatprep.subr.mxu0 0.0
        %1289 = vmatpush1.msra.mxu0 0.0
        %1290 = vmatprep.subr.mxu0 0.0
        %1291 = vmatpush1.msra.mxu0 0.0
        %1292 = vmatprep.subr.mxu0 0.0
        %1293 = vmatpush1.msra.mxu0 0.0
        %1294 = vmatprep.subr.mxu0 0.0
        %1295 = vmatpush1.msra.mxu0 0.0
        %1296 = vmatprep.subr.mxu0 0.0
        %1297 = vmatpush1.msra.mxu0 0.0
        %1298 = vmatprep.subr.mxu0 0.0
        %1299 = vmatpush1.msra.mxu0 0.0
        %1300 = vmatprep.subr.mxu0 0.0
        %1301 = vmatpush1.msra.mxu0 0.0
        %1302 = vmatprep.subr.mxu0 0.0
        %1303 = vmatpush1.msra.mxu0 0.0
        %1304 = vmatprep.subr.mxu0 0.0
        %1305 = vmatpush1.msra.mxu0 0.0
        %1306 = vmatprep.subr.mxu0 0.0
        %1307 = vmatpush1.msra.mxu0 0.0
        %1308 = vmatprep.subr.mxu0 0.0
        %1309 = vmatpush1.msra.mxu0 0.0
        %1310 = vmatprep.subr.mxu0 0.0
        %1311 = vmatpush1.msra.mxu0 0.0
        %1312 = vmatprep.subr.mxu0 0.0
        %1313 = vmatpush1.msra.mxu0 0.0
        %1314 = vmatprep.mubr.f32.mxu0 0.0
        %1315 = vmatmul.mubr.f32.gmra.mrb[0].mxu0 %v1248
        %v1316 = vpop.f32.mrb[0].mxu0
        %v1317 = vadd.f32 0.0, %v1316
        %v1318 = vpop.f32.mrb[0].mxu0
        %1319 = vdwg.mxu0
        %v1320 = vadd.f32 %v1244, %v1317
        %s1321 = scalar_lea.vmem [#allocation7], 16
        %v1322 = vld [vmem:[%s1321] sm:$0xff]
        %v1324 = vsel %vm502, %v1161, 0
        %1326 = vmatprep.subr.mxu0 0.0
        %1327 = vmatpush1.msra.mxu0 %v1322
        %1328 = vmatprep.subr.mxu0 0.0
        %1329 = vmatpush1.msra.mxu0 0.0
        %1330 = vmatprep.subr.mxu0 0.0
        %1331 = vmatpush1.msra.mxu0 0.0
        %1332 = vmatprep.subr.mxu0 0.0
        %1333 = vmatpush1.msra.mxu0 0.0
        %1334 = vmatprep.subr.mxu0 0.0
        %1335 = vmatpush1.msra.mxu0 0.0
        %1336 = vmatprep.subr.mxu0 0.0
        %1337 = vmatpush1.msra.mxu0 0.0
        %1338 = vmatprep.subr.mxu0 0.0
        %1339 = vmatpush1.msra.mxu0 0.0
        %1340 = vmatprep.subr.mxu0 0.0
        %1341 = vmatpush1.msra.mxu0 0.0
        %1342 = vmatprep.subr.mxu0 0.0
        %1343 = vmatpush1.msra.mxu0 0.0
        %1344 = vmatprep.subr.mxu0 0.0
        %1345 = vmatpush1.msra.mxu0 0.0
        %1346 = vmatprep.subr.mxu0 0.0
        %1347 = vmatpush1.msra.mxu0 0.0
        %1348 = vmatprep.subr.mxu0 0.0
        %1349 = vmatpush1.msra.mxu0 0.0
        %1350 = vmatprep.subr.mxu0 0.0
        %1351 = vmatpush1.msra.mxu0 0.0
        %1352 = vmatprep.subr.mxu0 0.0
        %1353 = vmatpush1.msra.mxu0 0.0
        %1354 = vmatprep.subr.mxu0 0.0
        %1355 = vmatpush1.msra.mxu0 0.0
        %1356 = vmatprep.subr.mxu0 0.0
        %1357 = vmatpush1.msra.mxu0 0.0
        %1358 = vmatprep.subr.mxu0 0.0
        %1359 = vmatpush1.msra.mxu0 0.0
        %1360 = vmatprep.subr.mxu0 0.0
        %1361 = vmatpush1.msra.mxu0 0.0
        %1362 = vmatprep.subr.mxu0 0.0
        %1363 = vmatpush1.msra.mxu0 0.0
        %1364 = vmatprep.subr.mxu0 0.0
        %1365 = vmatpush1.msra.mxu0 0.0
        %1366 = vmatprep.subr.mxu0 0.0
        %1367 = vmatpush1.msra.mxu0 0.0
        %1368 = vmatprep.subr.mxu0 0.0
        %1369 = vmatpush1.msra.mxu0 0.0
        %1370 = vmatprep.subr.mxu0 0.0
        %1371 = vmatpush1.msra.mxu0 0.0
        %1372 = vmatprep.subr.mxu0 0.0
        %1373 = vmatpush1.msra.mxu0 0.0
        %1374 = vmatprep.subr.mxu0 0.0
        %1375 = vmatpush1.msra.mxu0 0.0
        %1376 = vmatprep.subr.mxu0 0.0
        %1377 = vmatpush1.msra.mxu0 0.0
        %1378 = vmatprep.subr.mxu0 0.0
        %1379 = vmatpush1.msra.mxu0 0.0
        %1380 = vmatprep.subr.mxu0 0.0
        %1381 = vmatpush1.msra.mxu0 0.0
        %1382 = vmatprep.subr.mxu0 0.0
        %1383 = vmatpush1.msra.mxu0 0.0
        %1384 = vmatprep.subr.mxu0 0.0
        %1385 = vmatpush1.msra.mxu0 0.0
        %1386 = vmatprep.subr.mxu0 0.0
        %1387 = vmatpush1.msra.mxu0 0.0
        %1388 = vmatprep.subr.mxu0 0.0
        %1389 = vmatpush1.msra.mxu0 0.0
        %1390 = vmatprep.mubr.f32.mxu0 0.0
        %1391 = vmatmul.mubr.f32.gmra.mrb[0].mxu0 %v1324
        %v1392 = vpop.f32.mrb[0].mxu0
        %v1393 = vadd.f32 0.0, %v1392
        %v1394 = vpop.f32.mrb[0].mxu0
        %1395 = vdwg.mxu0
        %v1396 = vadd.f32 %v1320, %v1393
        %s1397 = scalar_lea.vmem [#allocation7], 24
        %v1398 = vld [vmem:[%s1397] sm:$0xff]
        %v1400 = vsel %vm502, %v1162, 0
        %1402 = vmatprep.subr.mxu0 0.0
        %1403 = vmatpush1.msra.mxu0 %v1398
        %1404 = vmatprep.subr.mxu0 0.0
        %1405 = vmatpush1.msra.mxu0 0.0
        %1406 = vmatprep.subr.mxu0 0.0
        %1407 = vmatpush1.msra.mxu0 0.0
        %1408 = vmatprep.subr.mxu0 0.0
        %1409 = vmatpush1.msra.mxu0 0.0
        %1410 = vmatprep.subr.mxu0 0.0
        %1411 = vmatpush1.msra.mxu0 0.0
        %1412 = vmatprep.subr.mxu0 0.0
        %1413 = vmatpush1.msra.mxu0 0.0
        %1414 = vmatprep.subr.mxu0 0.0
        %1415 = vmatpush1.msra.mxu0 0.0
        %1416 = vmatprep.subr.mxu0 0.0
        %1417 = vmatpush1.msra.mxu0 0.0
        %1418 = vmatprep.subr.mxu0 0.0
        %1419 = vmatpush1.msra.mxu0 0.0
        %1420 = vmatprep.subr.mxu0 0.0
        %1421 = vmatpush1.msra.mxu0 0.0
        %1422 = vmatprep.subr.mxu0 0.0
        %1423 = vmatpush1.msra.mxu0 0.0
        %1424 = vmatprep.subr.mxu0 0.0
        %1425 = vmatpush1.msra.mxu0 0.0
        %1426 = vmatprep.subr.mxu0 0.0
        %1427 = vmatpush1.msra.mxu0 0.0
        %1428 = vmatprep.subr.mxu0 0.0
        %1429 = vmatpush1.msra.mxu0 0.0
        %1430 = vmatprep.subr.mxu0 0.0
        %1431 = vmatpush1.msra.mxu0 0.0
        %1432 = vmatprep.subr.mxu0 0.0
        %1433 = vmatpush1.msra.mxu0 0.0
        %1434 = vmatprep.subr.mxu0 0.0
        %1435 = vmatpush1.msra.mxu0 0.0
        %1436 = vmatprep.subr.mxu0 0.0
        %1437 = vmatpush1.msra.mxu0 0.0
        %1438 = vmatprep.subr.mxu0 0.0
        %1439 = vmatpush1.msra.mxu0 0.0
        %1440 = vmatprep.subr.mxu0 0.0
        %1441 = vmatpush1.msra.mxu0 0.0
        %1442 = vmatprep.subr.mxu0 0.0
        %1443 = vmatpush1.msra.mxu0 0.0
        %1444 = vmatprep.subr.mxu0 0.0
        %1445 = vmatpush1.msra.mxu0 0.0
        %1446 = vmatprep.subr.mxu0 0.0
        %1447 = vmatpush1.msra.mxu0 0.0
        %1448 = vmatprep.subr.mxu0 0.0
        %1449 = vmatpush1.msra.mxu0 0.0
        %1450 = vmatprep.subr.mxu0 0.0
        %1451 = vmatpush1.msra.mxu0 0.0
        %1452 = vmatprep.subr.mxu0 0.0
        %1453 = vmatpush1.msra.mxu0 0.0
        %1454 = vmatprep.subr.mxu0 0.0
        %1455 = vmatpush1.msra.mxu0 0.0
        %1456 = vmatprep.subr.mxu0 0.0
        %1457 = vmatpush1.msra.mxu0 0.0
        %1458 = vmatprep.subr.mxu0 0.0
        %1459 = vmatpush1.msra.mxu0 0.0
        %1460 = vmatprep.subr.mxu0 0.0
        %1461 = vmatpush1.msra.mxu0 0.0
        %1462 = vmatprep.subr.mxu0 0.0
        %1463 = vmatpush1.msra.mxu0 0.0
        %1464 = vmatprep.subr.mxu0 0.0
        %1465 = vmatpush1.msra.mxu0 0.0
        %1466 = vmatprep.mubr.f32.mxu0 0.0
        %1467 = vmatmul.mubr.f32.gmra.mrb[0].mxu0 %v1400
        %v1468 = vpop.f32.mrb[0].mxu0
        %v1469 = vadd.f32 0.0, %v1468
        %v1470 = vpop.f32.mrb[0].mxu0
        %1471 = vdwg.mxu0
        %v1472 = vadd.f32 %v1396, %v1469
        %1473 = vst.msk [vmem:[%s268] sm:$0xff] %vm281, %v1472
        %s1474 = sand.u32 %s141, 1
        %s1475 = scalar_lea.sflag [#allocation4], %s1474
        %s1476 = sand.u32 %s141, 1
        %s1477 = smul.addr %s1476, 8
        %s1478 = scalar_lea.vmem [#allocation8], %s1477
        // Predicated region
        $region53: #{tpu_custom_call.1} parent=39 // pred_check
          %p1479 = pneg %p151
        $region54: #{tpu_custom_call.1} parent=39 // pred_check_branch
          %1481 = sbr.rel (%p1479) target = $region56
        $region55: #{tpu_custom_call.1} parent=39 // pred_region
          %s1483 = ssub.s32 128, 128
          %1484 = vsyncadd %s1475, %s1483
          %s1485 = smul.addr %s23, 128
          %s1486 = scalar_lea.hbm %s5, %s1485
          %s1488 = sshll.u32 %s1478, 4
          %s1489 = int_to_ptr.vmem [resolvable:$true] %s1488
          %1491 = dma.vmem_to_hbm [thread:$0]  %s1489, 128, %s1486, %s1475
        $region56: #{tpu_custom_call.1} parent=39 // pred_fallthru
          _
      $region40: #{tpu_custom_call.1} parent=5 // pred_fallthru
        _
      %p1492 = scmp.le.s32.totalorder 2, %s18
      // Predicated region
      $region57: #{tpu_custom_call.1} parent=5 // pred_check
        %p1493 = pneg %p1492
      $region58: #{tpu_custom_call.1} parent=5 // pred_check_branch
        %1495 = sbr.rel (%p1493) target = $region60
      $region59: #{tpu_custom_call.1} parent=5 // pred_region
        %s1496 = ssub.s32 %s18, 2
        // Predicated region
        $region61: #{tpu_custom_call.1} parent=59 // pred_check
          %p1497 = pneg %p157
        $region62: #{tpu_custom_call.1} parent=59 // pred_check_branch
          %1499 = sbr.rel (%p1497) target = $region64
        $region63: #{tpu_custom_call.1} parent=59 // pred_region
          %s1500 = sand.u32 %s142, 1
          %s1501 = scalar_lea.sflag [#allocation4], %s1500
          %s1502 = sand.u32 %s142, 1
          %s1503 = smul.addr %s1502, 8
          %s1504 = scalar_lea.vmem [#allocation8], %s1503
          %1505 = dma.done %s1501, 128
        $region64: #{tpu_custom_call.1} parent=59 // pred_fallthru
          _
      $region60: #{tpu_custom_call.1} parent=5 // pred_fallthru
        _
    $region6: #{tpu_custom_call.1} parent=1 // loop_footer
      %s22 = sadd.s32 1, %s18
    $region7: #{tpu_custom_call.1} parent=1 // loop_footer_branch
      %17 = sbr.rel target = $region3
    $region8: #{tpu_custom_call.1} parent=1 // loop_exit
      _
    %1506 = vsyncpa [#allocation3], 1
    %s1507 = scalar_lea.sflag [#allocation3], 1
    %1508 = vsyncpa %s1507, 1
    %1509 = vsyncpa [#allocation6], 1
    %1510 = vsyncpa [#allocation4], 1
    %s1511 = scalar_lea.sflag [#allocation4], 1
    %1512 = vsyncpa %s1511, 1

</llo_original>
